<compile_context>
chip_gen: v5e
topology: v5e:2x2
jax: 0.10.0
libtpu: 0.0.40
codegen_flags: <defaults>
</compile_context>

<pallas_src>
import functools

import jax
import jax.numpy as jnp
from jax import lax
from jax.experimental import pallas as pl
from jax.experimental.pallas import tpu as pltpu

D_IN, D1, D2, D3, D4, D_OUT = 768, 512, 256, 128, 64, 2
OUT_PAD = 128                    # lane-dense output block width
LN_EPS = 1e-5
VMEM_LIMIT = 48 * 1024 * 1024    # fits v7x (64 MiB/TC); plenty on v5e/v6e (128 MiB)


def _round_up(n, m):
    return ((n + m - 1) // m) * m


def _mlp_kernel(x_ref,
                w1_ref, b1_ref,
                w2_ref, b2_ref,
                g_ref, beta_ref,
                w3_ref, b3_ref,
                w4_ref, b4_ref,
                w5_ref, b5_ref,
                o_ref):
    # In-kernel f32 -> bf16 cast of the activation tile (saves a wrapper HBM pass).
    x = x_ref[...].astype(jnp.bfloat16)

    # Linear(768,512) + ReLU      (Dropout -> identity in eval)
    h = jnp.dot(x, w1_ref[...], preferred_element_type=jnp.float32) + b1_ref[...]
    h = jnp.maximum(h, 0.0)

    # Linear(512,256) + ReLU
    h = jnp.dot(h.astype(jnp.bfloat16), w2_ref[...],
                preferred_element_type=jnp.float32) + b2_ref[...]
    h = jnp.maximum(h, 0.0)

    # LayerNorm(256) -- two-pass statistics in f32
    mu = jnp.mean(h, axis=-1, keepdims=True)
    c = h - mu
    var = jnp.mean(c * c, axis=-1, keepdims=True)
    h = c * lax.rsqrt(var + LN_EPS) * g_ref[...] + beta_ref[...]

    # Linear(256,128) + ReLU
    h = jnp.dot(h.astype(jnp.bfloat16), w3_ref[...],
                preferred_element_type=jnp.float32) + b3_ref[...]
    h = jnp.maximum(h, 0.0)

    # Linear(128,64) + ReLU
    h = jnp.dot(h.astype(jnp.bfloat16), w4_ref[...],
                preferred_element_type=jnp.float32) + b4_ref[...]
    h = jnp.maximum(h, 0.0)

    # Linear(64,2)
    logits = jnp.dot(h.astype(jnp.bfloat16), w5_ref[...],
                     preferred_element_type=jnp.float32) + b5_ref[...]

    # softmax over 2 classes == sigmoid of the logit difference (exact identity).
    d = logits[:, 1:2] - logits[:, 0:1]              # (tile_b, 1)
    p1 = 1.0 / (1.0 + jnp.exp(-d))                   # EUP exp, one divide
    p0 = 1.0 - p1

    # Lane-dense store: full 128-wide block, probabilities in lanes 0/1.
    col = lax.broadcasted_iota(jnp.int32, o_ref.shape, 1)
    o_ref[...] = jnp.where(col == 0, p0,
                           jnp.where(col == 1, p1, 0.0)).astype(o_ref.dtype)


def _make_specs(tile_b):
    def const(shape):
        # whole array, same block every grid step (weights stay VMEM-resident;
        # Pallas skips the re-DMA for a constant block index)
        return pl.BlockSpec(shape, lambda i: (0, 0))

    in_specs = [
        pl.BlockSpec((tile_b, D_IN), lambda i: (i, 0)),   # x tile (f32)
        const((D_IN, D1)), const((1, D1)),                # W1, b1
        const((D1, D2)), const((1, D2)),                  # W2, b2
        const((1, D2)), const((1, D2)),                   # LN gamma, beta
        const((D2, D3)), const((1, D3)),                  # W3, b3
        const((D3, D4)), const((1, D4)),                  # W4, b4
        const((D4, D_OUT)), const((1, D_OUT)),            # W5, b5
    ]
    out_spec = pl.BlockSpec((tile_b, OUT_PAD), lambda i: (i, 0))
    return in_specs, out_spec


@functools.partial(jax.jit, static_argnames=("tile_b",))
def _forward_jit(x, params, *, tile_b):
    B = x.shape[0]
    b_pad = _round_up(B, tile_b)
    if b_pad != B:                       # static decision under jit; pad fuses
        x = jnp.pad(x, ((0, b_pad - B), (0, 0)))

    in_specs, out_spec = _make_specs(tile_b)
    out = pl.pallas_call(
        _mlp_kernel,
        out_shape=jax.ShapeDtypeStruct((b_pad, OUT_PAD), jnp.float32),
        grid_spec=pltpu.PrefetchScalarGridSpec(
            num_scalar_prefetch=0,
            grid=(b_pad // tile_b,),
            in_specs=in_specs,
            out_specs=out_spec,
        ),
        compiler_params=pltpu.CompilerParams(
            dimension_semantics=("parallel",),
            vmem_limit_bytes=VMEM_LIMIT,
        ),
    )(x,
      params["w1"], params["b1"],
      params["w2"], params["b2"],
      params["ln_g"], params["ln_b"],
      params["w3"], params["b3"],
      params["w4"], params["b4"],
      params["w5"], params["b5"])
    return out[:B, :D_OUT]


def _pick_tile_b(B, requested):
    """Multiple of 8, no bigger than needed; >= 2 grid steps when possible (v7x 2 TCs)."""
    requested = max(8, (requested // 8) * 8)
    if B > requested:
        return requested
    half = _round_up(max((B + 1) // 2, 1), 8)
    return max(8, min(requested, half))


def board_evaluator_forward(x, params, *, tile_b=512):
    """x: (B, 768) float32.  params: dict of transposed (in,out) bf16 weights / f32 biases."""
    return _forward_jit(x, params, tile_b=_pick_tile_b(x.shape[0], tile_b))


def init_params(key):
    """Deterministic synthetic init. Linear weights stored TRANSPOSED (in, out), bf16."""
    ks = jax.random.split(key, 5)

    def lin(k, d_in, d_out):
        w = (jax.random.normal(k, (d_in, d_out), jnp.float32)
             * (1.0 / jnp.sqrt(d_in))).astype(jnp.bfloat16)
        b = jnp.zeros((1, d_out), jnp.float32)
        return w, b

    w1, b1 = lin(ks[0], D_IN, D1)
    w2, b2 = lin(ks[1], D1, D2)
    w3, b3 = lin(ks[2], D2, D3)
    w4, b4 = lin(ks[3], D3, D4)
    w5, b5 = lin(ks[4], D4, D_OUT)
    return dict(
        w1=w1, b1=b1, w2=w2, b2=b2,
        ln_g=jnp.ones((1, D2), jnp.float32), ln_b=jnp.zeros((1, D2), jnp.float32),
        w3=w3, b3=b3, w4=w4, b4=b4, w5=w5, b5=b5,
    )


def reference_forward_f32(x, p):
    """Full-f32 reference of the PyTorch forward (Dropout = identity in eval)."""
    h = jnp.maximum(x @ p["w1"].astype(jnp.float32) + p["b1"], 0.0)
    h = jnp.maximum(h @ p["w2"].astype(jnp.float32) + p["b2"], 0.0)
    mu = jnp.mean(h, axis=-1, keepdims=True)
    var = jnp.mean((h - mu) ** 2, axis=-1, keepdims=True)
    h = (h - mu) / jnp.sqrt(var + LN_EPS) * p["ln_g"] + p["ln_b"]
    h = jnp.maximum(h @ p["w3"].astype(jnp.float32) + p["b3"], 0.0)
    h = jnp.maximum(h @ p["w4"].astype(jnp.float32) + p["b4"], 0.0)
    logits = h @ p["w5"].astype(jnp.float32) + p["b5"]
    return jax.nn.softmax(logits, axis=1)


def reference_forward_bf16(x, p):
    """Mirrors the kernel's precision recipe: bf16 matmul inputs, f32 accumulation."""
    def mm(a, w):
        return jnp.dot(a.astype(jnp.bfloat16), w, preferred_element_type=jnp.float32)
    h = jnp.maximum(mm(x, p["w1"]) + p["b1"], 0.0)
    h = jnp.maximum(mm(h, p["w2"]) + p["b2"], 0.0)
    mu = jnp.mean(h, axis=-1, keepdims=True)
    c = h - mu
    var = jnp.mean(c * c, axis=-1, keepdims=True)
    h = c * lax.rsqrt(var + LN_EPS) * p["ln_g"] + p["ln_b"]
    h = jnp.maximum(mm(h, p["w3"]) + p["b3"], 0.0)
    h = jnp.maximum(mm(h, p["w4"]) + p["b4"], 0.0)
    logits = mm(h, p["w5"]) + p["b5"]
    m = jnp.max(logits, axis=-1, keepdims=True)
    e = jnp.exp(logits - m)
    return e / jnp.sum(e, axis=-1, keepdims=True)


if __name__ == "__main__":
    key = jax.random.PRNGKey(0)
    k_x, k_p = jax.random.split(key)

    # Small batch; the tile picker splits it into a grid of 2 steps, which
    # exercises the x/out index_maps and feeds both v7x TensorCores.
    B = 64
    x = jax.random.normal(k_x, (B, D_IN), jnp.float32)
    params = init_params(k_p)

    out = jax.block_until_ready(board_evaluator_forward(x, params))

    assert out.shape == (B, D_OUT)
    ref_match = reference_forward_bf16(x, params)
    ref_f32 = reference_forward_f32(x, params)
    assert jnp.allclose(out, ref_match, atol=2e-3, rtol=2e-3), \
        "mismatch vs precision-matched JAX reference"
    assert jnp.allclose(out, ref_f32, atol=5e-2), \
        "drifted too far from the full-f32 reference"
    assert jnp.allclose(jnp.sum(out, axis=1), 1.0, atol=1e-5), \
        "softmax rows must sum to 1"

    # Batch that is NOT a multiple of the chosen tile (exercises the padding path).
    x2 = jax.random.normal(k_x, (40, D_IN), jnp.float32)
    out2 = jax.block_until_ready(board_evaluator_forward(x2, params))
    assert out2.shape == (40, D_OUT)
    assert jnp.allclose(out2, reference_forward_bf16(x2, params), atol=2e-3, rtol=2e-3)

    # TODO(synk): nn.Dropout(0.1) is identity in eval mode; training-mode dropout
    # (pltpu.prng_* masks) is intentionally not implemented here.
    print("KERNEL_OK")
</pallas_src>

<mosaic_0001>
module attributes {stable_mosaic.version = 11 : i64} {
  func.func @_mlp_kernel(%arg0: i32, %arg1: memref<32x768xf32, #tpu.memory_space<vmem>>, %arg2: memref<768x512xbf16, #tpu.memory_space<vmem>>, %arg3: memref<1x512xf32, #tpu.memory_space<vmem>>, %arg4: memref<512x256xbf16, #tpu.memory_space<vmem>>, %arg5: memref<1x256xf32, #tpu.memory_space<vmem>>, %arg6: memref<1x256xf32, #tpu.memory_space<vmem>>, %arg7: memref<1x256xf32, #tpu.memory_space<vmem>>, %arg8: memref<256x128xbf16, #tpu.memory_space<vmem>>, %arg9: memref<1x128xf32, #tpu.memory_space<vmem>>, %arg10: memref<128x64xbf16, #tpu.memory_space<vmem>>, %arg11: memref<1x64xf32, #tpu.memory_space<vmem>>, %arg12: memref<64x2xbf16, #tpu.memory_space<vmem>>, %arg13: memref<1x2xf32, #tpu.memory_space<vmem>>, %arg14: memref<32x128xf32, #tpu.memory_space<vmem>>) attributes {dimension_semantics = [#tpu.dimension_semantics<parallel>], iteration_bounds = array<i64: 2>, scalar_prefetch = 0 : i64, scratch_operands = 0 : i64, tpu.core_type = #tpu.core_type<tc>, window_params = [{transform_indices = @transform_0, window_bounds = array<i64: 32, 768>}, {pipeline_mode = #tpu.pipeline_mode<synchronous>, transform_indices = @transform_1, window_bounds = array<i64: 768, 512>}, {pipeline_mode = #tpu.pipeline_mode<synchronous>, transform_indices = @transform_2, window_bounds = array<i64: 1, 512>}, {pipeline_mode = #tpu.pipeline_mode<synchronous>, transform_indices = @transform_3, window_bounds = array<i64: 512, 256>}, {pipeline_mode = #tpu.pipeline_mode<synchronous>, transform_indices = @transform_4, window_bounds = array<i64: 1, 256>}, {pipeline_mode = #tpu.pipeline_mode<synchronous>, transform_indices = @transform_5, window_bounds = array<i64: 1, 256>}, {pipeline_mode = #tpu.pipeline_mode<synchronous>, transform_indices = @transform_6, window_bounds = array<i64: 1, 256>}, {pipeline_mode = #tpu.pipeline_mode<synchronous>, transform_indices = @transform_7, window_bounds = array<i64: 256, 128>}, {pipeline_mode = #tpu.pipeline_mode<synchronous>, transform_indices = @transform_8, window_bounds = array<i64: 1, 128>}, {pipeline_mode = #tpu.pipeline_mode<synchronous>, transform_indices = @transform_9, window_bounds = array<i64: 128, 64>}, {pipeline_mode = #tpu.pipeline_mode<synchronous>, transform_indices = @transform_10, window_bounds = array<i64: 1, 64>}, {pipeline_mode = #tpu.pipeline_mode<synchronous>, transform_indices = @transform_11, window_bounds = array<i64: 64, 2>}, {pipeline_mode = #tpu.pipeline_mode<synchronous>, transform_indices = @transform_12, window_bounds = array<i64: 1, 2>}, {transform_indices = @transform_13, window_bounds = array<i64: 32, 128>}]} {
    %c0 = arith.constant 0 : index
    %c0_0 = arith.constant 0 : index
    %0 = vector.load %arg1[%c0, %c0_0] : memref<32x768xf32, #tpu.memory_space<vmem>>, vector<32x768xf32>
    %1 = arith.truncf %0 : vector<32x768xf32> to vector<32x768xbf16>
    %c0_1 = arith.constant 0 : index
    %c0_2 = arith.constant 0 : index
    %2 = vector.load %arg2[%c0_1, %c0_2] : memref<768x512xbf16, #tpu.memory_space<vmem>>, vector<768x512xbf16>
    %cst = arith.constant dense<0.000000e+00> : vector<32x512xf32>
    %3 = tpu.matmul %1, %2, %cst {dimension_numbers = #tpu.dot_dimension_numbers<[1], [0], [0], [1], [0, 0, 1, 1], [], []>} : vector<32x768xbf16>, vector<768x512xbf16>, vector<32x512xf32> -> vector<32x512xf32>
    %c0_3 = arith.constant 0 : index
    %c0_4 = arith.constant 0 : index
    %4 = vector.load %arg3[%c0_3, %c0_4] : memref<1x512xf32, #tpu.memory_space<vmem>>, vector<1x512xf32>
    %5 = vector.broadcast %4 : vector<1x512xf32> to vector<32x512xf32>
    %6 = arith.addf %3, %5 : vector<32x512xf32>
    %cst_5 = arith.constant 0.000000e+00 : f32
    %7 = vector.broadcast %cst_5 : f32 to vector<32x512xf32>
    %8 = arith.maximumf %6, %7 : vector<32x512xf32>
    %9 = arith.truncf %8 : vector<32x512xf32> to vector<32x512xbf16>
    %c0_6 = arith.constant 0 : index
    %c0_7 = arith.constant 0 : index
    %10 = vector.load %arg4[%c0_6, %c0_7] : memref<512x256xbf16, #tpu.memory_space<vmem>>, vector<512x256xbf16>
    %cst_8 = arith.constant dense<0.000000e+00> : vector<32x256xf32>
    %11 = tpu.matmul %9, %10, %cst_8 {dimension_numbers = #tpu.dot_dimension_numbers<[1], [0], [0], [1], [0, 0, 1, 1], [], []>} : vector<32x512xbf16>, vector<512x256xbf16>, vector<32x256xf32> -> vector<32x256xf32>
    %c0_9 = arith.constant 0 : index
    %c0_10 = arith.constant 0 : index
    %12 = vector.load %arg5[%c0_9, %c0_10] : memref<1x256xf32, #tpu.memory_space<vmem>>, vector<1x256xf32>
    %13 = vector.broadcast %12 : vector<1x256xf32> to vector<32x256xf32>
    %14 = arith.addf %11, %13 : vector<32x256xf32>
    %cst_11 = arith.constant 0.000000e+00 : f32
    %15 = vector.broadcast %cst_11 : f32 to vector<32x256xf32>
    %16 = arith.maximumf %14, %15 : vector<32x256xf32>
    %cst_12 = arith.constant dense<0.000000e+00> : vector<32xf32>
    %17 = vector.multi_reduction <add>, %16, %cst_12 [1] : vector<32x256xf32> to vector<32xf32>
    %18 = vector.shape_cast %17 : vector<32xf32> to vector<32x1xf32>
    %cst_13 = arith.constant 2.560000e+02 : f32
    %19 = vector.broadcast %cst_13 : f32 to vector<32x1xf32>
    %20 = arith.divf %18, %19 : vector<32x1xf32>
    %21 = vector.broadcast %20 : vector<32x1xf32> to vector<32x256xf32>
    %22 = arith.subf %16, %21 : vector<32x256xf32>
    %23 = arith.mulf %22, %22 : vector<32x256xf32>
    %cst_14 = arith.constant dense<0.000000e+00> : vector<32xf32>
    %24 = vector.multi_reduction <add>, %23, %cst_14 [1] : vector<32x256xf32> to vector<32xf32>
    %25 = vector.shape_cast %24 : vector<32xf32> to vector<32x1xf32>
    %cst_15 = arith.constant 2.560000e+02 : f32
    %26 = vector.broadcast %cst_15 : f32 to vector<32x1xf32>
    %27 = arith.divf %25, %26 : vector<32x1xf32>
    %cst_16 = arith.constant 9.99999974E-6 : f32
    %28 = vector.broadcast %cst_16 : f32 to vector<32x1xf32>
    %29 = arith.addf %27, %28 : vector<32x1xf32>
    %30 = math.rsqrt %29 : vector<32x1xf32>
    %31 = vector.broadcast %30 : vector<32x1xf32> to vector<32x256xf32>
    %32 = arith.mulf %22, %31 : vector<32x256xf32>
    %c0_17 = arith.constant 0 : index
    %c0_18 = arith.constant 0 : index
    %33 = vector.load %arg6[%c0_17, %c0_18] : memref<1x256xf32, #tpu.memory_space<vmem>>, vector<1x256xf32>
    %34 = vector.broadcast %33 : vector<1x256xf32> to vector<32x256xf32>
    %35 = arith.mulf %32, %34 : vector<32x256xf32>
    %c0_19 = arith.constant 0 : index
    %c0_20 = arith.constant 0 : index
    %36 = vector.load %arg7[%c0_19, %c0_20] : memref<1x256xf32, #tpu.memory_space<vmem>>, vector<1x256xf32>
    %37 = vector.broadcast %36 : vector<1x256xf32> to vector<32x256xf32>
    %38 = arith.addf %35, %37 : vector<32x256xf32>
    %39 = arith.truncf %38 : vector<32x256xf32> to vector<32x256xbf16>
    %c0_21 = arith.constant 0 : index
    %c0_22 = arith.constant 0 : index
    %40 = vector.load %arg8[%c0_21, %c0_22] : memref<256x128xbf16, #tpu.memory_space<vmem>>, vector<256x128xbf16>
    %cst_23 = arith.constant dense<0.000000e+00> : vector<32x128xf32>
    %41 = tpu.matmul %39, %40, %cst_23 {dimension_numbers = #tpu.dot_dimension_numbers<[1], [0], [0], [1], [0, 0, 1, 1], [], []>} : vector<32x256xbf16>, vector<256x128xbf16>, vector<32x128xf32> -> vector<32x128xf32>
    %c0_24 = arith.constant 0 : index
    %c0_25 = arith.constant 0 : index
    %42 = vector.load %arg9[%c0_24, %c0_25] : memref<1x128xf32, #tpu.memory_space<vmem>>, vector<1x128xf32>
    %43 = vector.broadcast %42 : vector<1x128xf32> to vector<32x128xf32>
    %44 = arith.addf %41, %43 : vector<32x128xf32>
    %cst_26 = arith.constant 0.000000e+00 : f32
    %45 = vector.broadcast %cst_26 : f32 to vector<32x128xf32>
    %46 = arith.maximumf %44, %45 : vector<32x128xf32>
    %47 = arith.truncf %46 : vector<32x128xf32> to vector<32x128xbf16>
    %c0_27 = arith.constant 0 : index
    %c0_28 = arith.constant 0 : index
    %48 = vector.load %arg10[%c0_27, %c0_28] : memref<128x64xbf16, #tpu.memory_space<vmem>>, vector<128x64xbf16>
    %cst_29 = arith.constant dense<0.000000e+00> : vector<32x64xf32>
    %49 = tpu.matmul %47, %48, %cst_29 {dimension_numbers = #tpu.dot_dimension_numbers<[1], [0], [0], [1], [0, 0, 1, 1], [], []>} : vector<32x128xbf16>, vector<128x64xbf16>, vector<32x64xf32> -> vector<32x64xf32>
    %c0_30 = arith.constant 0 : index
    %c0_31 = arith.constant 0 : index
    %50 = vector.load %arg11[%c0_30, %c0_31] : memref<1x64xf32, #tpu.memory_space<vmem>>, vector<1x64xf32>
    %51 = vector.broadcast %50 : vector<1x64xf32> to vector<32x64xf32>
    %52 = arith.addf %49, %51 : vector<32x64xf32>
    %cst_32 = arith.constant 0.000000e+00 : f32
    %53 = vector.broadcast %cst_32 : f32 to vector<32x64xf32>
    %54 = arith.maximumf %52, %53 : vector<32x64xf32>
    %55 = arith.truncf %54 : vector<32x64xf32> to vector<32x64xbf16>
    %c0_33 = arith.constant 0 : index
    %c0_34 = arith.constant 0 : index
    %56 = vector.load %arg12[%c0_33, %c0_34] : memref<64x2xbf16, #tpu.memory_space<vmem>>, vector<64x2xbf16>
    %cst_35 = arith.constant dense<0.000000e+00> : vector<32x2xf32>
    %57 = tpu.matmul %55, %56, %cst_35 {dimension_numbers = #tpu.dot_dimension_numbers<[1], [0], [0], [1], [0, 0, 1, 1], [], []>} : vector<32x64xbf16>, vector<64x2xbf16>, vector<32x2xf32> -> vector<32x2xf32>
    %c0_36 = arith.constant 0 : index
    %c0_37 = arith.constant 0 : index
    %58 = vector.load %arg13[%c0_36, %c0_37] : memref<1x2xf32, #tpu.memory_space<vmem>>, vector<1x2xf32>
    %59 = vector.broadcast %58 : vector<1x2xf32> to vector<32x2xf32>
    %60 = arith.addf %57, %59 : vector<32x2xf32>
    %61 = vector.extract_strided_slice %60 {offsets = [0, 1], sizes = [32, 1], strides = [1, 1]} : vector<32x2xf32> to vector<32x1xf32>
    %62 = vector.extract_strided_slice %60 {offsets = [0, 0], sizes = [32, 1], strides = [1, 1]} : vector<32x2xf32> to vector<32x1xf32>
    %63 = arith.subf %61, %62 : vector<32x1xf32>
    %cst_38 = arith.constant 0.000000e+00 : f32
    %64 = vector.broadcast %cst_38 : f32 to vector<32x1xf32>
    %65 = arith.subf %64, %63 : vector<32x1xf32>
    %66 = math.exp %65 : vector<32x1xf32>
    %cst_39 = arith.constant 1.000000e+00 : f32
    %67 = vector.broadcast %cst_39 : f32 to vector<32x1xf32>
    %68 = arith.addf %67, %66 : vector<32x1xf32>
    %cst_40 = arith.constant 1.000000e+00 : f32
    %69 = vector.broadcast %cst_40 : f32 to vector<32x1xf32>
    %70 = arith.divf %69, %68 : vector<32x1xf32>
    %cst_41 = arith.constant 1.000000e+00 : f32
    %71 = vector.broadcast %cst_41 : f32 to vector<32x1xf32>
    %72 = arith.subf %71, %70 : vector<32x1xf32>
    %73 = tpu.iota {dimensions = array<i32: 1>} : vector<32x128xi32>
    %c0_i32 = arith.constant 0 : i32
    %74 = vector.broadcast %c0_i32 : i32 to vector<32x128xi32>
    %75 = arith.cmpi eq, %73, %74 : vector<32x128xi32>
    %c1_i32 = arith.constant 1 : i32
    %76 = vector.broadcast %c1_i32 : i32 to vector<32x128xi32>
    %77 = arith.cmpi eq, %73, %76 : vector<32x128xi32>
    %cst_42 = arith.constant 0.000000e+00 : f32
    %78 = vector.shape_cast %70 : vector<32x1xf32> to vector<32x1xf32>
    %79 = vector.broadcast %78 : vector<32x1xf32> to vector<32x128xf32>
    %80 = vector.broadcast %cst_42 : f32 to vector<32x128xf32>
    %81 = arith.select %77, %79, %80 : vector<32x128xi1>, vector<32x128xf32>
    %82 = vector.shape_cast %72 : vector<32x1xf32> to vector<32x1xf32>
    %83 = vector.broadcast %82 : vector<32x1xf32> to vector<32x128xf32>
    %84 = arith.select %75, %83, %81 : vector<32x128xi1>, vector<32x128xf32>
    %c0_43 = arith.constant 0 : index
    %c0_44 = arith.constant 0 : index
    %85 = vector.load %arg14[%c0_43, %c0_44] : memref<32x128xf32, #tpu.memory_space<vmem>>, vector<32x128xf32>
    tpu.vector_store %arg14[%c0_43, %c0_44], %84 {strides = array<i32>} : memref<32x128xf32, #tpu.memory_space<vmem>>, vector<32x128xf32>,
    return
  }
  func.func @transform_0(%arg0: i32) -> (i32, i32) {
    %c0_i32 = arith.constant 0 : i32
    %c0_i32_0 = arith.constant 0 : i32
    return %arg0, %c0_i32 : i32, i32
  }
  func.func @transform_1(%arg0: i32) -> (i32, i32) {
    %c0_i32 = arith.constant 0 : i32
    %c0_i32_0 = arith.constant 0 : i32
    %c0_i32_1 = arith.constant 0 : i32
    return %c0_i32, %c0_i32_0 : i32, i32
  }
  func.func @transform_2(%arg0: i32) -> (i32, i32) {
    %c0_i32 = arith.constant 0 : i32
    %c0_i32_0 = arith.constant 0 : i32
    %c0_i32_1 = arith.constant 0 : i32
    return %c0_i32, %c0_i32_0 : i32, i32
  }
  func.func @transform_3(%arg0: i32) -> (i32, i32) {
    %c0_i32 = arith.constant 0 : i32
    %c0_i32_0 = arith.constant 0 : i32
    %c0_i32_1 = arith.constant 0 : i32
    return %c0_i32, %c0_i32_0 : i32, i32
  }
  func.func @transform_4(%arg0: i32) -> (i32, i32) {
    %c0_i32 = arith.constant 0 : i32
    %c0_i32_0 = arith.constant 0 : i32
    %c0_i32_1 = arith.constant 0 : i32
    return %c0_i32, %c0_i32_0 : i32, i32
  }
  func.func @transform_5(%arg0: i32) -> (i32, i32) {
    %c0_i32 = arith.constant 0 : i32
    %c0_i32_0 = arith.constant 0 : i32
    %c0_i32_1 = arith.constant 0 : i32
    return %c0_i32, %c0_i32_0 : i32, i32
  }
  func.func @transform_6(%arg0: i32) -> (i32, i32) {
    %c0_i32 = arith.constant 0 : i32
    %c0_i32_0 = arith.constant 0 : i32
    %c0_i32_1 = arith.constant 0 : i32
    return %c0_i32, %c0_i32_0 : i32, i32
  }
  func.func @transform_7(%arg0: i32) -> (i32, i32) {
    %c0_i32 = arith.constant 0 : i32
    %c0_i32_0 = arith.constant 0 : i32
    %c0_i32_1 = arith.constant 0 : i32
    return %c0_i32, %c0_i32_0 : i32, i32
  }
  func.func @transform_8(%arg0: i32) -> (i32, i32) {
    %c0_i32 = arith.constant 0 : i32
    %c0_i32_0 = arith.constant 0 : i32
    %c0_i32_1 = arith.constant 0 : i32
    return %c0_i32, %c0_i32_0 : i32, i32
  }
  func.func @transform_9(%arg0: i32) -> (i32, i32) {
    %c0_i32 = arith.constant 0 : i32
    %c0_i32_0 = arith.constant 0 : i32
    %c0_i32_1 = arith.constant 0 : i32
    return %c0_i32, %c0_i32_0 : i32, i32
  }
  func.func @transform_10(%arg0: i32) -> (i32, i32) {
    %c0_i32 = arith.constant 0 : i32
    %c0_i32_0 = arith.constant 0 : i32
    %c0_i32_1 = arith.constant 0 : i32
    return %c0_i32, %c0_i32_0 : i32, i32
  }
  func.func @transform_11(%arg0: i32) -> (i32, i32) {
    %c0_i32 = arith.constant 0 : i32
    %c0_i32_0 = arith.constant 0 : i32
    %c0_i32_1 = arith.constant 0 : i32
    return %c0_i32, %c0_i32_0 : i32, i32
  }
  func.func @transform_12(%arg0: i32) -> (i32, i32) {
    %c0_i32 = arith.constant 0 : i32
    %c0_i32_0 = arith.constant 0 : i32
    %c0_i32_1 = arith.constant 0 : i32
    return %c0_i32, %c0_i32_0 : i32, i32
  }
  func.func @transform_13(%arg0: i32) -> (i32, i32) {
    %c0_i32 = arith.constant 0 : i32
    %c0_i32_0 = arith.constant 0 : i32
    return %arg0, %c0_i32 : i32, i32
  }
}

</mosaic_0001>

<llo_original>
// kernel: _forward_jit.1
$region0: #{_forward_jit.1}
  #allocation0 [shape = 'u32[]', space=smem, size = 0x4, offset = 0x4, fixed_abs, tag = 'smem constant byte address 0x4 - core index']
  #allocation1 [shape = 'u32[72,128]{1,0:T(1,128)}', space=vmem, size = 0x9000, scoped, tag = 'internal scratch']
  %s0 = inlined_call_operand.hbm [shape: f32[64,768], index: 0, kind: input, shape index: {}]
  %s1 = inlined_call_operand.hbm [shape: bf16[768,512], index: 1, kind: input, shape index: {}]
  %s2 = inlined_call_operand.vmem [shape: f32[1,512], index: 2, kind: input, shape index: {}]
  %s3 = inlined_call_operand.hbm [shape: bf16[512,256], index: 3, kind: input, shape index: {}]
  %s4 = inlined_call_operand.vmem [shape: f32[1,256], index: 4, kind: input, shape index: {}]
  %s5 = inlined_call_operand.vmem [shape: f32[1,256], index: 5, kind: input, shape index: {}]
  %s6 = inlined_call_operand.vmem [shape: f32[1,256], index: 6, kind: input, shape index: {}]
  %s7 = inlined_call_operand.hbm [shape: bf16[256,128], index: 7, kind: input, shape index: {}]
  %s8 = inlined_call_operand.vmem [shape: f32[1,128], index: 8, kind: input, shape index: {}]
  %s9 = inlined_call_operand.vmem [shape: bf16[128,64], index: 9, kind: input, shape index: {}]
  %s10 = inlined_call_operand.vmem [shape: f32[1,64], index: 10, kind: input, shape index: {}]
  %s11 = inlined_call_operand.vmem [shape: bf16[64,2], index: 11, kind: input, shape index: {}]
  %s12 = inlined_call_operand.vmem [shape: f32[1,2], index: 12, kind: input, shape index: {}]
  %s13 = inlined_call_operand.vmem [shape: f32[64,128], index: 13, kind: output, shape index: {}]
  %s14 = sld [smem:[#allocation0]]
  $region101: #{_forward_jit.1} parent=0
    _
  %s16 = ssub.s32 1, %s14
  %s17 = scalar_select 0, %s16, %s14
  $region1: #{_forward_jit.1} parent=0
    #allocation2 [shape = 'u8[196608]{0}', space=vmem, size = 0x30000, scoped, tag = 'input window, operand 0']
    #allocation3 [shape = 's32[2]{0}', space=sflag, size = 0x8, scoped, tag = 'scoped memory for _forward_jit.1']
    #allocation4 [shape = 'u8[786432]{0}', space=vmem, size = 0xc0000, scoped, tag = 'input window, operand 1, single buffered']
    #allocation5 [shape = 's32[1]{0}', space=sflag, size = 0x4, scoped, tag = 'scoped memory for _forward_jit.1']
    #allocation6 [shape = 'u8[262144]{0}', space=vmem, size = 0x40000, scoped, tag = 'input window, operand 3, single buffered']
    #allocation7 [shape = 'u8[65536]{0}', space=vmem, size = 0x10000, scoped, tag = 'input window, operand 7, single buffered']
    #allocation8 [shape = 's32[1]{0}', space=sflag, size = 0x4, scoped, tag = 'scoped memory for _forward_jit.1']
    %18 = vsyncpa [#allocation3], 0
    %s19 = scalar_lea.sflag [#allocation3], 1
    %20 = vsyncpa %s19, 0
    %21 = vsyncpa [#allocation5], 0
    %22 = vsyncpa [#allocation8], 0
    loop: start=0, step=1, limit=4
    $region2: #{_forward_jit.1} parent=1 // loop_pre_header
      _
    $region3: #{_forward_jit.1} parent=1 // loop_header
      %s24 = sphi 0, %s28
      %p25 = scmp.ge.s32.totalorder %s24, 4
      %s34 = sphi 0, %s36
      %s37 = sphi 0, %s34
      %s38 = sphi 0, %s37
      %s54 = sphi 0, %s38
      %s58 = sphi 0, %s58
      %s60 = sphi 0, %s58
      %s61 = sphi 0, %s60
      %s75 = sphi 0, %s61
      %s79 = sphi 0, %s79
      %s81 = sphi 0, %s79
      %s82 = sphi 0, %s81
      %s96 = sphi 0, %s82
      %s100 = sphi 0, %s100
      %s102 = sphi 0, %s100
      %s103 = sphi 0, %s102
      %s117 = sphi 0, %s103
      %s121 = sphi 0, %s121
      %s123 = sphi 0, %s121
      %s124 = sphi 0, %s123
      %s138 = sphi 0, %s124
      %s142 = sphi 0, %s142
      %s144 = sphi 0, %s142
      %s145 = sphi 0, %s144
      %s159 = sphi 0, %s145
      %s163 = sphi 0, %s163
      %s165 = sphi 0, %s163
      %s166 = sphi 0, %s165
      %s180 = sphi 0, %s166
      %s184 = sphi 0, %s184
      %s186 = sphi 0, %s184
      %s187 = sphi 0, %s186
      %s201 = sphi 0, %s187
      %s205 = sphi 0, %s205
      %s207 = sphi 0, %s205
      %s208 = sphi 0, %s207
      %s222 = sphi 0, %s208
      %s226 = sphi 0, %s226
      %s228 = sphi 0, %s226
      %s229 = sphi 0, %s228
      %s243 = sphi 0, %s229
      %s247 = sphi 0, %s247
      %s249 = sphi 0, %s247
      %s250 = sphi 0, %s249
      %s264 = sphi 0, %s250
      %s268 = sphi 0, %s268
      %s270 = sphi 0, %s268
      %s271 = sphi 0, %s270
      %s285 = sphi 0, %s271
      %s289 = sphi 0, %s289
      %s291 = sphi 0, %s289
      %s292 = sphi 0, %s291
      %s306 = sphi 0, %s292
      %s312 = sphi 0, %s314
      %s315 = sphi 0, %s312
      %s316 = sphi 0, %s315
      %s332 = sphi 0, %s316
    $region4: #{_forward_jit.1} parent=1 // loop_header_branch
      %27 = sbr.rel (%p25) target = $region8
    $region5: #{_forward_jit.1} parent=1 // loop_body
      %s29 = ssub.s32 %s24, 1
      %s30 = ssub.s32 %s24, 2
      %s31 = sadd.s32 %s24, 1
      %s32 = ssub.s32 %s24, %s31
      %p33 = scmp.eq.s32.totalorder %s32, 0
      %s35 = sadd.s32 %s34, 1
      %s36 = scalar_select %p33, %s34, %s35
      %p39 = pneg %p33
      %p40 = scmp.eq.s32.totalorder %s24, 1
      %p41 = por %p39, %p40
      %p42 = scmp.ne.s32.totalorder %s34, %s37
      %p43 = scmp.eq.s32.totalorder %s24, 0
      %p44 = por %p42, %p43
      %p45 = scmp.ne.s32.totalorder %s34, %s37
      %p46 = scmp.eq.s32.totalorder %s29, 1
      %p47 = por %p45, %p46
      %p48 = scmp.ne.s32.totalorder %s37, %s38
      %p49 = scmp.eq.s32.totalorder %s29, 0
      %p50 = por %p48, %p49
      %p51 = scmp.ne.s32.totalorder %s37, %s38
      %p52 = scmp.eq.s32.totalorder %s30, 1
      %p53 = por %p51, %p52
      %p55 = scmp.ne.s32.totalorder %s38, %s54
      %p56 = scmp.eq.s32.totalorder %s30, 0
      %p57 = por %p55, %p56
      %s59 = sadd.s32 %s58, 1
      %p62 = scmp.eq.s32.totalorder %s24, 1
      %p63 = scmp.ne.s32.totalorder %s58, %s60
      %p64 = scmp.eq.s32.totalorder %s24, 0
      %p65 = por %p63, %p64
      %p66 = scmp.ne.s32.totalorder %s58, %s60
      %p67 = scmp.eq.s32.totalorder %s29, 1
      %p68 = por %p66, %p67
      %p69 = scmp.ne.s32.totalorder %s60, %s61
      %p70 = scmp.eq.s32.totalorder %s29, 0
      %p71 = por %p69, %p70
      %p72 = scmp.ne.s32.totalorder %s60, %s61
      %p73 = scmp.eq.s32.totalorder %s30, 1
      %p74 = por %p72, %p73
      %p76 = scmp.ne.s32.totalorder %s61, %s75
      %p77 = scmp.eq.s32.totalorder %s30, 0
      %p78 = por %p76, %p77
      %s80 = sadd.s32 %s79, 1
      %p83 = scmp.eq.s32.totalorder %s24, 1
      %p84 = scmp.ne.s32.totalorder %s79, %s81
      %p85 = scmp.eq.s32.totalorder %s24, 0
      %p86 = por %p84, %p85
      %p87 = scmp.ne.s32.totalorder %s79, %s81
      %p88 = scmp.eq.s32.totalorder %s29, 1
      %p89 = por %p87, %p88
      %p90 = scmp.ne.s32.totalorder %s81, %s82
      %p91 = scmp.eq.s32.totalorder %s29, 0
      %p92 = por %p90, %p91
      %p93 = scmp.ne.s32.totalorder %s81, %s82
      %p94 = scmp.eq.s32.totalorder %s30, 1
      %p95 = por %p93, %p94
      %p97 = scmp.ne.s32.totalorder %s82, %s96
      %p98 = scmp.eq.s32.totalorder %s30, 0
      %p99 = por %p97, %p98
      %s101 = sadd.s32 %s100, 1
      %p104 = scmp.eq.s32.totalorder %s24, 1
      %p105 = scmp.ne.s32.totalorder %s100, %s102
      %p106 = scmp.eq.s32.totalorder %s24, 0
      %p107 = por %p105, %p106
      %p108 = scmp.ne.s32.totalorder %s100, %s102
      %p109 = scmp.eq.s32.totalorder %s29, 1
      %p110 = por %p108, %p109
      %p111 = scmp.ne.s32.totalorder %s102, %s103
      %p112 = scmp.eq.s32.totalorder %s29, 0
      %p113 = por %p111, %p112
      %p114 = scmp.ne.s32.totalorder %s102, %s103
      %p115 = scmp.eq.s32.totalorder %s30, 1
      %p116 = por %p114, %p115
      %p118 = scmp.ne.s32.totalorder %s103, %s117
      %p119 = scmp.eq.s32.totalorder %s30, 0
      %p120 = por %p118, %p119
      %s122 = sadd.s32 %s121, 1
      %p125 = scmp.eq.s32.totalorder %s24, 1
      %p126 = scmp.ne.s32.totalorder %s121, %s123
      %p127 = scmp.eq.s32.totalorder %s24, 0
      %p128 = por %p126, %p127
      %p129 = scmp.ne.s32.totalorder %s121, %s123
      %p130 = scmp.eq.s32.totalorder %s29, 1
      %p131 = por %p129, %p130
      %p132 = scmp.ne.s32.totalorder %s123, %s124
      %p133 = scmp.eq.s32.totalorder %s29, 0
      %p134 = por %p132, %p133
      %p135 = scmp.ne.s32.totalorder %s123, %s124
      %p136 = scmp.eq.s32.totalorder %s30, 1
      %p137 = por %p135, %p136
      %p139 = scmp.ne.s32.totalorder %s124, %s138
      %p140 = scmp.eq.s32.totalorder %s30, 0
      %p141 = por %p139, %p140
      %s143 = sadd.s32 %s142, 1
      %p146 = scmp.eq.s32.totalorder %s24, 1
      %p147 = scmp.ne.s32.totalorder %s142, %s144
      %p148 = scmp.eq.s32.totalorder %s24, 0
      %p149 = por %p147, %p148
      %p150 = scmp.ne.s32.totalorder %s142, %s144
      %p151 = scmp.eq.s32.totalorder %s29, 1
      %p152 = por %p150, %p151
      %p153 = scmp.ne.s32.totalorder %s144, %s145
      %p154 = scmp.eq.s32.totalorder %s29, 0
      %p155 = por %p153, %p154
      %p156 = scmp.ne.s32.totalorder %s144, %s145
      %p157 = scmp.eq.s32.totalorder %s30, 1
      %p158 = por %p156, %p157
      %p160 = scmp.ne.s32.totalorder %s145, %s159
      %p161 = scmp.eq.s32.totalorder %s30, 0
      %p162 = por %p160, %p161
      %s164 = sadd.s32 %s163, 1
      %p167 = scmp.eq.s32.totalorder %s24, 1
      %p168 = scmp.ne.s32.totalorder %s163, %s165
      %p169 = scmp.eq.s32.totalorder %s24, 0
      %p170 = por %p168, %p169
      %p171 = scmp.ne.s32.totalorder %s163, %s165
      %p172 = scmp.eq.s32.totalorder %s29, 1
      %p173 = por %p171, %p172
      %p174 = scmp.ne.s32.totalorder %s165, %s166
      %p175 = scmp.eq.s32.totalorder %s29, 0
      %p176 = por %p174, %p175
      %p177 = scmp.ne.s32.totalorder %s165, %s166
      %p178 = scmp.eq.s32.totalorder %s30, 1
      %p179 = por %p177, %p178
      %p181 = scmp.ne.s32.totalorder %s166, %s180
      %p182 = scmp.eq.s32.totalorder %s30, 0
      %p183 = por %p181, %p182
      %s185 = sadd.s32 %s184, 1
      %p188 = scmp.eq.s32.totalorder %s24, 1
      %p189 = scmp.ne.s32.totalorder %s184, %s186
      %p190 = scmp.eq.s32.totalorder %s24, 0
      %p191 = por %p189, %p190
      %p192 = scmp.ne.s32.totalorder %s184, %s186
      %p193 = scmp.eq.s32.totalorder %s29, 1
      %p194 = por %p192, %p193
      %p195 = scmp.ne.s32.totalorder %s186, %s187
      %p196 = scmp.eq.s32.totalorder %s29, 0
      %p197 = por %p195, %p196
      %p198 = scmp.ne.s32.totalorder %s186, %s187
      %p199 = scmp.eq.s32.totalorder %s30, 1
      %p200 = por %p198, %p199
      %p202 = scmp.ne.s32.totalorder %s187, %s201
      %p203 = scmp.eq.s32.totalorder %s30, 0
      %p204 = por %p202, %p203
      %s206 = sadd.s32 %s205, 1
      %p209 = scmp.eq.s32.totalorder %s24, 1
      %p210 = scmp.ne.s32.totalorder %s205, %s207
      %p211 = scmp.eq.s32.totalorder %s24, 0
      %p212 = por %p210, %p211
      %p213 = scmp.ne.s32.totalorder %s205, %s207
      %p214 = scmp.eq.s32.totalorder %s29, 1
      %p215 = por %p213, %p214
      %p216 = scmp.ne.s32.totalorder %s207, %s208
      %p217 = scmp.eq.s32.totalorder %s29, 0
      %p218 = por %p216, %p217
      %p219 = scmp.ne.s32.totalorder %s207, %s208
      %p220 = scmp.eq.s32.totalorder %s30, 1
      %p221 = por %p219, %p220
      %p223 = scmp.ne.s32.totalorder %s208, %s222
      %p224 = scmp.eq.s32.totalorder %s30, 0
      %p225 = por %p223, %p224
      %s227 = sadd.s32 %s226, 1
      %p230 = scmp.eq.s32.totalorder %s24, 1
      %p231 = scmp.ne.s32.totalorder %s226, %s228
      %p232 = scmp.eq.s32.totalorder %s24, 0
      %p233 = por %p231, %p232
      %p234 = scmp.ne.s32.totalorder %s226, %s228
      %p235 = scmp.eq.s32.totalorder %s29, 1
      %p236 = por %p234, %p235
      %p237 = scmp.ne.s32.totalorder %s228, %s229
      %p238 = scmp.eq.s32.totalorder %s29, 0
      %p239 = por %p237, %p238
      %p240 = scmp.ne.s32.totalorder %s228, %s229
      %p241 = scmp.eq.s32.totalorder %s30, 1
      %p242 = por %p240, %p241
      %p244 = scmp.ne.s32.totalorder %s229, %s243
      %p245 = scmp.eq.s32.totalorder %s30, 0
      %p246 = por %p244, %p245
      %s248 = sadd.s32 %s247, 1
      %p251 = scmp.eq.s32.totalorder %s24, 1
      %p252 = scmp.ne.s32.totalorder %s247, %s249
      %p253 = scmp.eq.s32.totalorder %s24, 0
      %p254 = por %p252, %p253
      %p255 = scmp.ne.s32.totalorder %s247, %s249
      %p256 = scmp.eq.s32.totalorder %s29, 1
      %p257 = por %p255, %p256
      %p258 = scmp.ne.s32.totalorder %s249, %s250
      %p259 = scmp.eq.s32.totalorder %s29, 0
      %p260 = por %p258, %p259
      %p261 = scmp.ne.s32.totalorder %s249, %s250
      %p262 = scmp.eq.s32.totalorder %s30, 1
      %p263 = por %p261, %p262
      %p265 = scmp.ne.s32.totalorder %s250, %s264
      %p266 = scmp.eq.s32.totalorder %s30, 0
      %p267 = por %p265, %p266
      %s269 = sadd.s32 %s268, 1
      %p272 = scmp.eq.s32.totalorder %s24, 1
      %p273 = scmp.ne.s32.totalorder %s268, %s270
      %p274 = scmp.eq.s32.totalorder %s24, 0
      %p275 = por %p273, %p274
      %p276 = scmp.ne.s32.totalorder %s268, %s270
      %p277 = scmp.eq.s32.totalorder %s29, 1
      %p278 = por %p276, %p277
      %p279 = scmp.ne.s32.totalorder %s270, %s271
      %p280 = scmp.eq.s32.totalorder %s29, 0
      %p281 = por %p279, %p280
      %p282 = scmp.ne.s32.totalorder %s270, %s271
      %p283 = scmp.eq.s32.totalorder %s30, 1
      %p284 = por %p282, %p283
      %p286 = scmp.ne.s32.totalorder %s271, %s285
      %p287 = scmp.eq.s32.totalorder %s30, 0
      %p288 = por %p286, %p287
      %s290 = sadd.s32 %s289, 1
      %p293 = scmp.eq.s32.totalorder %s24, 1
      %p294 = scmp.ne.s32.totalorder %s289, %s291
      %p295 = scmp.eq.s32.totalorder %s24, 0
      %p296 = por %p294, %p295
      %p297 = scmp.ne.s32.totalorder %s289, %s291
      %p298 = scmp.eq.s32.totalorder %s29, 1
      %p299 = por %p297, %p298
      %p300 = scmp.ne.s32.totalorder %s291, %s292
      %p301 = scmp.eq.s32.totalorder %s29, 0
      %p302 = por %p300, %p301
      %p303 = scmp.ne.s32.totalorder %s291, %s292
      %p304 = scmp.eq.s32.totalorder %s30, 1
      %p305 = por %p303, %p304
      %p307 = scmp.ne.s32.totalorder %s292, %s306
      %p308 = scmp.eq.s32.totalorder %s30, 0
      %p309 = por %p307, %p308
      %s310 = ssub.s32 %s24, %s31
      %p311 = scmp.eq.s32.totalorder %s310, 0
      %s313 = sadd.s32 %s312, 1
      %s314 = scalar_select %p311, %s312, %s313
      %p317 = pneg %p311
      %p318 = scmp.eq.s32.totalorder %s24, 1
      %p319 = por %p317, %p318
      %p320 = scmp.ne.s32.totalorder %s312, %s315
      %p321 = scmp.eq.s32.totalorder %s24, 0
      %p322 = por %p320, %p321
      %p323 = scmp.ne.s32.totalorder %s312, %s315
      %p324 = scmp.eq.s32.totalorder %s29, 1
      %p325 = por %p323, %p324
      %p326 = scmp.ne.s32.totalorder %s315, %s316
      %p327 = scmp.eq.s32.totalorder %s29, 0
      %p328 = por %p326, %p327
      %p329 = scmp.ne.s32.totalorder %s315, %s316
      %p330 = scmp.eq.s32.totalorder %s30, 1
      %p331 = por %p329, %p330
      %p333 = scmp.ne.s32.totalorder %s316, %s332
      %p334 = scmp.eq.s32.totalorder %s30, 0
      %p335 = por %p333, %p334
      %p336 = scmp.le.s32.totalorder 1, %s24
      %p337 = scmp.lt.s32.totalorder %s24, 3
      %p338 = pnand %p336, %p337
      %p339 = pneg %p338
      // Predicated region
      $region9: #{_forward_jit.1} parent=5 // pred_check
        _
      $region10: #{_forward_jit.1} parent=5 // pred_check_branch
        %341 = sbr.rel (%p338) target = $region12
      $region11: #{_forward_jit.1} parent=5 // pred_region
        %s342 = ssub.s32 %s24, 1
        // Predicated region
        $region13: #{_forward_jit.1} parent=11 // pred_check
          %p343 = pneg %p71
        $region14: #{_forward_jit.1} parent=11 // pred_check_branch
          %345 = sbr.rel (%p343) target = $region16
        $region15: #{_forward_jit.1} parent=11 // pred_region
          %347 = vsyncadd [#allocation5], 0
          %s348 = sshll.u32 %s1, 4
          %s349 = int_to_ptr.hbm [resolvable:$true] %s348
          %s350 = sshll.u32 [#allocation4], 4
          %s351 = int_to_ptr.vmem [resolvable:$true] %s350
          %356 = dma.hbm_to_vmem [thread:$0]  %s349, 24576, %s351, [#allocation5], 256, 256, 16
        $region16: #{_forward_jit.1} parent=11 // pred_fallthru
          _
        // Predicated region
        $region17: #{_forward_jit.1} parent=11 // pred_check
          %p357 = pneg %p92
        $region18: #{_forward_jit.1} parent=11 // pred_check_branch
          %359 = sbr.rel (%p357) target = $region20
        $region19: #{_forward_jit.1} parent=11 // pred_region
          _
        $region20: #{_forward_jit.1} parent=11 // pred_fallthru
          _
        // Predicated region
        $region21: #{_forward_jit.1} parent=11 // pred_check
          %p360 = pneg %p113
        $region22: #{_forward_jit.1} parent=11 // pred_check_branch
          %362 = sbr.rel (%p360) target = $region24
        $region23: #{_forward_jit.1} parent=11 // pred_region
          %364 = vsyncadd [#allocation5], 0
          %s365 = sshll.u32 %s3, 4
          %s366 = int_to_ptr.hbm [resolvable:$true] %s365
          %s367 = sshll.u32 [#allocation6], 4
          %s368 = int_to_ptr.vmem [resolvable:$true] %s367
          %373 = dma.hbm_to_vmem [thread:$0]  %s366, 8192, %s368, [#allocation5], 128, 128, 8
        $region24: #{_forward_jit.1} parent=11 // pred_fallthru
          _
        // Predicated region
        $region25: #{_forward_jit.1} parent=11 // pred_check
          %p374 = pneg %p134
        $region26: #{_forward_jit.1} parent=11 // pred_check_branch
          %376 = sbr.rel (%p374) target = $region28
        $region27: #{_forward_jit.1} parent=11 // pred_region
          _
        $region28: #{_forward_jit.1} parent=11 // pred_fallthru
          _
        // Predicated region
        $region29: #{_forward_jit.1} parent=11 // pred_check
          %p377 = pneg %p155
        $region30: #{_forward_jit.1} parent=11 // pred_check_branch
          %379 = sbr.rel (%p377) target = $region32
        $region31: #{_forward_jit.1} parent=11 // pred_region
          _
        $region32: #{_forward_jit.1} parent=11 // pred_fallthru
          _
        // Predicated region
        $region33: #{_forward_jit.1} parent=11 // pred_check
          %p380 = pneg %p176
        $region34: #{_forward_jit.1} parent=11 // pred_check_branch
          %382 = sbr.rel (%p380) target = $region36
        $region35: #{_forward_jit.1} parent=11 // pred_region
          _
        $region36: #{_forward_jit.1} parent=11 // pred_fallthru
          _
        // Predicated region
        $region37: #{_forward_jit.1} parent=11 // pred_check
          %p383 = pneg %p197
        $region38: #{_forward_jit.1} parent=11 // pred_check_branch
          %385 = sbr.rel (%p383) target = $region40
        $region39: #{_forward_jit.1} parent=11 // pred_region
          %387 = vsyncadd [#allocation8], 0
          %s388 = sshll.u32 %s7, 4
          %s389 = int_to_ptr.hbm [resolvable:$true] %s388
          %s390 = sshll.u32 [#allocation7], 4
          %s391 = int_to_ptr.vmem [resolvable:$true] %s390
          %396 = dma.hbm_to_vmem [thread:$0]  %s389, 2048, %s391, [#allocation8], 64, 64, 4
        $region40: #{_forward_jit.1} parent=11 // pred_fallthru
          _
        // Predicated region
        $region41: #{_forward_jit.1} parent=11 // pred_check
          %p397 = pneg %p218
        $region42: #{_forward_jit.1} parent=11 // pred_check_branch
          %399 = sbr.rel (%p397) target = $region44
        $region43: #{_forward_jit.1} parent=11 // pred_region
          _
        $region44: #{_forward_jit.1} parent=11 // pred_fallthru
          _
        // Predicated region
        $region45: #{_forward_jit.1} parent=11 // pred_check
          %p400 = pneg %p239
        $region46: #{_forward_jit.1} parent=11 // pred_check_branch
          %402 = sbr.rel (%p400) target = $region48
        $region47: #{_forward_jit.1} parent=11 // pred_region
          _
        $region48: #{_forward_jit.1} parent=11 // pred_fallthru
          _
        // Predicated region
        $region49: #{_forward_jit.1} parent=11 // pred_check
          %p403 = pneg %p260
        $region50: #{_forward_jit.1} parent=11 // pred_check_branch
          %405 = sbr.rel (%p403) target = $region52
        $region51: #{_forward_jit.1} parent=11 // pred_region
          _
        $region52: #{_forward_jit.1} parent=11 // pred_fallthru
          _
        // Predicated region
        $region53: #{_forward_jit.1} parent=11 // pred_check
          %p406 = pneg %p281
        $region54: #{_forward_jit.1} parent=11 // pred_check_branch
          %408 = sbr.rel (%p406) target = $region56
        $region55: #{_forward_jit.1} parent=11 // pred_region
          _
        $region56: #{_forward_jit.1} parent=11 // pred_fallthru
          _
        // Predicated region
        $region57: #{_forward_jit.1} parent=11 // pred_check
          %p409 = pneg %p302
        $region58: #{_forward_jit.1} parent=11 // pred_check_branch
          %411 = sbr.rel (%p409) target = $region60
        $region59: #{_forward_jit.1} parent=11 // pred_region
          _
        $region60: #{_forward_jit.1} parent=11 // pred_fallthru
          _
      $region12: #{_forward_jit.1} parent=5 // pred_fallthru
        _
      %p412 = scmp.lt.s32.totalorder %s24, 2
      // Predicated region
      $region61: #{_forward_jit.1} parent=5 // pred_check
        %p413 = pneg %p412
      $region62: #{_forward_jit.1} parent=5 // pred_check_branch
        %415 = sbr.rel (%p413) target = $region64
      $region63: #{_forward_jit.1} parent=5 // pred_region
        // Predicated region
        $region65: #{_forward_jit.1} parent=63 // pred_check
          %p416 = pneg %p44
        $region66: #{_forward_jit.1} parent=63 // pred_check_branch
          %418 = sbr.rel (%p416) target = $region68
        $region67: #{_forward_jit.1} parent=63 // pred_region
          %s419 = sand.u32 %s34, 1
          %s420 = scalar_lea.sflag [#allocation3], %s419
          %s421 = sand.u32 %s34, 1
          %s422 = smul.addr %s421, 192
          %s423 = scalar_lea.vmem [#allocation2], %s422
          %s424 = smul.u32 4, %s24
          %426 = vsyncadd %s420, 0
          %s427 = smul.addr %s424, 6
          %s428 = smul.addr %s427, 8
          %s429 = scalar_lea.hbm %s0, %s428
          %s430 = sshll.u32 %s429, 4
          %s431 = int_to_ptr.hbm [resolvable:$true] %s430
          %s432 = sshll.u32 %s423, 4
          %s433 = int_to_ptr.vmem [resolvable:$true] %s432
          %438 = dma.hbm_to_vmem [thread:$0]  %s431, 3072, %s433, %s420, 768, 768, 48
        $region68: #{_forward_jit.1} parent=63 // pred_fallthru
          _
      $region64: #{_forward_jit.1} parent=5 // pred_fallthru
        _
      %p439 = scmp.le.s32.totalorder 1, %s24
      %p440 = scmp.lt.s32.totalorder %s24, 3
      %p441 = pnand %p439, %p440
      %p442 = pneg %p441
      // Predicated region
      $region69: #{_forward_jit.1} parent=5 // pred_check
        _
      $region70: #{_forward_jit.1} parent=5 // pred_check_branch
        %444 = sbr.rel (%p441) target = $region72
      $region71: #{_forward_jit.1} parent=5 // pred_region
        %s445 = ssub.s32 %s24, 1
        %s446 = sand.u32 %s37, 1
        %s447 = scalar_lea.sflag [#allocation3], %s446
        %s448 = sand.u32 %s37, 1
        %s449 = smul.addr %s448, 192
        %s450 = scalar_lea.vmem [#allocation2], %s449
        // Predicated region
        $region73: #{_forward_jit.1} parent=71 // pred_check
          %p451 = pneg %p50
        $region74: #{_forward_jit.1} parent=71 // pred_check_branch
          %453 = sbr.rel (%p451) target = $region76
        $region75: #{_forward_jit.1} parent=71 // pred_region
          %455 = dma.done %s447, 3072
        $region76: #{_forward_jit.1} parent=71 // pred_fallthru
          _
        // Predicated region
        $region77: #{_forward_jit.1} parent=71 // pred_check
          %p456 = pneg %p71
        $region78: #{_forward_jit.1} parent=71 // pred_check_branch
          %458 = sbr.rel (%p456) target = $region80
        $region79: #{_forward_jit.1} parent=71 // pred_region
          %460 = dma.done [#allocation5], 24576
        $region80: #{_forward_jit.1} parent=71 // pred_fallthru
          _
        // Predicated region
        $region81: #{_forward_jit.1} parent=71 // pred_check
          %p461 = pneg %p113
        $region82: #{_forward_jit.1} parent=71 // pred_check_branch
          %463 = sbr.rel (%p461) target = $region84
        $region83: #{_forward_jit.1} parent=71 // pred_region
          %465 = dma.done [#allocation5], 8192
        $region84: #{_forward_jit.1} parent=71 // pred_fallthru
          _
        // Predicated region
        $region85: #{_forward_jit.1} parent=71 // pred_check
          %p466 = pneg %p197
        $region86: #{_forward_jit.1} parent=71 // pred_check_branch
          %468 = sbr.rel (%p466) target = $region88
        $region87: #{_forward_jit.1} parent=71 // pred_region
          %470 = dma.done [#allocation8], 2048
        $region88: #{_forward_jit.1} parent=71 // pred_fallthru
          _
        %s471 = sand.u32 %s37, 1
        %s472 = scalar_lea.sflag [#allocation3], %s471
        %s473 = sand.u32 %s37, 1
        %s474 = smul.addr %s473, 192
        %s475 = scalar_lea.vmem [#allocation2], %s474
        %p476 = pneg %p50
        %p477 = pneg %p47
        %p478 = pneg %p71
        %p479 = pneg %p68
        %p480 = pneg %p92
        %p481 = pneg %p89
        %p482 = pneg %p113
        %p483 = pneg %p110
        %p484 = pneg %p134
        %p485 = pneg %p131
        %p486 = pneg %p155
        %p487 = pneg %p152
        %p488 = pneg %p176
        %p489 = pneg %p173
        %p490 = pneg %p197
        %p491 = pneg %p194
        %p492 = pneg %p218
        %p493 = pneg %p215
        %p494 = pneg %p239
        %p495 = pneg %p236
        %p496 = pneg %p260
        %p497 = pneg %p257
        %p498 = pneg %p281
        %p499 = pneg %p278
        %p500 = pneg %p302
        %p501 = pneg %p299
        %p502 = pneg %p328
        %p503 = pneg %p325
        %s504 = smul.u32 4, %s29
        %p505 = scmp.lt.s32.totalorder %s504, 7
        %s506 = scalar_select %p505, %s504, 7
        %s507 = smul.addr %s506, 8
        %s508 = scalar_lea.vmem %s13, %s507
        %s509 = smul.u32 4, %s29
        %s510 = smul.u32 4, %s29
        %p511 = scmp.lt.s32.totalorder %s510, 7
        %s512 = scalar_select %p511, %s510, 7
        %s513 = smul.addr %s512, 8
        %s514 = scalar_lea.vmem %s13, %s513
        %s515 = smul.u32 4, %s29
        %v517 = vld [vmem:[%s450] sm:$0xff]
        %v518 = vld [vmem:[%s450 + $0x8] sm:$0xff]
        %v519 = vld [vmem:[%s450 + $0x10] sm:$0xff]
        %v520 = vld [vmem:[%s450 + $0x18] sm:$0xff]
        %v521 = vld [vmem:[%s450 + $0x20] sm:$0xff]
        %v522 = vld [vmem:[%s450 + $0x28] sm:$0xff]
        %v523 = vld [vmem:[%s450 + $0x30] sm:$0xff]
        %v524 = vld [vmem:[%s450 + $0x38] sm:$0xff]
        %v525 = vld [vmem:[%s450 + $0x40] sm:$0xff]
        %v526 = vld [vmem:[%s450 + $0x48] sm:$0xff]
        %v527 = vld [vmem:[%s450 + $0x50] sm:$0xff]
        %v528 = vld [vmem:[%s450 + $0x58] sm:$0xff]
        %v529 = vld [vmem:[%s450 + $0x60] sm:$0xff]
        %v530 = vld [vmem:[%s450 + $0x68] sm:$0xff]
        %v531 = vld [vmem:[%s450 + $0x70] sm:$0xff]
        %v532 = vld [vmem:[%s450 + $0x78] sm:$0xff]
        %v533 = vld [vmem:[%s450 + $0x80] sm:$0xff]
        %v534 = vld [vmem:[%s450 + $0x88] sm:$0xff]
        %v535 = vld [vmem:[%s450 + $0x90] sm:$0xff]
        %v536 = vld [vmem:[%s450 + $0x98] sm:$0xff]
        %v537 = vld [vmem:[%s450 + $0xa0] sm:$0xff]
        %v538 = vld [vmem:[%s450 + $0xa8] sm:$0xff]
        %v539 = vld [vmem:[%s450 + $0xb0] sm:$0xff]
        %v540 = vld [vmem:[%s450 + $0xb8] sm:$0xff]
        %v541 = vpack.c.bf16 %v523, %v517
        %v542 = vpack.c.bf16 %v524, %v518
        %v543 = vpack.c.bf16 %v525, %v519
        %v544 = vpack.c.bf16 %v526, %v520
        %v545 = vpack.c.bf16 %v527, %v521
        %v546 = vpack.c.bf16 %v528, %v522
        %v547 = vpack.c.bf16 %v535, %v529
        %v548 = vpack.c.bf16 %v536, %v530
        %v549 = vpack.c.bf16 %v537, %v531
        %v550 = vpack.c.bf16 %v538, %v532
        %v551 = vpack.c.bf16 %v539, %v533
        %v552 = vpack.c.bf16 %v540, %v534
        %v553 = vld [vmem:[#allocation4] sm:$0xff]
        %v554 = vld [vmem:[#allocation4 + $0x8] sm:$0xff]
        %v555 = vld [vmem:[#allocation4 + $0x10] sm:$0xff]
        %v556 = vld [vmem:[#allocation4 + $0x18] sm:$0xff]
        %v557 = vld [vmem:[#allocation4 + $0x20] sm:$0xff]
        %v558 = vld [vmem:[#allocation4 + $0x28] sm:$0xff]
        %v559 = vld [vmem:[#allocation4 + $0x30] sm:$0xff]
        %v560 = vld [vmem:[#allocation4 + $0x38] sm:$0xff]
        %v561 = vld [vmem:[#allocation4 + $0x40] sm:$0xff]
        %v562 = vld [vmem:[#allocation4 + $0x48] sm:$0xff]
        %v563 = vld [vmem:[#allocation4 + $0x50] sm:$0xff]
        %v564 = vld [vmem:[#allocation4 + $0x58] sm:$0xff]
        %v565 = vld [vmem:[#allocation4 + $0x60] sm:$0xff]
        %v566 = vld [vmem:[#allocation4 + $0x68] sm:$0xff]
        %v567 = vld [vmem:[#allocation4 + $0x70] sm:$0xff]
        %v568 = vld [vmem:[#allocation4 + $0x78] sm:$0xff]
        %v569 = vld [vmem:[#allocation4 + $0x80] sm:$0xff]
        %v570 = vld [vmem:[#allocation4 + $0x88] sm:$0xff]
        %v571 = vld [vmem:[#allocation4 + $0x90] sm:$0xff]
        %v572 = vld [vmem:[#allocation4 + $0x98] sm:$0xff]
        %v573 = vld [vmem:[#allocation4 + $0xa0] sm:$0xff]
        %v574 = vld [vmem:[#allocation4 + $0xa8] sm:$0xff]
        %v575 = vld [vmem:[#allocation4 + $0xb0] sm:$0xff]
        %v576 = vld [vmem:[#allocation4 + $0xb8] sm:$0xff]
        %v577 = vld [vmem:[#allocation4 + $0xc0] sm:$0xff]
        %v578 = vld [vmem:[#allocation4 + $0xc8] sm:$0xff]
        %v579 = vld [vmem:[#allocation4 + $0xd0] sm:$0xff]
        %v580 = vld [vmem:[#allocation4 + $0xd8] sm:$0xff]
        %v581 = vld [vmem:[#allocation4 + $0xe0] sm:$0xff]
        %v582 = vld [vmem:[#allocation4 + $0xe8] sm:$0xff]
        %v583 = vld [vmem:[#allocation4 + $0xf0] sm:$0xff]
        %v584 = vld [vmem:[#allocation4 + $0xf8] sm:$0xff]
        %v585 = vld [vmem:[#allocation4 + $0x100] sm:$0xff]
        %v586 = vld [vmem:[#allocation4 + $0x108] sm:$0xff]
        %v587 = vld [vmem:[#allocation4 + $0x110] sm:$0xff]
        %v588 = vld [vmem:[#allocation4 + $0x118] sm:$0xff]
        %v589 = vld [vmem:[#allocation4 + $0x120] sm:$0xff]
        %v590 = vld [vmem:[#allocation4 + $0x128] sm:$0xff]
        %v591 = vld [vmem:[#allocation4 + $0x130] sm:$0xff]
        %v592 = vld [vmem:[#allocation4 + $0x138] sm:$0xff]
        %v593 = vld [vmem:[#allocation4 + $0x140] sm:$0xff]
        %v594 = vld [vmem:[#allocation4 + $0x148] sm:$0xff]
        %v595 = vld [vmem:[#allocation4 + $0x150] sm:$0xff]
        %v596 = vld [vmem:[#allocation4 + $0x158] sm:$0xff]
        %v597 = vld [vmem:[#allocation4 + $0x160] sm:$0xff]
        %v598 = vld [vmem:[#allocation4 + $0x168] sm:$0xff]
        %v599 = vld [vmem:[#allocation4 + $0x170] sm:$0xff]
        %v600 = vld [vmem:[#allocation4 + $0x178] sm:$0xff]
        %v601 = vld [vmem:[#allocation4 + $0x180] sm:$0xff]
        %v602 = vld [vmem:[#allocation4 + $0x188] sm:$0xff]
        %v603 = vld [vmem:[#allocation4 + $0x190] sm:$0xff]
        %v604 = vld [vmem:[#allocation4 + $0x198] sm:$0xff]
        %v605 = vld [vmem:[#allocation4 + $0x1a0] sm:$0xff]
        %v606 = vld [vmem:[#allocation4 + $0x1a8] sm:$0xff]
        %v607 = vld [vmem:[#allocation4 + $0x1b0] sm:$0xff]
        %v608 = vld [vmem:[#allocation4 + $0x1b8] sm:$0xff]
        %v609 = vld [vmem:[#allocation4 + $0x1c0] sm:$0xff]
        %v610 = vld [vmem:[#allocation4 + $0x1c8] sm:$0xff]
        %v611 = vld [vmem:[#allocation4 + $0x1d0] sm:$0xff]
        %v612 = vld [vmem:[#allocation4 + $0x1d8] sm:$0xff]
        %v613 = vld [vmem:[#allocation4 + $0x1e0] sm:$0xff]
        %v614 = vld [vmem:[#allocation4 + $0x1e8] sm:$0xff]
        %v615 = vld [vmem:[#allocation4 + $0x1f0] sm:$0xff]
        %v616 = vld [vmem:[#allocation4 + $0x1f8] sm:$0xff]
        %v617 = vld [vmem:[#allocation4 + $0x200] sm:$0xff]
        %v618 = vld [vmem:[#allocation4 + $0x208] sm:$0xff]
        %v619 = vld [vmem:[#allocation4 + $0x210] sm:$0xff]
        %v620 = vld [vmem:[#allocation4 + $0x218] sm:$0xff]
        %v621 = vld [vmem:[#allocation4 + $0x220] sm:$0xff]
        %v622 = vld [vmem:[#allocation4 + $0x228] sm:$0xff]
        %v623 = vld [vmem:[#allocation4 + $0x230] sm:$0xff]
        %v624 = vld [vmem:[#allocation4 + $0x238] sm:$0xff]
        %v625 = vld [vmem:[#allocation4 + $0x240] sm:$0xff]
        %v626 = vld [vmem:[#allocation4 + $0x248] sm:$0xff]
        %v627 = vld [vmem:[#allocation4 + $0x250] sm:$0xff]
        %v628 = vld [vmem:[#allocation4 + $0x258] sm:$0xff]
        %v629 = vld [vmem:[#allocation4 + $0x260] sm:$0xff]
        %v630 = vld [vmem:[#allocation4 + $0x268] sm:$0xff]
        %v631 = vld [vmem:[#allocation4 + $0x270] sm:$0xff]
        %v632 = vld [vmem:[#allocation4 + $0x278] sm:$0xff]
        %v633 = vld [vmem:[#allocation4 + $0x280] sm:$0xff]
        %v634 = vld [vmem:[#allocation4 + $0x288] sm:$0xff]
        %v635 = vld [vmem:[#allocation4 + $0x290] sm:$0xff]
        %v636 = vld [vmem:[#allocation4 + $0x298] sm:$0xff]
        %v637 = vld [vmem:[#allocation4 + $0x2a0] sm:$0xff]
        %v638 = vld [vmem:[#allocation4 + $0x2a8] sm:$0xff]
        %v639 = vld [vmem:[#allocation4 + $0x2b0] sm:$0xff]
        %v640 = vld [vmem:[#allocation4 + $0x2b8] sm:$0xff]
        %v641 = vld [vmem:[#allocation4 + $0x2c0] sm:$0xff]
        %v642 = vld [vmem:[#allocation4 + $0x2c8] sm:$0xff]
        %v643 = vld [vmem:[#allocation4 + $0x2d0] sm:$0xff]
        %v644 = vld [vmem:[#allocation4 + $0x2d8] sm:$0xff]
        %v645 = vld [vmem:[#allocation4 + $0x2e0] sm:$0xff]
        %v646 = vld [vmem:[#allocation4 + $0x2e8] sm:$0xff]
        %v647 = vld [vmem:[#allocation4 + $0x2f0] sm:$0xff]
        %v648 = vld [vmem:[#allocation4 + $0x2f8] sm:$0xff]
        %v649 = vld [vmem:[#allocation4 + $0x300] sm:$0xff]
        %v650 = vld [vmem:[#allocation4 + $0x308] sm:$0xff]
        %v651 = vld [vmem:[#allocation4 + $0x310] sm:$0xff]
        %v652 = vld [vmem:[#allocation4 + $0x318] sm:$0xff]
        %v653 = vld [vmem:[#allocation4 + $0x320] sm:$0xff]
        %v654 = vld [vmem:[#allocation4 + $0x328] sm:$0xff]
        %v655 = vld [vmem:[#allocation4 + $0x330] sm:$0xff]
        %v656 = vld [vmem:[#allocation4 + $0x338] sm:$0xff]
        %v657 = vld [vmem:[#allocation4 + $0x340] sm:$0xff]
        %v658 = vld [vmem:[#allocation4 + $0x348] sm:$0xff]
        %v659 = vld [vmem:[#allocation4 + $0x350] sm:$0xff]
        %v660 = vld [vmem:[#allocation4 + $0x358] sm:$0xff]
        %v661 = vld [vmem:[#allocation4 + $0x360] sm:$0xff]
        %v662 = vld [vmem:[#allocation4 + $0x368] sm:$0xff]
        %v663 = vld [vmem:[#allocation4 + $0x370] sm:$0xff]
        %v664 = vld [vmem:[#allocation4 + $0x378] sm:$0xff]
        %v665 = vld [vmem:[#allocation4 + $0x380] sm:$0xff]
        %v666 = vld [vmem:[#allocation4 + $0x388] sm:$0xff]
        %v667 = vld [vmem:[#allocation4 + $0x390] sm:$0xff]
        %v668 = vld [vmem:[#allocation4 + $0x398] sm:$0xff]
        %v669 = vld [vmem:[#allocation4 + $0x3a0] sm:$0xff]
        %v670 = vld [vmem:[#allocation4 + $0x3a8] sm:$0xff]
        %v671 = vld [vmem:[#allocation4 + $0x3b0] sm:$0xff]
        %v672 = vld [vmem:[#allocation4 + $0x3b8] sm:$0xff]
        %v673 = vld [vmem:[#allocation4 + $0x3c0] sm:$0xff]
        %v674 = vld [vmem:[#allocation4 + $0x3c8] sm:$0xff]
        %v675 = vld [vmem:[#allocation4 + $0x3d0] sm:$0xff]
        %v676 = vld [vmem:[#allocation4 + $0x3d8] sm:$0xff]
        %v677 = vld [vmem:[#allocation4 + $0x3e0] sm:$0xff]
        %v678 = vld [vmem:[#allocation4 + $0x3e8] sm:$0xff]
        %v679 = vld [vmem:[#allocation4 + $0x3f0] sm:$0xff]
        %v680 = vld [vmem:[#allocation4 + $0x3f8] sm:$0xff]
        %v681 = vld [vmem:[#allocation4 + $0x400] sm:$0xff]
        %v682 = vld [vmem:[#allocation4 + $0x408] sm:$0xff]
        %v683 = vld [vmem:[#allocation4 + $0x410] sm:$0xff]
        %v684 = vld [vmem:[#allocation4 + $0x418] sm:$0xff]
        %v685 = vld [vmem:[#allocation4 + $0x420] sm:$0xff]
        %v686 = vld [vmem:[#allocation4 + $0x428] sm:$0xff]
        %v687 = vld [vmem:[#allocation4 + $0x430] sm:$0xff]
        %v688 = vld [vmem:[#allocation4 + $0x438] sm:$0xff]
        %v689 = vld [vmem:[#allocation4 + $0x440] sm:$0xff]
        %v690 = vld [vmem:[#allocation4 + $0x448] sm:$0xff]
        %v691 = vld [vmem:[#allocation4 + $0x450] sm:$0xff]
        %v692 = vld [vmem:[#allocation4 + $0x458] sm:$0xff]
        %v693 = vld [vmem:[#allocation4 + $0x460] sm:$0xff]
        %v694 = vld [vmem:[#allocation4 + $0x468] sm:$0xff]
        %v695 = vld [vmem:[#allocation4 + $0x470] sm:$0xff]
        %v696 = vld [vmem:[#allocation4 + $0x478] sm:$0xff]
        %v697 = vld [vmem:[#allocation4 + $0x480] sm:$0xff]
        %v698 = vld [vmem:[#allocation4 + $0x488] sm:$0xff]
        %v699 = vld [vmem:[#allocation4 + $0x490] sm:$0xff]
        %v700 = vld [vmem:[#allocation4 + $0x498] sm:$0xff]
        %v701 = vld [vmem:[#allocation4 + $0x4a0] sm:$0xff]
        %v702 = vld [vmem:[#allocation4 + $0x4a8] sm:$0xff]
        %v703 = vld [vmem:[#allocation4 + $0x4b0] sm:$0xff]
        %v704 = vld [vmem:[#allocation4 + $0x4b8] sm:$0xff]
        %v705 = vld [vmem:[#allocation4 + $0x4c0] sm:$0xff]
        %v706 = vld [vmem:[#allocation4 + $0x4c8] sm:$0xff]
        %v707 = vld [vmem:[#allocation4 + $0x4d0] sm:$0xff]
        %v708 = vld [vmem:[#allocation4 + $0x4d8] sm:$0xff]
        %v709 = vld [vmem:[#allocation4 + $0x4e0] sm:$0xff]
        %v710 = vld [vmem:[#allocation4 + $0x4e8] sm:$0xff]
        %v711 = vld [vmem:[#allocation4 + $0x4f0] sm:$0xff]
        %v712 = vld [vmem:[#allocation4 + $0x4f8] sm:$0xff]
        %v713 = vld [vmem:[#allocation4 + $0x500] sm:$0xff]
        %v714 = vld [vmem:[#allocation4 + $0x508] sm:$0xff]
        %v715 = vld [vmem:[#allocation4 + $0x510] sm:$0xff]
        %v716 = vld [vmem:[#allocation4 + $0x518] sm:$0xff]
        %v717 = vld [vmem:[#allocation4 + $0x520] sm:$0xff]
        %v718 = vld [vmem:[#allocation4 + $0x528] sm:$0xff]
        %v719 = vld [vmem:[#allocation4 + $0x530] sm:$0xff]
        %v720 = vld [vmem:[#allocation4 + $0x538] sm:$0xff]
        %v721 = vld [vmem:[#allocation4 + $0x540] sm:$0xff]
        %v722 = vld [vmem:[#allocation4 + $0x548] sm:$0xff]
        %v723 = vld [vmem:[#allocation4 + $0x550] sm:$0xff]
        %v724 = vld [vmem:[#allocation4 + $0x558] sm:$0xff]
        %v725 = vld [vmem:[#allocation4 + $0x560] sm:$0xff]
        %v726 = vld [vmem:[#allocation4 + $0x568] sm:$0xff]
        %v727 = vld [vmem:[#allocation4 + $0x570] sm:$0xff]
        %v728 = vld [vmem:[#allocation4 + $0x578] sm:$0xff]
        %v729 = vld [vmem:[#allocation4 + $0x580] sm:$0xff]
        %v730 = vld [vmem:[#allocation4 + $0x588] sm:$0xff]
        %v731 = vld [vmem:[#allocation4 + $0x590] sm:$0xff]
        %v732 = vld [vmem:[#allocation4 + $0x598] sm:$0xff]
        %v733 = vld [vmem:[#allocation4 + $0x5a0] sm:$0xff]
        %v734 = vld [vmem:[#allocation4 + $0x5a8] sm:$0xff]
        %v735 = vld [vmem:[#allocation4 + $0x5b0] sm:$0xff]
        %v736 = vld [vmem:[#allocation4 + $0x5b8] sm:$0xff]
        %v737 = vld [vmem:[#allocation4 + $0x5c0] sm:$0xff]
        %v738 = vld [vmem:[#allocation4 + $0x5c8] sm:$0xff]
        %v739 = vld [vmem:[#allocation4 + $0x5d0] sm:$0xff]
        %v740 = vld [vmem:[#allocation4 + $0x5d8] sm:$0xff]
        %v741 = vld [vmem:[#allocation4 + $0x5e0] sm:$0xff]
        %v742 = vld [vmem:[#allocation4 + $0x5e8] sm:$0xff]
        %v743 = vld [vmem:[#allocation4 + $0x5f0] sm:$0xff]
        %v744 = vld [vmem:[#allocation4 + $0x5f8] sm:$0xff]
        %v745 = vld [vmem:[%s2] sm:$0xf]
        %v747 = vperm.slane %v745, 0
        %v748 = vperm.slane %v745, 1
        %v749 = vperm.slane %v745, 2
        %v750 = vperm.slane %v745, 3
        %v947 = vunpack.c.l.b16 %v553
        %v948 = vunpack.c.h.b16 %v553
        %v949 = vunpack.c.l.b16 %v554
        %v950 = vunpack.c.h.b16 %v554
        %v951 = vunpack.c.l.b16 %v555
        %v952 = vunpack.c.h.b16 %v555
        %v953 = vunpack.c.l.b16 %v556
        %v954 = vunpack.c.h.b16 %v556
        %v955 = vunpack.c.l.b16 %v557
        %v956 = vunpack.c.h.b16 %v557
        %v957 = vunpack.c.l.b16 %v558
        %v958 = vunpack.c.h.b16 %v558
        %v959 = vunpack.c.l.b16 %v559
        %v960 = vunpack.c.h.b16 %v559
        %v961 = vunpack.c.l.b16 %v560
        %v962 = vunpack.c.h.b16 %v560
        %v963 = vunpack.c.l.b16 %v561
        %v964 = vunpack.c.h.b16 %v561
        %v965 = vunpack.c.l.b16 %v562
        %v966 = vunpack.c.h.b16 %v562
        %v967 = vunpack.c.l.b16 %v563
        %v968 = vunpack.c.h.b16 %v563
        %v969 = vunpack.c.l.b16 %v564
        %v970 = vunpack.c.h.b16 %v564
        %v971 = vunpack.c.l.b16 %v565
        %v972 = vunpack.c.h.b16 %v565
        %v973 = vunpack.c.l.b16 %v566
        %v974 = vunpack.c.h.b16 %v566
        %v975 = vunpack.c.l.b16 %v567
        %v976 = vunpack.c.h.b16 %v567
        %v977 = vunpack.c.l.b16 %v568
        %v978 = vunpack.c.h.b16 %v568
        %v979 = vunpack.c.l.b16 %v569
        %v980 = vunpack.c.h.b16 %v569
        %v981 = vunpack.c.l.b16 %v570
        %v982 = vunpack.c.h.b16 %v570
        %v983 = vunpack.c.l.b16 %v571
        %v984 = vunpack.c.h.b16 %v571
        %v985 = vunpack.c.l.b16 %v572
        %v986 = vunpack.c.h.b16 %v572
        %v987 = vunpack.c.l.b16 %v573
        %v988 = vunpack.c.h.b16 %v573
        %v989 = vunpack.c.l.b16 %v574
        %v990 = vunpack.c.h.b16 %v574
        %v991 = vunpack.c.l.b16 %v575
        %v992 = vunpack.c.h.b16 %v575
        %v993 = vunpack.c.l.b16 %v576
        %v994 = vunpack.c.h.b16 %v576
        %v995 = vunpack.c.l.b16 %v577
        %v996 = vunpack.c.h.b16 %v577
        %v997 = vunpack.c.l.b16 %v578
        %v998 = vunpack.c.h.b16 %v578
        %v999 = vunpack.c.l.b16 %v579
        %v1000 = vunpack.c.h.b16 %v579
        %v1001 = vunpack.c.l.b16 %v580
        %v1002 = vunpack.c.h.b16 %v580
        %v1003 = vunpack.c.l.b16 %v581
        %v1004 = vunpack.c.h.b16 %v581
        %v1005 = vunpack.c.l.b16 %v582
        %v1006 = vunpack.c.h.b16 %v582
        %v1007 = vunpack.c.l.b16 %v583
        %v1008 = vunpack.c.h.b16 %v583
        %v1009 = vunpack.c.l.b16 %v584
        %v1010 = vunpack.c.h.b16 %v584
        %v1011 = vunpack.c.l.b16 %v585
        %v1012 = vunpack.c.h.b16 %v585
        %v1013 = vunpack.c.l.b16 %v586
        %v1014 = vunpack.c.h.b16 %v586
        %v1015 = vunpack.c.l.b16 %v587
        %v1016 = vunpack.c.h.b16 %v587
        %v1017 = vunpack.c.l.b16 %v588
        %v1018 = vunpack.c.h.b16 %v588
        %v1019 = vunpack.c.l.b16 %v589
        %v1020 = vunpack.c.h.b16 %v589
        %v1021 = vunpack.c.l.b16 %v590
        %v1022 = vunpack.c.h.b16 %v590
        %v1023 = vunpack.c.l.b16 %v591
        %v1024 = vunpack.c.h.b16 %v591
        %v1025 = vunpack.c.l.b16 %v592
        %v1026 = vunpack.c.h.b16 %v592
        %v1027 = vunpack.c.l.b16 %v593
        %v1028 = vunpack.c.h.b16 %v593
        %v1029 = vunpack.c.l.b16 %v594
        %v1030 = vunpack.c.h.b16 %v594
        %v1031 = vunpack.c.l.b16 %v595
        %v1032 = vunpack.c.h.b16 %v595
        %v1033 = vunpack.c.l.b16 %v596
        %v1034 = vunpack.c.h.b16 %v596
        %v1035 = vunpack.c.l.b16 %v597
        %v1036 = vunpack.c.h.b16 %v597
        %v1037 = vunpack.c.l.b16 %v598
        %v1038 = vunpack.c.h.b16 %v598
        %v1039 = vunpack.c.l.b16 %v599
        %v1040 = vunpack.c.h.b16 %v599
        %v1041 = vunpack.c.l.b16 %v600
        %v1042 = vunpack.c.h.b16 %v600
        %v1043 = vunpack.c.l.b16 %v601
        %v1044 = vunpack.c.h.b16 %v601
        %v1045 = vunpack.c.l.b16 %v602
        %v1046 = vunpack.c.h.b16 %v602
        %v1047 = vunpack.c.l.b16 %v603
        %v1048 = vunpack.c.h.b16 %v603
        %v1049 = vunpack.c.l.b16 %v604
        %v1050 = vunpack.c.h.b16 %v604
        %v1051 = vunpack.c.l.b16 %v605
        %v1052 = vunpack.c.h.b16 %v605
        %v1053 = vunpack.c.l.b16 %v606
        %v1054 = vunpack.c.h.b16 %v606
        %v1055 = vunpack.c.l.b16 %v607
        %v1056 = vunpack.c.h.b16 %v607
        %v1057 = vunpack.c.l.b16 %v608
        %v1058 = vunpack.c.h.b16 %v608
        %v1059 = vunpack.c.l.b16 %v609
        %v1060 = vunpack.c.h.b16 %v609
        %v1061 = vunpack.c.l.b16 %v610
        %v1062 = vunpack.c.h.b16 %v610
        %v1063 = vunpack.c.l.b16 %v611
        %v1064 = vunpack.c.h.b16 %v611
        %v1065 = vunpack.c.l.b16 %v612
        %v1066 = vunpack.c.h.b16 %v612
        %v1067 = vunpack.c.l.b16 %v613
        %v1068 = vunpack.c.h.b16 %v613
        %v1069 = vunpack.c.l.b16 %v614
        %v1070 = vunpack.c.h.b16 %v614
        %v1071 = vunpack.c.l.b16 %v615
        %v1072 = vunpack.c.h.b16 %v615
        %v1073 = vunpack.c.l.b16 %v616
        %v1074 = vunpack.c.h.b16 %v616
        %v1075 = vunpack.c.l.b16 %v617
        %v1076 = vunpack.c.h.b16 %v617
        %v1077 = vunpack.c.l.b16 %v618
        %v1078 = vunpack.c.h.b16 %v618
        %v1079 = vunpack.c.l.b16 %v619
        %v1080 = vunpack.c.h.b16 %v619
        %v1081 = vunpack.c.l.b16 %v620
        %v1082 = vunpack.c.h.b16 %v620
        %v1083 = vunpack.c.l.b16 %v621
        %v1084 = vunpack.c.h.b16 %v621
        %v1085 = vunpack.c.l.b16 %v622
        %v1086 = vunpack.c.h.b16 %v622
        %v1087 = vunpack.c.l.b16 %v623
        %v1088 = vunpack.c.h.b16 %v623
        %v1089 = vunpack.c.l.b16 %v624
        %v1090 = vunpack.c.h.b16 %v624
        %v1091 = vunpack.c.l.b16 %v625
        %v1092 = vunpack.c.h.b16 %v625
        %v1093 = vunpack.c.l.b16 %v626
        %v1094 = vunpack.c.h.b16 %v626
        %v1095 = vunpack.c.l.b16 %v627
        %v1096 = vunpack.c.h.b16 %v627
        %v1097 = vunpack.c.l.b16 %v628
        %v1098 = vunpack.c.h.b16 %v628
        %v1099 = vunpack.c.l.b16 %v629
        %v1100 = vunpack.c.h.b16 %v629
        %v1101 = vunpack.c.l.b16 %v630
        %v1102 = vunpack.c.h.b16 %v630
        %v1103 = vunpack.c.l.b16 %v631
        %v1104 = vunpack.c.h.b16 %v631
        %v1105 = vunpack.c.l.b16 %v632
        %v1106 = vunpack.c.h.b16 %v632
        %v1107 = vunpack.c.l.b16 %v633
        %v1108 = vunpack.c.h.b16 %v633
        %v1109 = vunpack.c.l.b16 %v634
        %v1110 = vunpack.c.h.b16 %v634
        %v1111 = vunpack.c.l.b16 %v635
        %v1112 = vunpack.c.h.b16 %v635
        %v1113 = vunpack.c.l.b16 %v636
        %v1114 = vunpack.c.h.b16 %v636
        %v1115 = vunpack.c.l.b16 %v637
        %v1116 = vunpack.c.h.b16 %v637
        %v1117 = vunpack.c.l.b16 %v638
        %v1118 = vunpack.c.h.b16 %v638
        %v1119 = vunpack.c.l.b16 %v639
        %v1120 = vunpack.c.h.b16 %v639
        %v1121 = vunpack.c.l.b16 %v640
        %v1122 = vunpack.c.h.b16 %v640
        %v1123 = vunpack.c.l.b16 %v641
        %v1124 = vunpack.c.h.b16 %v641
        %v1125 = vunpack.c.l.b16 %v642
        %v1126 = vunpack.c.h.b16 %v642
        %v1127 = vunpack.c.l.b16 %v643
        %v1128 = vunpack.c.h.b16 %v643
        %v1129 = vunpack.c.l.b16 %v644
        %v1130 = vunpack.c.h.b16 %v644
        %v1131 = vunpack.c.l.b16 %v645
        %v1132 = vunpack.c.h.b16 %v645
        %v1133 = vunpack.c.l.b16 %v646
        %v1134 = vunpack.c.h.b16 %v646
        %v1135 = vunpack.c.l.b16 %v647
        %v1136 = vunpack.c.h.b16 %v647
        %v1137 = vunpack.c.l.b16 %v648
        %v1138 = vunpack.c.h.b16 %v648
        %v1139 = vunpack.c.l.b16 %v649
        %v1140 = vunpack.c.h.b16 %v649
        %v1141 = vunpack.c.l.b16 %v650
        %v1142 = vunpack.c.h.b16 %v650
        %v1143 = vunpack.c.l.b16 %v651
        %v1144 = vunpack.c.h.b16 %v651
        %v1145 = vunpack.c.l.b16 %v652
        %v1146 = vunpack.c.h.b16 %v652
        %v1147 = vunpack.c.l.b16 %v653
        %v1148 = vunpack.c.h.b16 %v653
        %v1149 = vunpack.c.l.b16 %v654
        %v1150 = vunpack.c.h.b16 %v654
        %v1151 = vunpack.c.l.b16 %v655
        %v1152 = vunpack.c.h.b16 %v655
        %v1153 = vunpack.c.l.b16 %v656
        %v1154 = vunpack.c.h.b16 %v656
        %v1155 = vunpack.c.l.b16 %v657
        %v1156 = vunpack.c.h.b16 %v657
        %v1157 = vunpack.c.l.b16 %v658
        %v1158 = vunpack.c.h.b16 %v658
        %v1159 = vunpack.c.l.b16 %v659
        %v1160 = vunpack.c.h.b16 %v659
        %v1161 = vunpack.c.l.b16 %v660
        %v1162 = vunpack.c.h.b16 %v660
        %v1163 = vunpack.c.l.b16 %v661
        %v1164 = vunpack.c.h.b16 %v661
        %v1165 = vunpack.c.l.b16 %v662
        %v1166 = vunpack.c.h.b16 %v662
        %v1167 = vunpack.c.l.b16 %v663
        %v1168 = vunpack.c.h.b16 %v663
        %v1169 = vunpack.c.l.b16 %v664
        %v1170 = vunpack.c.h.b16 %v664
        %v1171 = vunpack.c.l.b16 %v665
        %v1172 = vunpack.c.h.b16 %v665
        %v1173 = vunpack.c.l.b16 %v666
        %v1174 = vunpack.c.h.b16 %v666
        %v1175 = vunpack.c.l.b16 %v667
        %v1176 = vunpack.c.h.b16 %v667
        %v1177 = vunpack.c.l.b16 %v668
        %v1178 = vunpack.c.h.b16 %v668
        %v1179 = vunpack.c.l.b16 %v669
        %v1180 = vunpack.c.h.b16 %v669
        %v1181 = vunpack.c.l.b16 %v670
        %v1182 = vunpack.c.h.b16 %v670
        %v1183 = vunpack.c.l.b16 %v671
        %v1184 = vunpack.c.h.b16 %v671
        %v1185 = vunpack.c.l.b16 %v672
        %v1186 = vunpack.c.h.b16 %v672
        %v1187 = vunpack.c.l.b16 %v673
        %v1188 = vunpack.c.h.b16 %v673
        %v1189 = vunpack.c.l.b16 %v674
        %v1190 = vunpack.c.h.b16 %v674
        %v1191 = vunpack.c.l.b16 %v675
        %v1192 = vunpack.c.h.b16 %v675
        %v1193 = vunpack.c.l.b16 %v676
        %v1194 = vunpack.c.h.b16 %v676
        %v1195 = vunpack.c.l.b16 %v677
        %v1196 = vunpack.c.h.b16 %v677
        %v1197 = vunpack.c.l.b16 %v678
        %v1198 = vunpack.c.h.b16 %v678
        %v1199 = vunpack.c.l.b16 %v679
        %v1200 = vunpack.c.h.b16 %v679
        %v1201 = vunpack.c.l.b16 %v680
        %v1202 = vunpack.c.h.b16 %v680
        %v1203 = vunpack.c.l.b16 %v681
        %v1204 = vunpack.c.h.b16 %v681
        %v1205 = vunpack.c.l.b16 %v682
        %v1206 = vunpack.c.h.b16 %v682
        %v1207 = vunpack.c.l.b16 %v683
        %v1208 = vunpack.c.h.b16 %v683
        %v1209 = vunpack.c.l.b16 %v684
        %v1210 = vunpack.c.h.b16 %v684
        %v1211 = vunpack.c.l.b16 %v685
        %v1212 = vunpack.c.h.b16 %v685
        %v1213 = vunpack.c.l.b16 %v686
        %v1214 = vunpack.c.h.b16 %v686
        %v1215 = vunpack.c.l.b16 %v687
        %v1216 = vunpack.c.h.b16 %v687
        %v1217 = vunpack.c.l.b16 %v688
        %v1218 = vunpack.c.h.b16 %v688
        %v1219 = vunpack.c.l.b16 %v689
        %v1220 = vunpack.c.h.b16 %v689
        %v1221 = vunpack.c.l.b16 %v690
        %v1222 = vunpack.c.h.b16 %v690
        %v1223 = vunpack.c.l.b16 %v691
        %v1224 = vunpack.c.h.b16 %v691
        %v1225 = vunpack.c.l.b16 %v692
        %v1226 = vunpack.c.h.b16 %v692
        %v1227 = vunpack.c.l.b16 %v693
        %v1228 = vunpack.c.h.b16 %v693
        %v1229 = vunpack.c.l.b16 %v694
        %v1230 = vunpack.c.h.b16 %v694
        %v1231 = vunpack.c.l.b16 %v695
        %v1232 = vunpack.c.h.b16 %v695
        %v1233 = vunpack.c.l.b16 %v696
        %v1234 = vunpack.c.h.b16 %v696
        %v1235 = vunpack.c.l.b16 %v697
        %v1236 = vunpack.c.h.b16 %v697
        %v1237 = vunpack.c.l.b16 %v698
        %v1238 = vunpack.c.h.b16 %v698
        %v1239 = vunpack.c.l.b16 %v699
        %v1240 = vunpack.c.h.b16 %v699
        %v1241 = vunpack.c.l.b16 %v700
        %v1242 = vunpack.c.h.b16 %v700
        %v1243 = vunpack.c.l.b16 %v701
        %v1244 = vunpack.c.h.b16 %v701
        %v1245 = vunpack.c.l.b16 %v702
        %v1246 = vunpack.c.h.b16 %v702
        %v1247 = vunpack.c.l.b16 %v703
        %v1248 = vunpack.c.h.b16 %v703
        %v1249 = vunpack.c.l.b16 %v704
        %v1250 = vunpack.c.h.b16 %v704
        %v1251 = vunpack.c.l.b16 %v705
        %v1252 = vunpack.c.h.b16 %v705
        %v1253 = vunpack.c.l.b16 %v706
        %v1254 = vunpack.c.h.b16 %v706
        %v1255 = vunpack.c.l.b16 %v707
        %v1256 = vunpack.c.h.b16 %v707
        %v1257 = vunpack.c.l.b16 %v708
        %v1258 = vunpack.c.h.b16 %v708
        %v1259 = vunpack.c.l.b16 %v709
        %v1260 = vunpack.c.h.b16 %v709
        %v1261 = vunpack.c.l.b16 %v710
        %v1262 = vunpack.c.h.b16 %v710
        %v1263 = vunpack.c.l.b16 %v711
        %v1264 = vunpack.c.h.b16 %v711
        %v1265 = vunpack.c.l.b16 %v712
        %v1266 = vunpack.c.h.b16 %v712
        %v1267 = vunpack.c.l.b16 %v713
        %v1268 = vunpack.c.h.b16 %v713
        %v1269 = vunpack.c.l.b16 %v714
        %v1270 = vunpack.c.h.b16 %v714
        %v1271 = vunpack.c.l.b16 %v715
        %v1272 = vunpack.c.h.b16 %v715
        %v1273 = vunpack.c.l.b16 %v716
        %v1274 = vunpack.c.h.b16 %v716
        %v1275 = vunpack.c.l.b16 %v717
        %v1276 = vunpack.c.h.b16 %v717
        %v1277 = vunpack.c.l.b16 %v718
        %v1278 = vunpack.c.h.b16 %v718
        %v1279 = vunpack.c.l.b16 %v719
        %v1280 = vunpack.c.h.b16 %v719
        %v1281 = vunpack.c.l.b16 %v720
        %v1282 = vunpack.c.h.b16 %v720
        %v1283 = vunpack.c.l.b16 %v721
        %v1284 = vunpack.c.h.b16 %v721
        %v1285 = vunpack.c.l.b16 %v722
        %v1286 = vunpack.c.h.b16 %v722
        %v1287 = vunpack.c.l.b16 %v723
        %v1288 = vunpack.c.h.b16 %v723
        %v1289 = vunpack.c.l.b16 %v724
        %v1290 = vunpack.c.h.b16 %v724
        %v1291 = vunpack.c.l.b16 %v725
        %v1292 = vunpack.c.h.b16 %v725
        %v1293 = vunpack.c.l.b16 %v726
        %v1294 = vunpack.c.h.b16 %v726
        %v1295 = vunpack.c.l.b16 %v727
        %v1296 = vunpack.c.h.b16 %v727
        %v1297 = vunpack.c.l.b16 %v728
        %v1298 = vunpack.c.h.b16 %v728
        %v1299 = vunpack.c.l.b16 %v729
        %v1300 = vunpack.c.h.b16 %v729
        %v1301 = vunpack.c.l.b16 %v730
        %v1302 = vunpack.c.h.b16 %v730
        %v1303 = vunpack.c.l.b16 %v731
        %v1304 = vunpack.c.h.b16 %v731
        %v1305 = vunpack.c.l.b16 %v732
        %v1306 = vunpack.c.h.b16 %v732
        %v1307 = vunpack.c.l.b16 %v733
        %v1308 = vunpack.c.h.b16 %v733
        %v1309 = vunpack.c.l.b16 %v734
        %v1310 = vunpack.c.h.b16 %v734
        %v1311 = vunpack.c.l.b16 %v735
        %v1312 = vunpack.c.h.b16 %v735
        %v1313 = vunpack.c.l.b16 %v736
        %v1314 = vunpack.c.h.b16 %v736
        %v1315 = vunpack.c.l.b16 %v737
        %v1316 = vunpack.c.h.b16 %v737
        %v1317 = vunpack.c.l.b16 %v738
        %v1318 = vunpack.c.h.b16 %v738
        %v1319 = vunpack.c.l.b16 %v739
        %v1320 = vunpack.c.h.b16 %v739
        %v1321 = vunpack.c.l.b16 %v740
        %v1322 = vunpack.c.h.b16 %v740
        %v1323 = vunpack.c.l.b16 %v741
        %v1324 = vunpack.c.h.b16 %v741
        %v1325 = vunpack.c.l.b16 %v742
        %v1326 = vunpack.c.h.b16 %v742
        %v1327 = vunpack.c.l.b16 %v743
        %v1328 = vunpack.c.h.b16 %v743
        %v1329 = vunpack.c.l.b16 %v744
        %v1330 = vunpack.c.h.b16 %v744
        %v1331 = vpack.c.b16 %v951, %v947
        %v1332 = vpack.c.b16 %v952, %v948
        %v1333 = vpack.c.b16 %v953, %v949
        %v1334 = vpack.c.b16 %v954, %v950
        %v1335 = vpack.c.b16 %v959, %v955
        %v1336 = vpack.c.b16 %v960, %v956
        %v1337 = vpack.c.b16 %v961, %v957
        %v1338 = vpack.c.b16 %v962, %v958
        %v1339 = vpack.c.b16 %v967, %v963
        %v1340 = vpack.c.b16 %v968, %v964
        %v1341 = vpack.c.b16 %v969, %v965
        %v1342 = vpack.c.b16 %v970, %v966
        %v1343 = vpack.c.b16 %v975, %v971
        %v1344 = vpack.c.b16 %v976, %v972
        %v1345 = vpack.c.b16 %v977, %v973
        %v1346 = vpack.c.b16 %v978, %v974
        %v1347 = vpack.c.b16 %v983, %v979
        %v1348 = vpack.c.b16 %v984, %v980
        %v1349 = vpack.c.b16 %v985, %v981
        %v1350 = vpack.c.b16 %v986, %v982
        %v1351 = vpack.c.b16 %v991, %v987
        %v1352 = vpack.c.b16 %v992, %v988
        %v1353 = vpack.c.b16 %v993, %v989
        %v1354 = vpack.c.b16 %v994, %v990
        %v1355 = vpack.c.b16 %v999, %v995
        %v1356 = vpack.c.b16 %v1000, %v996
        %v1357 = vpack.c.b16 %v1001, %v997
        %v1358 = vpack.c.b16 %v1002, %v998
        %v1359 = vpack.c.b16 %v1007, %v1003
        %v1360 = vpack.c.b16 %v1008, %v1004
        %v1361 = vpack.c.b16 %v1009, %v1005
        %v1362 = vpack.c.b16 %v1010, %v1006
        %v1363 = vpack.c.b16 %v1015, %v1011
        %v1364 = vpack.c.b16 %v1016, %v1012
        %v1365 = vpack.c.b16 %v1017, %v1013
        %v1366 = vpack.c.b16 %v1018, %v1014
        %v1367 = vpack.c.b16 %v1023, %v1019
        %v1368 = vpack.c.b16 %v1024, %v1020
        %v1369 = vpack.c.b16 %v1025, %v1021
        %v1370 = vpack.c.b16 %v1026, %v1022
        %v1371 = vpack.c.b16 %v1031, %v1027
        %v1372 = vpack.c.b16 %v1032, %v1028
        %v1373 = vpack.c.b16 %v1033, %v1029
        %v1374 = vpack.c.b16 %v1034, %v1030
        %v1375 = vpack.c.b16 %v1039, %v1035
        %v1376 = vpack.c.b16 %v1040, %v1036
        %v1377 = vpack.c.b16 %v1041, %v1037
        %v1378 = vpack.c.b16 %v1042, %v1038
        %v1379 = vpack.c.b16 %v1047, %v1043
        %v1380 = vpack.c.b16 %v1048, %v1044
        %v1381 = vpack.c.b16 %v1049, %v1045
        %v1382 = vpack.c.b16 %v1050, %v1046
        %v1383 = vpack.c.b16 %v1055, %v1051
        %v1384 = vpack.c.b16 %v1056, %v1052
        %v1385 = vpack.c.b16 %v1057, %v1053
        %v1386 = vpack.c.b16 %v1058, %v1054
        %v1387 = vpack.c.b16 %v1063, %v1059
        %v1388 = vpack.c.b16 %v1064, %v1060
        %v1389 = vpack.c.b16 %v1065, %v1061
        %v1390 = vpack.c.b16 %v1066, %v1062
        %v1391 = vpack.c.b16 %v1071, %v1067
        %v1392 = vpack.c.b16 %v1072, %v1068
        %v1393 = vpack.c.b16 %v1073, %v1069
        %v1394 = vpack.c.b16 %v1074, %v1070
        %v1395 = vpack.c.b16 %v1079, %v1075
        %v1396 = vpack.c.b16 %v1080, %v1076
        %v1397 = vpack.c.b16 %v1081, %v1077
        %v1398 = vpack.c.b16 %v1082, %v1078
        %v1399 = vpack.c.b16 %v1087, %v1083
        %v1400 = vpack.c.b16 %v1088, %v1084
        %v1401 = vpack.c.b16 %v1089, %v1085
        %v1402 = vpack.c.b16 %v1090, %v1086
        %v1403 = vpack.c.b16 %v1095, %v1091
        %v1404 = vpack.c.b16 %v1096, %v1092
        %v1405 = vpack.c.b16 %v1097, %v1093
        %v1406 = vpack.c.b16 %v1098, %v1094
        %v1407 = vpack.c.b16 %v1103, %v1099
        %v1408 = vpack.c.b16 %v1104, %v1100
        %v1409 = vpack.c.b16 %v1105, %v1101
        %v1410 = vpack.c.b16 %v1106, %v1102
        %v1411 = vpack.c.b16 %v1111, %v1107
        %v1412 = vpack.c.b16 %v1112, %v1108
        %v1413 = vpack.c.b16 %v1113, %v1109
        %v1414 = vpack.c.b16 %v1114, %v1110
        %v1415 = vpack.c.b16 %v1119, %v1115
        %v1416 = vpack.c.b16 %v1120, %v1116
        %v1417 = vpack.c.b16 %v1121, %v1117
        %v1418 = vpack.c.b16 %v1122, %v1118
        %v1419 = vpack.c.b16 %v1127, %v1123
        %v1420 = vpack.c.b16 %v1128, %v1124
        %v1421 = vpack.c.b16 %v1129, %v1125
        %v1422 = vpack.c.b16 %v1130, %v1126
        %v1423 = vpack.c.b16 %v1135, %v1131
        %v1424 = vpack.c.b16 %v1136, %v1132
        %v1425 = vpack.c.b16 %v1137, %v1133
        %v1426 = vpack.c.b16 %v1138, %v1134
        %v1427 = vpack.c.b16 %v1143, %v1139
        %v1428 = vpack.c.b16 %v1144, %v1140
        %v1429 = vpack.c.b16 %v1145, %v1141
        %v1430 = vpack.c.b16 %v1146, %v1142
        %v1431 = vpack.c.b16 %v1151, %v1147
        %v1432 = vpack.c.b16 %v1152, %v1148
        %v1433 = vpack.c.b16 %v1153, %v1149
        %v1434 = vpack.c.b16 %v1154, %v1150
        %v1435 = vpack.c.b16 %v1159, %v1155
        %v1436 = vpack.c.b16 %v1160, %v1156
        %v1437 = vpack.c.b16 %v1161, %v1157
        %v1438 = vpack.c.b16 %v1162, %v1158
        %v1439 = vpack.c.b16 %v1167, %v1163
        %v1440 = vpack.c.b16 %v1168, %v1164
        %v1441 = vpack.c.b16 %v1169, %v1165
        %v1442 = vpack.c.b16 %v1170, %v1166
        %v1443 = vpack.c.b16 %v1175, %v1171
        %v1444 = vpack.c.b16 %v1176, %v1172
        %v1445 = vpack.c.b16 %v1177, %v1173
        %v1446 = vpack.c.b16 %v1178, %v1174
        %v1447 = vpack.c.b16 %v1183, %v1179
        %v1448 = vpack.c.b16 %v1184, %v1180
        %v1449 = vpack.c.b16 %v1185, %v1181
        %v1450 = vpack.c.b16 %v1186, %v1182
        %v1451 = vpack.c.b16 %v1191, %v1187
        %v1452 = vpack.c.b16 %v1192, %v1188
        %v1453 = vpack.c.b16 %v1193, %v1189
        %v1454 = vpack.c.b16 %v1194, %v1190
        %v1455 = vpack.c.b16 %v1199, %v1195
        %v1456 = vpack.c.b16 %v1200, %v1196
        %v1457 = vpack.c.b16 %v1201, %v1197
        %v1458 = vpack.c.b16 %v1202, %v1198
        %v1459 = vpack.c.b16 %v1207, %v1203
        %v1460 = vpack.c.b16 %v1208, %v1204
        %v1461 = vpack.c.b16 %v1209, %v1205
        %v1462 = vpack.c.b16 %v1210, %v1206
        %v1463 = vpack.c.b16 %v1215, %v1211
        %v1464 = vpack.c.b16 %v1216, %v1212
        %v1465 = vpack.c.b16 %v1217, %v1213
        %v1466 = vpack.c.b16 %v1218, %v1214
        %v1467 = vpack.c.b16 %v1223, %v1219
        %v1468 = vpack.c.b16 %v1224, %v1220
        %v1469 = vpack.c.b16 %v1225, %v1221
        %v1470 = vpack.c.b16 %v1226, %v1222
        %v1471 = vpack.c.b16 %v1231, %v1227
        %v1472 = vpack.c.b16 %v1232, %v1228
        %v1473 = vpack.c.b16 %v1233, %v1229
        %v1474 = vpack.c.b16 %v1234, %v1230
        %v1475 = vpack.c.b16 %v1239, %v1235
        %v1476 = vpack.c.b16 %v1240, %v1236
        %v1477 = vpack.c.b16 %v1241, %v1237
        %v1478 = vpack.c.b16 %v1242, %v1238
        %v1479 = vpack.c.b16 %v1247, %v1243
        %v1480 = vpack.c.b16 %v1248, %v1244
        %v1481 = vpack.c.b16 %v1249, %v1245
        %v1482 = vpack.c.b16 %v1250, %v1246
        %v1483 = vpack.c.b16 %v1255, %v1251
        %v1484 = vpack.c.b16 %v1256, %v1252
        %v1485 = vpack.c.b16 %v1257, %v1253
        %v1486 = vpack.c.b16 %v1258, %v1254
        %v1487 = vpack.c.b16 %v1263, %v1259
        %v1488 = vpack.c.b16 %v1264, %v1260
        %v1489 = vpack.c.b16 %v1265, %v1261
        %v1490 = vpack.c.b16 %v1266, %v1262
        %v1491 = vpack.c.b16 %v1271, %v1267
        %v1492 = vpack.c.b16 %v1272, %v1268
        %v1493 = vpack.c.b16 %v1273, %v1269
        %v1494 = vpack.c.b16 %v1274, %v1270
        %v1495 = vpack.c.b16 %v1279, %v1275
        %v1496 = vpack.c.b16 %v1280, %v1276
        %v1497 = vpack.c.b16 %v1281, %v1277
        %v1498 = vpack.c.b16 %v1282, %v1278
        %v1499 = vpack.c.b16 %v1287, %v1283
        %v1500 = vpack.c.b16 %v1288, %v1284
        %v1501 = vpack.c.b16 %v1289, %v1285
        %v1502 = vpack.c.b16 %v1290, %v1286
        %v1503 = vpack.c.b16 %v1295, %v1291
        %v1504 = vpack.c.b16 %v1296, %v1292
        %v1505 = vpack.c.b16 %v1297, %v1293
        %v1506 = vpack.c.b16 %v1298, %v1294
        %v1507 = vpack.c.b16 %v1303, %v1299
        %v1508 = vpack.c.b16 %v1304, %v1300
        %v1509 = vpack.c.b16 %v1305, %v1301
        %v1510 = vpack.c.b16 %v1306, %v1302
        %v1511 = vpack.c.b16 %v1311, %v1307
        %v1512 = vpack.c.b16 %v1312, %v1308
        %v1513 = vpack.c.b16 %v1313, %v1309
        %v1514 = vpack.c.b16 %v1314, %v1310
        %v1515 = vpack.c.b16 %v1319, %v1315
        %v1516 = vpack.c.b16 %v1320, %v1316
        %v1517 = vpack.c.b16 %v1321, %v1317
        %v1518 = vpack.c.b16 %v1322, %v1318
        %v1519 = vpack.c.b16 %v1327, %v1323
        %v1520 = vpack.c.b16 %v1328, %v1324
        %v1521 = vpack.c.b16 %v1329, %v1325
        %v1522 = vpack.c.b16 %v1330, %v1326
        %1715 = vmatpush.bf16.msra.mxu0 %v1359
        %1716 = vmatpush.bf16.msra.mxu0 %v1355
        %1717 = vmatpush.bf16.msra.mxu0 %v1351
        %1718 = vmatpush.bf16.msra.mxu0 %v1347
        %1719 = vmatpush.bf16.msra.mxu0 %v1343
        %1720 = vmatpush.bf16.msra.mxu0 %v1339
        %1721 = vmatpush.bf16.msra.mxu0 %v1335
        %1722 = vmatpush.bf16.msra.mxu0 %v1331
        %1723 = vmatmul.bf16.gmra.mxu0 %v541
        %v1724 = vpop.f32.mrf.mxu0
        %v1725 = vadd.f32 %v747, %v1724
        %v1726 = vpop.f32.mrf.mxu0
        %v1727 = vadd.f32 %v747, %v1726
        %1728 = vmatmul.bf16.gmra.mxu0 %v547
        %v1729 = vpop.f32.mrf.mxu0
        %v1730 = vadd.f32 %v747, %v1729
        %v1731 = vpop.f32.mrf.mxu0
        %v1732 = vadd.f32 %v747, %v1731
        %1733 = vdwg.mxu0
        %1734 = vmatpush.bf16.msra.mxu0 %v1391
        %1735 = vmatpush.bf16.msra.mxu0 %v1387
        %1736 = vmatpush.bf16.msra.mxu0 %v1383
        %1737 = vmatpush.bf16.msra.mxu0 %v1379
        %1738 = vmatpush.bf16.msra.mxu0 %v1375
        %1739 = vmatpush.bf16.msra.mxu0 %v1371
        %1740 = vmatpush.bf16.msra.mxu0 %v1367
        %1741 = vmatpush.bf16.msra.mxu0 %v1363
        %1742 = vmatmul.bf16.gmra.mxu0 %v542
        %v1743 = vpop.f32.mrf.mxu0
        %v1744 = vadd.f32 %v1725, %v1743
        %v1745 = vpop.f32.mrf.mxu0
        %v1746 = vadd.f32 %v1727, %v1745
        %1747 = vmatmul.bf16.gmra.mxu0 %v548
        %v1748 = vpop.f32.mrf.mxu0
        %v1749 = vadd.f32 %v1730, %v1748
        %v1750 = vpop.f32.mrf.mxu0
        %v1751 = vadd.f32 %v1732, %v1750
        %1752 = vdwg.mxu0
        %1753 = vmatpush.bf16.msra.mxu0 %v1423
        %1754 = vmatpush.bf16.msra.mxu0 %v1419
        %1755 = vmatpush.bf16.msra.mxu0 %v1415
        %1756 = vmatpush.bf16.msra.mxu0 %v1411
        %1757 = vmatpush.bf16.msra.mxu0 %v1407
        %1758 = vmatpush.bf16.msra.mxu0 %v1403
        %1759 = vmatpush.bf16.msra.mxu0 %v1399
        %1760 = vmatpush.bf16.msra.mxu0 %v1395
        %1761 = vmatmul.bf16.gmra.mxu0 %v543
        %v1762 = vpop.f32.mrf.mxu0
        %v1763 = vadd.f32 %v1744, %v1762
        %v1764 = vpop.f32.mrf.mxu0
        %v1765 = vadd.f32 %v1746, %v1764
        %1766 = vmatmul.bf16.gmra.mxu0 %v549
        %v1767 = vpop.f32.mrf.mxu0
        %v1768 = vadd.f32 %v1749, %v1767
        %v1769 = vpop.f32.mrf.mxu0
        %v1770 = vadd.f32 %v1751, %v1769
        %1771 = vdwg.mxu0
        %1772 = vmatpush.bf16.msra.mxu0 %v1455
        %1773 = vmatpush.bf16.msra.mxu0 %v1451
        %1774 = vmatpush.bf16.msra.mxu0 %v1447
        %1775 = vmatpush.bf16.msra.mxu0 %v1443
        %1776 = vmatpush.bf16.msra.mxu0 %v1439
        %1777 = vmatpush.bf16.msra.mxu0 %v1435
        %1778 = vmatpush.bf16.msra.mxu0 %v1431
        %1779 = vmatpush.bf16.msra.mxu0 %v1427
        %1780 = vmatmul.bf16.gmra.mxu0 %v544
        %v1781 = vpop.f32.mrf.mxu0
        %v1782 = vadd.f32 %v1763, %v1781
        %v1783 = vpop.f32.mrf.mxu0
        %v1784 = vadd.f32 %v1765, %v1783
        %1785 = vmatmul.bf16.gmra.mxu0 %v550
        %v1786 = vpop.f32.mrf.mxu0
        %v1787 = vadd.f32 %v1768, %v1786
        %v1788 = vpop.f32.mrf.mxu0
        %v1789 = vadd.f32 %v1770, %v1788
        %1790 = vdwg.mxu0
        %1791 = vmatpush.bf16.msra.mxu0 %v1487
        %1792 = vmatpush.bf16.msra.mxu0 %v1483
        %1793 = vmatpush.bf16.msra.mxu0 %v1479
        %1794 = vmatpush.bf16.msra.mxu0 %v1475
        %1795 = vmatpush.bf16.msra.mxu0 %v1471
        %1796 = vmatpush.bf16.msra.mxu0 %v1467
        %1797 = vmatpush.bf16.msra.mxu0 %v1463
        %1798 = vmatpush.bf16.msra.mxu0 %v1459
        %1799 = vmatmul.bf16.gmra.mxu0 %v545
        %v1800 = vpop.f32.mrf.mxu0
        %v1801 = vadd.f32 %v1782, %v1800
        %v1802 = vpop.f32.mrf.mxu0
        %v1803 = vadd.f32 %v1784, %v1802
        %1804 = vmatmul.bf16.gmra.mxu0 %v551
        %v1805 = vpop.f32.mrf.mxu0
        %v1806 = vadd.f32 %v1787, %v1805
        %v1807 = vpop.f32.mrf.mxu0
        %v1808 = vadd.f32 %v1789, %v1807
        %1809 = vdwg.mxu0
        %1810 = vmatpush.bf16.msra.mxu0 %v1519
        %1811 = vmatpush.bf16.msra.mxu0 %v1515
        %1812 = vmatpush.bf16.msra.mxu0 %v1511
        %1813 = vmatpush.bf16.msra.mxu0 %v1507
        %1814 = vmatpush.bf16.msra.mxu0 %v1503
        %1815 = vmatpush.bf16.msra.mxu0 %v1499
        %1816 = vmatpush.bf16.msra.mxu0 %v1495
        %1817 = vmatpush.bf16.msra.mxu0 %v1491
        %1818 = vmatmul.bf16.gmra.mxu0 %v546
        %v1819 = vpop.f32.mrf.mxu0
        %v1820 = vadd.f32 %v1801, %v1819
        %v1821 = vpop.f32.mrf.mxu0
        %v1822 = vadd.f32 %v1803, %v1821
        %1823 = vmatmul.bf16.gmra.mxu0 %v552
        %v1824 = vpop.f32.mrf.mxu0
        %v1825 = vadd.f32 %v1806, %v1824
        %v1826 = vpop.f32.mrf.mxu0
        %v1827 = vadd.f32 %v1808, %v1826
        %1828 = vdwg.mxu0
        %1829 = vmatpush.bf16.msra.mxu0 %v1360
        %1830 = vmatpush.bf16.msra.mxu0 %v1356
        %1831 = vmatpush.bf16.msra.mxu0 %v1352
        %1832 = vmatpush.bf16.msra.mxu0 %v1348
        %1833 = vmatpush.bf16.msra.mxu0 %v1344
        %1834 = vmatpush.bf16.msra.mxu0 %v1340
        %1835 = vmatpush.bf16.msra.mxu0 %v1336
        %1836 = vmatpush.bf16.msra.mxu0 %v1332
        %1837 = vmatmul.bf16.gmra.mxu0 %v541
        %v1838 = vpop.f32.mrf.mxu0
        %v1839 = vadd.f32 %v748, %v1838
        %v1840 = vpop.f32.mrf.mxu0
        %v1841 = vadd.f32 %v748, %v1840
        %1842 = vmatmul.bf16.gmra.mxu0 %v547
        %v1843 = vpop.f32.mrf.mxu0
        %v1844 = vadd.f32 %v748, %v1843
        %v1845 = vpop.f32.mrf.mxu0
        %v1846 = vadd.f32 %v748, %v1845
        %1847 = vdwg.mxu0
        %1848 = vmatpush.bf16.msra.mxu0 %v1392
        %1849 = vmatpush.bf16.msra.mxu0 %v1388
        %1850 = vmatpush.bf16.msra.mxu0 %v1384
        %1851 = vmatpush.bf16.msra.mxu0 %v1380
        %1852 = vmatpush.bf16.msra.mxu0 %v1376
        %1853 = vmatpush.bf16.msra.mxu0 %v1372
        %1854 = vmatpush.bf16.msra.mxu0 %v1368
        %1855 = vmatpush.bf16.msra.mxu0 %v1364
        %1856 = vmatmul.bf16.gmra.mxu0 %v542
        %v1857 = vpop.f32.mrf.mxu0
        %v1858 = vadd.f32 %v1839, %v1857
        %v1859 = vpop.f32.mrf.mxu0
        %v1860 = vadd.f32 %v1841, %v1859
        %1861 = vmatmul.bf16.gmra.mxu0 %v548
        %v1862 = vpop.f32.mrf.mxu0
        %v1863 = vadd.f32 %v1844, %v1862
        %v1864 = vpop.f32.mrf.mxu0
        %v1865 = vadd.f32 %v1846, %v1864
        %1866 = vdwg.mxu0
        %1867 = vmatpush.bf16.msra.mxu0 %v1424
        %1868 = vmatpush.bf16.msra.mxu0 %v1420
        %1869 = vmatpush.bf16.msra.mxu0 %v1416
        %1870 = vmatpush.bf16.msra.mxu0 %v1412
        %1871 = vmatpush.bf16.msra.mxu0 %v1408
        %1872 = vmatpush.bf16.msra.mxu0 %v1404
        %1873 = vmatpush.bf16.msra.mxu0 %v1400
        %1874 = vmatpush.bf16.msra.mxu0 %v1396
        %1875 = vmatmul.bf16.gmra.mxu0 %v543
        %v1876 = vpop.f32.mrf.mxu0
        %v1877 = vadd.f32 %v1858, %v1876
        %v1878 = vpop.f32.mrf.mxu0
        %v1879 = vadd.f32 %v1860, %v1878
        %1880 = vmatmul.bf16.gmra.mxu0 %v549
        %v1881 = vpop.f32.mrf.mxu0
        %v1882 = vadd.f32 %v1863, %v1881
        %v1883 = vpop.f32.mrf.mxu0
        %v1884 = vadd.f32 %v1865, %v1883
        %1885 = vdwg.mxu0
        %1886 = vmatpush.bf16.msra.mxu0 %v1456
        %1887 = vmatpush.bf16.msra.mxu0 %v1452
        %1888 = vmatpush.bf16.msra.mxu0 %v1448
        %1889 = vmatpush.bf16.msra.mxu0 %v1444
        %1890 = vmatpush.bf16.msra.mxu0 %v1440
        %1891 = vmatpush.bf16.msra.mxu0 %v1436
        %1892 = vmatpush.bf16.msra.mxu0 %v1432
        %1893 = vmatpush.bf16.msra.mxu0 %v1428
        %1894 = vmatmul.bf16.gmra.mxu0 %v544
        %v1895 = vpop.f32.mrf.mxu0
        %v1896 = vadd.f32 %v1877, %v1895
        %v1897 = vpop.f32.mrf.mxu0
        %v1898 = vadd.f32 %v1879, %v1897
        %1899 = vmatmul.bf16.gmra.mxu0 %v550
        %v1900 = vpop.f32.mrf.mxu0
        %v1901 = vadd.f32 %v1882, %v1900
        %v1902 = vpop.f32.mrf.mxu0
        %v1903 = vadd.f32 %v1884, %v1902
        %1904 = vdwg.mxu0
        %1905 = vmatpush.bf16.msra.mxu0 %v1488
        %1906 = vmatpush.bf16.msra.mxu0 %v1484
        %1907 = vmatpush.bf16.msra.mxu0 %v1480
        %1908 = vmatpush.bf16.msra.mxu0 %v1476
        %1909 = vmatpush.bf16.msra.mxu0 %v1472
        %1910 = vmatpush.bf16.msra.mxu0 %v1468
        %1911 = vmatpush.bf16.msra.mxu0 %v1464
        %1912 = vmatpush.bf16.msra.mxu0 %v1460
        %1913 = vmatmul.bf16.gmra.mxu0 %v545
        %v1914 = vpop.f32.mrf.mxu0
        %v1915 = vadd.f32 %v1896, %v1914
        %v1916 = vpop.f32.mrf.mxu0
        %v1917 = vadd.f32 %v1898, %v1916
        %1918 = vmatmul.bf16.gmra.mxu0 %v551
        %v1919 = vpop.f32.mrf.mxu0
        %v1920 = vadd.f32 %v1901, %v1919
        %v1921 = vpop.f32.mrf.mxu0
        %v1922 = vadd.f32 %v1903, %v1921
        %1923 = vdwg.mxu0
        %1924 = vmatpush.bf16.msra.mxu0 %v1520
        %1925 = vmatpush.bf16.msra.mxu0 %v1516
        %1926 = vmatpush.bf16.msra.mxu0 %v1512
        %1927 = vmatpush.bf16.msra.mxu0 %v1508
        %1928 = vmatpush.bf16.msra.mxu0 %v1504
        %1929 = vmatpush.bf16.msra.mxu0 %v1500
        %1930 = vmatpush.bf16.msra.mxu0 %v1496
        %1931 = vmatpush.bf16.msra.mxu0 %v1492
        %1932 = vmatmul.bf16.gmra.mxu0 %v546
        %v1933 = vpop.f32.mrf.mxu0
        %v1934 = vadd.f32 %v1915, %v1933
        %v1935 = vpop.f32.mrf.mxu0
        %v1936 = vadd.f32 %v1917, %v1935
        %1937 = vmatmul.bf16.gmra.mxu0 %v552
        %v1938 = vpop.f32.mrf.mxu0
        %v1939 = vadd.f32 %v1920, %v1938
        %v1940 = vpop.f32.mrf.mxu0
        %v1941 = vadd.f32 %v1922, %v1940
        %1942 = vdwg.mxu0
        %1943 = vmatpush.bf16.msra.mxu0 %v1361
        %1944 = vmatpush.bf16.msra.mxu0 %v1357
        %1945 = vmatpush.bf16.msra.mxu0 %v1353
        %1946 = vmatpush.bf16.msra.mxu0 %v1349
        %1947 = vmatpush.bf16.msra.mxu0 %v1345
        %1948 = vmatpush.bf16.msra.mxu0 %v1341
        %1949 = vmatpush.bf16.msra.mxu0 %v1337
        %1950 = vmatpush.bf16.msra.mxu0 %v1333
        %1951 = vmatmul.bf16.gmra.mxu0 %v541
        %v1952 = vpop.f32.mrf.mxu0
        %v1953 = vadd.f32 %v749, %v1952
        %v1954 = vpop.f32.mrf.mxu0
        %v1955 = vadd.f32 %v749, %v1954
        %1956 = vmatmul.bf16.gmra.mxu0 %v547
        %v1957 = vpop.f32.mrf.mxu0
        %v1958 = vadd.f32 %v749, %v1957
        %v1959 = vpop.f32.mrf.mxu0
        %v1960 = vadd.f32 %v749, %v1959
        %1961 = vdwg.mxu0
        %1962 = vmatpush.bf16.msra.mxu0 %v1393
        %1963 = vmatpush.bf16.msra.mxu0 %v1389
        %1964 = vmatpush.bf16.msra.mxu0 %v1385
        %1965 = vmatpush.bf16.msra.mxu0 %v1381
        %1966 = vmatpush.bf16.msra.mxu0 %v1377
        %1967 = vmatpush.bf16.msra.mxu0 %v1373
        %1968 = vmatpush.bf16.msra.mxu0 %v1369
        %1969 = vmatpush.bf16.msra.mxu0 %v1365
        %1970 = vmatmul.bf16.gmra.mxu0 %v542
        %v1971 = vpop.f32.mrf.mxu0
        %v1972 = vadd.f32 %v1953, %v1971
        %v1973 = vpop.f32.mrf.mxu0
        %v1974 = vadd.f32 %v1955, %v1973
        %1975 = vmatmul.bf16.gmra.mxu0 %v548
        %v1976 = vpop.f32.mrf.mxu0
        %v1977 = vadd.f32 %v1958, %v1976
        %v1978 = vpop.f32.mrf.mxu0
        %v1979 = vadd.f32 %v1960, %v1978
        %1980 = vdwg.mxu0
        %1981 = vmatpush.bf16.msra.mxu0 %v1425
        %1982 = vmatpush.bf16.msra.mxu0 %v1421
        %1983 = vmatpush.bf16.msra.mxu0 %v1417
        %1984 = vmatpush.bf16.msra.mxu0 %v1413
        %1985 = vmatpush.bf16.msra.mxu0 %v1409
        %1986 = vmatpush.bf16.msra.mxu0 %v1405
        %1987 = vmatpush.bf16.msra.mxu0 %v1401
        %1988 = vmatpush.bf16.msra.mxu0 %v1397
        %1989 = vmatmul.bf16.gmra.mxu0 %v543
        %v1990 = vpop.f32.mrf.mxu0
        %v1991 = vadd.f32 %v1972, %v1990
        %v1992 = vpop.f32.mrf.mxu0
        %v1993 = vadd.f32 %v1974, %v1992
        %1994 = vmatmul.bf16.gmra.mxu0 %v549
        %v1995 = vpop.f32.mrf.mxu0
        %v1996 = vadd.f32 %v1977, %v1995
        %v1997 = vpop.f32.mrf.mxu0
        %v1998 = vadd.f32 %v1979, %v1997
        %1999 = vdwg.mxu0
        %2000 = vmatpush.bf16.msra.mxu0 %v1457
        %2001 = vmatpush.bf16.msra.mxu0 %v1453
        %2002 = vmatpush.bf16.msra.mxu0 %v1449
        %2003 = vmatpush.bf16.msra.mxu0 %v1445
        %2004 = vmatpush.bf16.msra.mxu0 %v1441
        %2005 = vmatpush.bf16.msra.mxu0 %v1437
        %2006 = vmatpush.bf16.msra.mxu0 %v1433
        %2007 = vmatpush.bf16.msra.mxu0 %v1429
        %2008 = vmatmul.bf16.gmra.mxu0 %v544
        %v2009 = vpop.f32.mrf.mxu0
        %v2010 = vadd.f32 %v1991, %v2009
        %v2011 = vpop.f32.mrf.mxu0
        %v2012 = vadd.f32 %v1993, %v2011
        %2013 = vmatmul.bf16.gmra.mxu0 %v550
        %v2014 = vpop.f32.mrf.mxu0
        %v2015 = vadd.f32 %v1996, %v2014
        %v2016 = vpop.f32.mrf.mxu0
        %v2017 = vadd.f32 %v1998, %v2016
        %2018 = vdwg.mxu0
        %2019 = vmatpush.bf16.msra.mxu0 %v1489
        %2020 = vmatpush.bf16.msra.mxu0 %v1485
        %2021 = vmatpush.bf16.msra.mxu0 %v1481
        %2022 = vmatpush.bf16.msra.mxu0 %v1477
        %2023 = vmatpush.bf16.msra.mxu0 %v1473
        %2024 = vmatpush.bf16.msra.mxu0 %v1469
        %2025 = vmatpush.bf16.msra.mxu0 %v1465
        %2026 = vmatpush.bf16.msra.mxu0 %v1461
        %2027 = vmatmul.bf16.gmra.mxu0 %v545
        %v2028 = vpop.f32.mrf.mxu0
        %v2029 = vadd.f32 %v2010, %v2028
        %v2030 = vpop.f32.mrf.mxu0
        %v2031 = vadd.f32 %v2012, %v2030
        %2032 = vmatmul.bf16.gmra.mxu0 %v551
        %v2033 = vpop.f32.mrf.mxu0
        %v2034 = vadd.f32 %v2015, %v2033
        %v2035 = vpop.f32.mrf.mxu0
        %v2036 = vadd.f32 %v2017, %v2035
        %2037 = vdwg.mxu0
        %2038 = vmatpush.bf16.msra.mxu0 %v1521
        %2039 = vmatpush.bf16.msra.mxu0 %v1517
        %2040 = vmatpush.bf16.msra.mxu0 %v1513
        %2041 = vmatpush.bf16.msra.mxu0 %v1509
        %2042 = vmatpush.bf16.msra.mxu0 %v1505
        %2043 = vmatpush.bf16.msra.mxu0 %v1501
        %2044 = vmatpush.bf16.msra.mxu0 %v1497
        %2045 = vmatpush.bf16.msra.mxu0 %v1493
        %2046 = vmatmul.bf16.gmra.mxu0 %v546
        %v2047 = vpop.f32.mrf.mxu0
        %v2048 = vadd.f32 %v2029, %v2047
        %v2049 = vpop.f32.mrf.mxu0
        %v2050 = vadd.f32 %v2031, %v2049
        %2051 = vmatmul.bf16.gmra.mxu0 %v552
        %v2052 = vpop.f32.mrf.mxu0
        %v2053 = vadd.f32 %v2034, %v2052
        %v2054 = vpop.f32.mrf.mxu0
        %v2055 = vadd.f32 %v2036, %v2054
        %2056 = vdwg.mxu0
        %2057 = vmatpush.bf16.msra.mxu0 %v1362
        %2058 = vmatpush.bf16.msra.mxu0 %v1358
        %2059 = vmatpush.bf16.msra.mxu0 %v1354
        %2060 = vmatpush.bf16.msra.mxu0 %v1350
        %2061 = vmatpush.bf16.msra.mxu0 %v1346
        %2062 = vmatpush.bf16.msra.mxu0 %v1342
        %2063 = vmatpush.bf16.msra.mxu0 %v1338
        %2064 = vmatpush.bf16.msra.mxu0 %v1334
        %2065 = vmatmul.bf16.gmra.mxu0 %v541
        %v2066 = vpop.f32.mrf.mxu0
        %v2067 = vadd.f32 %v750, %v2066
        %v2068 = vpop.f32.mrf.mxu0
        %v2069 = vadd.f32 %v750, %v2068
        %2070 = vmatmul.bf16.gmra.mxu0 %v547
        %v2071 = vpop.f32.mrf.mxu0
        %v2072 = vadd.f32 %v750, %v2071
        %v2073 = vpop.f32.mrf.mxu0
        %v2074 = vadd.f32 %v750, %v2073
        %2075 = vdwg.mxu0
        %2076 = vmatpush.bf16.msra.mxu0 %v1394
        %2077 = vmatpush.bf16.msra.mxu0 %v1390
        %2078 = vmatpush.bf16.msra.mxu0 %v1386
        %2079 = vmatpush.bf16.msra.mxu0 %v1382
        %2080 = vmatpush.bf16.msra.mxu0 %v1378
        %2081 = vmatpush.bf16.msra.mxu0 %v1374
        %2082 = vmatpush.bf16.msra.mxu0 %v1370
        %2083 = vmatpush.bf16.msra.mxu0 %v1366
        %2084 = vmatmul.bf16.gmra.mxu0 %v542
        %v2085 = vpop.f32.mrf.mxu0
        %v2086 = vadd.f32 %v2067, %v2085
        %v2087 = vpop.f32.mrf.mxu0
        %v2088 = vadd.f32 %v2069, %v2087
        %2089 = vmatmul.bf16.gmra.mxu0 %v548
        %v2090 = vpop.f32.mrf.mxu0
        %v2091 = vadd.f32 %v2072, %v2090
        %v2092 = vpop.f32.mrf.mxu0
        %v2093 = vadd.f32 %v2074, %v2092
        %2094 = vdwg.mxu0
        %2095 = vmatpush.bf16.msra.mxu0 %v1426
        %2096 = vmatpush.bf16.msra.mxu0 %v1422
        %2097 = vmatpush.bf16.msra.mxu0 %v1418
        %2098 = vmatpush.bf16.msra.mxu0 %v1414
        %2099 = vmatpush.bf16.msra.mxu0 %v1410
        %2100 = vmatpush.bf16.msra.mxu0 %v1406
        %2101 = vmatpush.bf16.msra.mxu0 %v1402
        %2102 = vmatpush.bf16.msra.mxu0 %v1398
        %2103 = vmatmul.bf16.gmra.mxu0 %v543
        %v2104 = vpop.f32.mrf.mxu0
        %v2105 = vadd.f32 %v2086, %v2104
        %v2106 = vpop.f32.mrf.mxu0
        %v2107 = vadd.f32 %v2088, %v2106
        %2108 = vmatmul.bf16.gmra.mxu0 %v549
        %v2109 = vpop.f32.mrf.mxu0
        %v2110 = vadd.f32 %v2091, %v2109
        %v2111 = vpop.f32.mrf.mxu0
        %v2112 = vadd.f32 %v2093, %v2111
        %2113 = vdwg.mxu0
        %2114 = vmatpush.bf16.msra.mxu0 %v1458
        %2115 = vmatpush.bf16.msra.mxu0 %v1454
        %2116 = vmatpush.bf16.msra.mxu0 %v1450
        %2117 = vmatpush.bf16.msra.mxu0 %v1446
        %2118 = vmatpush.bf16.msra.mxu0 %v1442
        %2119 = vmatpush.bf16.msra.mxu0 %v1438
        %2120 = vmatpush.bf16.msra.mxu0 %v1434
        %2121 = vmatpush.bf16.msra.mxu0 %v1430
        %2122 = vmatmul.bf16.gmra.mxu0 %v544
        %v2123 = vpop.f32.mrf.mxu0
        %v2124 = vadd.f32 %v2105, %v2123
        %v2125 = vpop.f32.mrf.mxu0
        %v2126 = vadd.f32 %v2107, %v2125
        %2127 = vmatmul.bf16.gmra.mxu0 %v550
        %v2128 = vpop.f32.mrf.mxu0
        %v2129 = vadd.f32 %v2110, %v2128
        %v2130 = vpop.f32.mrf.mxu0
        %v2131 = vadd.f32 %v2112, %v2130
        %2132 = vdwg.mxu0
        %2133 = vmatpush.bf16.msra.mxu0 %v1490
        %2134 = vmatpush.bf16.msra.mxu0 %v1486
        %2135 = vmatpush.bf16.msra.mxu0 %v1482
        %2136 = vmatpush.bf16.msra.mxu0 %v1478
        %2137 = vmatpush.bf16.msra.mxu0 %v1474
        %2138 = vmatpush.bf16.msra.mxu0 %v1470
        %2139 = vmatpush.bf16.msra.mxu0 %v1466
        %2140 = vmatpush.bf16.msra.mxu0 %v1462
        %2141 = vmatmul.bf16.gmra.mxu0 %v545
        %v2142 = vpop.f32.mrf.mxu0
        %v2143 = vadd.f32 %v2124, %v2142
        %v2144 = vpop.f32.mrf.mxu0
        %v2145 = vadd.f32 %v2126, %v2144
        %2146 = vmatmul.bf16.gmra.mxu0 %v551
        %v2147 = vpop.f32.mrf.mxu0
        %v2148 = vadd.f32 %v2129, %v2147
        %v2149 = vpop.f32.mrf.mxu0
        %v2150 = vadd.f32 %v2131, %v2149
        %2151 = vdwg.mxu0
        %2152 = vmatpush.bf16.msra.mxu0 %v1522
        %2153 = vmatpush.bf16.msra.mxu0 %v1518
        %2154 = vmatpush.bf16.msra.mxu0 %v1514
        %2155 = vmatpush.bf16.msra.mxu0 %v1510
        %2156 = vmatpush.bf16.msra.mxu0 %v1506
        %2157 = vmatpush.bf16.msra.mxu0 %v1502
        %2158 = vmatpush.bf16.msra.mxu0 %v1498
        %2159 = vmatpush.bf16.msra.mxu0 %v1494
        %2160 = vmatmul.bf16.gmra.mxu0 %v546
        %v2161 = vpop.f32.mrf.mxu0
        %v2162 = vadd.f32 %v2143, %v2161
        %v2163 = vpop.f32.mrf.mxu0
        %v2164 = vadd.f32 %v2145, %v2163
        %2165 = vmatmul.bf16.gmra.mxu0 %v552
        %v2166 = vpop.f32.mrf.mxu0
        %v2167 = vadd.f32 %v2148, %v2166
        %v2168 = vpop.f32.mrf.mxu0
        %v2169 = vadd.f32 %v2150, %v2168
        %2170 = vdwg.mxu0
        %v2171 = vmax.f32 %v1820, 0.0
        %v2172 = vmax.f32 %v1934, 0.0
        %v2173 = vmax.f32 %v2048, 0.0
        %v2174 = vmax.f32 %v2162, 0.0
        %v2175 = vmax.f32 %v1822, 0.0
        %v2176 = vmax.f32 %v1936, 0.0
        %v2177 = vmax.f32 %v2050, 0.0
        %v2178 = vmax.f32 %v2164, 0.0
        %v2179 = vmax.f32 %v1825, 0.0
        %v2180 = vmax.f32 %v1939, 0.0
        %v2181 = vmax.f32 %v2053, 0.0
        %v2182 = vmax.f32 %v2167, 0.0
        %v2183 = vmax.f32 %v1827, 0.0
        %v2184 = vmax.f32 %v1941, 0.0
        %v2185 = vmax.f32 %v2055, 0.0
        %v2186 = vmax.f32 %v2169, 0.0
        %v2187 = vpack.c.bf16 %v2175, %v2171
        %v2188 = vpack.c.bf16 %v2176, %v2172
        %v2189 = vpack.c.bf16 %v2177, %v2173
        %v2190 = vpack.c.bf16 %v2178, %v2174
        %v2191 = vpack.c.bf16 %v2183, %v2179
        %v2192 = vpack.c.bf16 %v2184, %v2180
        %v2193 = vpack.c.bf16 %v2185, %v2181
        %v2194 = vpack.c.bf16 %v2186, %v2182
        %v2195 = vld [vmem:[#allocation6] sm:$0xff]
        %v2196 = vld [vmem:[#allocation6 + $0x8] sm:$0xff]
        %v2197 = vld [vmem:[#allocation6 + $0x10] sm:$0xff]
        %v2198 = vld [vmem:[#allocation6 + $0x18] sm:$0xff]
        %v2199 = vld [vmem:[#allocation6 + $0x20] sm:$0xff]
        %v2200 = vld [vmem:[#allocation6 + $0x28] sm:$0xff]
        %v2201 = vld [vmem:[#allocation6 + $0x30] sm:$0xff]
        %v2202 = vld [vmem:[#allocation6 + $0x38] sm:$0xff]
        %v2203 = vld [vmem:[#allocation6 + $0x40] sm:$0xff]
        %v2204 = vld [vmem:[#allocation6 + $0x48] sm:$0xff]
        %v2205 = vld [vmem:[#allocation6 + $0x50] sm:$0xff]
        %v2206 = vld [vmem:[#allocation6 + $0x58] sm:$0xff]
        %v2207 = vld [vmem:[#allocation6 + $0x60] sm:$0xff]
        %v2208 = vld [vmem:[#allocation6 + $0x68] sm:$0xff]
        %v2209 = vld [vmem:[#allocation6 + $0x70] sm:$0xff]
        %v2210 = vld [vmem:[#allocation6 + $0x78] sm:$0xff]
        %v2211 = vld [vmem:[#allocation6 + $0x80] sm:$0xff]
        %v2212 = vld [vmem:[#allocation6 + $0x88] sm:$0xff]
        %v2213 = vld [vmem:[#allocation6 + $0x90] sm:$0xff]
        %v2214 = vld [vmem:[#allocation6 + $0x98] sm:$0xff]
        %v2215 = vld [vmem:[#allocation6 + $0xa0] sm:$0xff]
        %v2216 = vld [vmem:[#allocation6 + $0xa8] sm:$0xff]
        %v2217 = vld [vmem:[#allocation6 + $0xb0] sm:$0xff]
        %v2218 = vld [vmem:[#allocation6 + $0xb8] sm:$0xff]
        %v2219 = vld [vmem:[#allocation6 + $0xc0] sm:$0xff]
        %v2220 = vld [vmem:[#allocation6 + $0xc8] sm:$0xff]
        %v2221 = vld [vmem:[#allocation6 + $0xd0] sm:$0xff]
        %v2222 = vld [vmem:[#allocation6 + $0xd8] sm:$0xff]
        %v2223 = vld [vmem:[#allocation6 + $0xe0] sm:$0xff]
        %v2224 = vld [vmem:[#allocation6 + $0xe8] sm:$0xff]
        %v2225 = vld [vmem:[#allocation6 + $0xf0] sm:$0xff]
        %v2226 = vld [vmem:[#allocation6 + $0xf8] sm:$0xff]
        %v2227 = vld [vmem:[#allocation6 + $0x100] sm:$0xff]
        %v2228 = vld [vmem:[#allocation6 + $0x108] sm:$0xff]
        %v2229 = vld [vmem:[#allocation6 + $0x110] sm:$0xff]
        %v2230 = vld [vmem:[#allocation6 + $0x118] sm:$0xff]
        %v2231 = vld [vmem:[#allocation6 + $0x120] sm:$0xff]
        %v2232 = vld [vmem:[#allocation6 + $0x128] sm:$0xff]
        %v2233 = vld [vmem:[#allocation6 + $0x130] sm:$0xff]
        %v2234 = vld [vmem:[#allocation6 + $0x138] sm:$0xff]
        %v2235 = vld [vmem:[#allocation6 + $0x140] sm:$0xff]
        %v2236 = vld [vmem:[#allocation6 + $0x148] sm:$0xff]
        %v2237 = vld [vmem:[#allocation6 + $0x150] sm:$0xff]
        %v2238 = vld [vmem:[#allocation6 + $0x158] sm:$0xff]
        %v2239 = vld [vmem:[#allocation6 + $0x160] sm:$0xff]
        %v2240 = vld [vmem:[#allocation6 + $0x168] sm:$0xff]
        %v2241 = vld [vmem:[#allocation6 + $0x170] sm:$0xff]
        %v2242 = vld [vmem:[#allocation6 + $0x178] sm:$0xff]
        %v2243 = vld [vmem:[#allocation6 + $0x180] sm:$0xff]
        %v2244 = vld [vmem:[#allocation6 + $0x188] sm:$0xff]
        %v2245 = vld [vmem:[#allocation6 + $0x190] sm:$0xff]
        %v2246 = vld [vmem:[#allocation6 + $0x198] sm:$0xff]
        %v2247 = vld [vmem:[#allocation6 + $0x1a0] sm:$0xff]
        %v2248 = vld [vmem:[#allocation6 + $0x1a8] sm:$0xff]
        %v2249 = vld [vmem:[#allocation6 + $0x1b0] sm:$0xff]
        %v2250 = vld [vmem:[#allocation6 + $0x1b8] sm:$0xff]
        %v2251 = vld [vmem:[#allocation6 + $0x1c0] sm:$0xff]
        %v2252 = vld [vmem:[#allocation6 + $0x1c8] sm:$0xff]
        %v2253 = vld [vmem:[#allocation6 + $0x1d0] sm:$0xff]
        %v2254 = vld [vmem:[#allocation6 + $0x1d8] sm:$0xff]
        %v2255 = vld [vmem:[#allocation6 + $0x1e0] sm:$0xff]
        %v2256 = vld [vmem:[#allocation6 + $0x1e8] sm:$0xff]
        %v2257 = vld [vmem:[#allocation6 + $0x1f0] sm:$0xff]
        %v2258 = vld [vmem:[#allocation6 + $0x1f8] sm:$0xff]
        %v2259 = vld [vmem:[%s4] sm:$0x3]
        %v2261 = vperm.slane %v2259, 0
        %v2262 = vperm.slane %v2259, 1
        %v2329 = vunpack.c.l.b16 %v2195
        %v2330 = vunpack.c.h.b16 %v2195
        %v2331 = vunpack.c.l.b16 %v2196
        %v2332 = vunpack.c.h.b16 %v2196
        %v2333 = vunpack.c.l.b16 %v2197
        %v2334 = vunpack.c.h.b16 %v2197
        %v2335 = vunpack.c.l.b16 %v2198
        %v2336 = vunpack.c.h.b16 %v2198
        %v2337 = vunpack.c.l.b16 %v2199
        %v2338 = vunpack.c.h.b16 %v2199
        %v2339 = vunpack.c.l.b16 %v2200
        %v2340 = vunpack.c.h.b16 %v2200
        %v2341 = vunpack.c.l.b16 %v2201
        %v2342 = vunpack.c.h.b16 %v2201
        %v2343 = vunpack.c.l.b16 %v2202
        %v2344 = vunpack.c.h.b16 %v2202
        %v2345 = vunpack.c.l.b16 %v2203
        %v2346 = vunpack.c.h.b16 %v2203
        %v2347 = vunpack.c.l.b16 %v2204
        %v2348 = vunpack.c.h.b16 %v2204
        %v2349 = vunpack.c.l.b16 %v2205
        %v2350 = vunpack.c.h.b16 %v2205
        %v2351 = vunpack.c.l.b16 %v2206
        %v2352 = vunpack.c.h.b16 %v2206
        %v2353 = vunpack.c.l.b16 %v2207
        %v2354 = vunpack.c.h.b16 %v2207
        %v2355 = vunpack.c.l.b16 %v2208
        %v2356 = vunpack.c.h.b16 %v2208
        %v2357 = vunpack.c.l.b16 %v2209
        %v2358 = vunpack.c.h.b16 %v2209
        %v2359 = vunpack.c.l.b16 %v2210
        %v2360 = vunpack.c.h.b16 %v2210
        %v2361 = vunpack.c.l.b16 %v2211
        %v2362 = vunpack.c.h.b16 %v2211
        %v2363 = vunpack.c.l.b16 %v2212
        %v2364 = vunpack.c.h.b16 %v2212
        %v2365 = vunpack.c.l.b16 %v2213
        %v2366 = vunpack.c.h.b16 %v2213
        %v2367 = vunpack.c.l.b16 %v2214
        %v2368 = vunpack.c.h.b16 %v2214
        %v2369 = vunpack.c.l.b16 %v2215
        %v2370 = vunpack.c.h.b16 %v2215
        %v2371 = vunpack.c.l.b16 %v2216
        %v2372 = vunpack.c.h.b16 %v2216
        %v2373 = vunpack.c.l.b16 %v2217
        %v2374 = vunpack.c.h.b16 %v2217
        %v2375 = vunpack.c.l.b16 %v2218
        %v2376 = vunpack.c.h.b16 %v2218
        %v2377 = vunpack.c.l.b16 %v2219
        %v2378 = vunpack.c.h.b16 %v2219
        %v2379 = vunpack.c.l.b16 %v2220
        %v2380 = vunpack.c.h.b16 %v2220
        %v2381 = vunpack.c.l.b16 %v2221
        %v2382 = vunpack.c.h.b16 %v2221
        %v2383 = vunpack.c.l.b16 %v2222
        %v2384 = vunpack.c.h.b16 %v2222
        %v2385 = vunpack.c.l.b16 %v2223
        %v2386 = vunpack.c.h.b16 %v2223
        %v2387 = vunpack.c.l.b16 %v2224
        %v2388 = vunpack.c.h.b16 %v2224
        %v2389 = vunpack.c.l.b16 %v2225
        %v2390 = vunpack.c.h.b16 %v2225
        %v2391 = vunpack.c.l.b16 %v2226
        %v2392 = vunpack.c.h.b16 %v2226
        %v2393 = vunpack.c.l.b16 %v2227
        %v2394 = vunpack.c.h.b16 %v2227
        %v2395 = vunpack.c.l.b16 %v2228
        %v2396 = vunpack.c.h.b16 %v2228
        %v2397 = vunpack.c.l.b16 %v2229
        %v2398 = vunpack.c.h.b16 %v2229
        %v2399 = vunpack.c.l.b16 %v2230
        %v2400 = vunpack.c.h.b16 %v2230
        %v2401 = vunpack.c.l.b16 %v2231
        %v2402 = vunpack.c.h.b16 %v2231
        %v2403 = vunpack.c.l.b16 %v2232
        %v2404 = vunpack.c.h.b16 %v2232
        %v2405 = vunpack.c.l.b16 %v2233
        %v2406 = vunpack.c.h.b16 %v2233
        %v2407 = vunpack.c.l.b16 %v2234
        %v2408 = vunpack.c.h.b16 %v2234
        %v2409 = vunpack.c.l.b16 %v2235
        %v2410 = vunpack.c.h.b16 %v2235
        %v2411 = vunpack.c.l.b16 %v2236
        %v2412 = vunpack.c.h.b16 %v2236
        %v2413 = vunpack.c.l.b16 %v2237
        %v2414 = vunpack.c.h.b16 %v2237
        %v2415 = vunpack.c.l.b16 %v2238
        %v2416 = vunpack.c.h.b16 %v2238
        %v2417 = vunpack.c.l.b16 %v2239
        %v2418 = vunpack.c.h.b16 %v2239
        %v2419 = vunpack.c.l.b16 %v2240
        %v2420 = vunpack.c.h.b16 %v2240
        %v2421 = vunpack.c.l.b16 %v2241
        %v2422 = vunpack.c.h.b16 %v2241
        %v2423 = vunpack.c.l.b16 %v2242
        %v2424 = vunpack.c.h.b16 %v2242
        %v2425 = vunpack.c.l.b16 %v2243
        %v2426 = vunpack.c.h.b16 %v2243
        %v2427 = vunpack.c.l.b16 %v2244
        %v2428 = vunpack.c.h.b16 %v2244
        %v2429 = vunpack.c.l.b16 %v2245
        %v2430 = vunpack.c.h.b16 %v2245
        %v2431 = vunpack.c.l.b16 %v2246
        %v2432 = vunpack.c.h.b16 %v2246
        %v2433 = vunpack.c.l.b16 %v2247
        %v2434 = vunpack.c.h.b16 %v2247
        %v2435 = vunpack.c.l.b16 %v2248
        %v2436 = vunpack.c.h.b16 %v2248
        %v2437 = vunpack.c.l.b16 %v2249
        %v2438 = vunpack.c.h.b16 %v2249
        %v2439 = vunpack.c.l.b16 %v2250
        %v2440 = vunpack.c.h.b16 %v2250
        %v2441 = vunpack.c.l.b16 %v2251
        %v2442 = vunpack.c.h.b16 %v2251
        %v2443 = vunpack.c.l.b16 %v2252
        %v2444 = vunpack.c.h.b16 %v2252
        %v2445 = vunpack.c.l.b16 %v2253
        %v2446 = vunpack.c.h.b16 %v2253
        %v2447 = vunpack.c.l.b16 %v2254
        %v2448 = vunpack.c.h.b16 %v2254
        %v2449 = vunpack.c.l.b16 %v2255
        %v2450 = vunpack.c.h.b16 %v2255
        %v2451 = vunpack.c.l.b16 %v2256
        %v2452 = vunpack.c.h.b16 %v2256
        %v2453 = vunpack.c.l.b16 %v2257
        %v2454 = vunpack.c.h.b16 %v2257
        %v2455 = vunpack.c.l.b16 %v2258
        %v2456 = vunpack.c.h.b16 %v2258
        %v2457 = vpack.c.b16 %v2331, %v2329
        %v2458 = vpack.c.b16 %v2332, %v2330
        %v2459 = vpack.c.b16 %v2335, %v2333
        %v2460 = vpack.c.b16 %v2336, %v2334
        %v2461 = vpack.c.b16 %v2339, %v2337
        %v2462 = vpack.c.b16 %v2340, %v2338
        %v2463 = vpack.c.b16 %v2343, %v2341
        %v2464 = vpack.c.b16 %v2344, %v2342
        %v2465 = vpack.c.b16 %v2347, %v2345
        %v2466 = vpack.c.b16 %v2348, %v2346
        %v2467 = vpack.c.b16 %v2351, %v2349
        %v2468 = vpack.c.b16 %v2352, %v2350
        %v2469 = vpack.c.b16 %v2355, %v2353
        %v2470 = vpack.c.b16 %v2356, %v2354
        %v2471 = vpack.c.b16 %v2359, %v2357
        %v2472 = vpack.c.b16 %v2360, %v2358
        %v2473 = vpack.c.b16 %v2363, %v2361
        %v2474 = vpack.c.b16 %v2364, %v2362
        %v2475 = vpack.c.b16 %v2367, %v2365
        %v2476 = vpack.c.b16 %v2368, %v2366
        %v2477 = vpack.c.b16 %v2371, %v2369
        %v2478 = vpack.c.b16 %v2372, %v2370
        %v2479 = vpack.c.b16 %v2375, %v2373
        %v2480 = vpack.c.b16 %v2376, %v2374
        %v2481 = vpack.c.b16 %v2379, %v2377
        %v2482 = vpack.c.b16 %v2380, %v2378
        %v2483 = vpack.c.b16 %v2383, %v2381
        %v2484 = vpack.c.b16 %v2384, %v2382
        %v2485 = vpack.c.b16 %v2387, %v2385
        %v2486 = vpack.c.b16 %v2388, %v2386
        %v2487 = vpack.c.b16 %v2391, %v2389
        %v2488 = vpack.c.b16 %v2392, %v2390
        %v2489 = vpack.c.b16 %v2395, %v2393
        %v2490 = vpack.c.b16 %v2396, %v2394
        %v2491 = vpack.c.b16 %v2399, %v2397
        %v2492 = vpack.c.b16 %v2400, %v2398
        %v2493 = vpack.c.b16 %v2403, %v2401
        %v2494 = vpack.c.b16 %v2404, %v2402
        %v2495 = vpack.c.b16 %v2407, %v2405
        %v2496 = vpack.c.b16 %v2408, %v2406
        %v2497 = vpack.c.b16 %v2411, %v2409
        %v2498 = vpack.c.b16 %v2412, %v2410
        %v2499 = vpack.c.b16 %v2415, %v2413
        %v2500 = vpack.c.b16 %v2416, %v2414
        %v2501 = vpack.c.b16 %v2419, %v2417
        %v2502 = vpack.c.b16 %v2420, %v2418
        %v2503 = vpack.c.b16 %v2423, %v2421
        %v2504 = vpack.c.b16 %v2424, %v2422
        %v2505 = vpack.c.b16 %v2427, %v2425
        %v2506 = vpack.c.b16 %v2428, %v2426
        %v2507 = vpack.c.b16 %v2431, %v2429
        %v2508 = vpack.c.b16 %v2432, %v2430
        %v2509 = vpack.c.b16 %v2435, %v2433
        %v2510 = vpack.c.b16 %v2436, %v2434
        %v2511 = vpack.c.b16 %v2439, %v2437
        %v2512 = vpack.c.b16 %v2440, %v2438
        %v2513 = vpack.c.b16 %v2443, %v2441
        %v2514 = vpack.c.b16 %v2444, %v2442
        %v2515 = vpack.c.b16 %v2447, %v2445
        %v2516 = vpack.c.b16 %v2448, %v2446
        %v2517 = vpack.c.b16 %v2451, %v2449
        %v2518 = vpack.c.b16 %v2452, %v2450
        %v2519 = vpack.c.b16 %v2455, %v2453
        %v2520 = vpack.c.b16 %v2456, %v2454
        %2585 = vmatpush.bf16.msra.mxu0 %v2471
        %2586 = vmatpush.bf16.msra.mxu0 %v2469
        %2587 = vmatpush.bf16.msra.mxu0 %v2467
        %2588 = vmatpush.bf16.msra.mxu0 %v2465
        %2589 = vmatpush.bf16.msra.mxu0 %v2463
        %2590 = vmatpush.bf16.msra.mxu0 %v2461
        %2591 = vmatpush.bf16.msra.mxu0 %v2459
        %2592 = vmatpush.bf16.msra.mxu0 %v2457
        %2593 = vmatmul.bf16.gmra.mxu0 %v2187
        %v2594 = vpop.f32.mrf.mxu0
        %v2595 = vadd.f32 %v2261, %v2594
        %v2596 = vpop.f32.mrf.mxu0
        %v2597 = vadd.f32 %v2261, %v2596
        %2598 = vmatmul.bf16.gmra.mxu0 %v2191
        %v2599 = vpop.f32.mrf.mxu0
        %v2600 = vadd.f32 %v2261, %v2599
        %v2601 = vpop.f32.mrf.mxu0
        %v2602 = vadd.f32 %v2261, %v2601
        %2603 = vdwg.mxu0
        %2604 = vmatpush.bf16.msra.mxu0 %v2487
        %2605 = vmatpush.bf16.msra.mxu0 %v2485
        %2606 = vmatpush.bf16.msra.mxu0 %v2483
        %2607 = vmatpush.bf16.msra.mxu0 %v2481
        %2608 = vmatpush.bf16.msra.mxu0 %v2479
        %2609 = vmatpush.bf16.msra.mxu0 %v2477
        %2610 = vmatpush.bf16.msra.mxu0 %v2475
        %2611 = vmatpush.bf16.msra.mxu0 %v2473
        %2612 = vmatmul.bf16.gmra.mxu0 %v2188
        %v2613 = vpop.f32.mrf.mxu0
        %v2614 = vadd.f32 %v2595, %v2613
        %v2615 = vpop.f32.mrf.mxu0
        %v2616 = vadd.f32 %v2597, %v2615
        %2617 = vmatmul.bf16.gmra.mxu0 %v2192
        %v2618 = vpop.f32.mrf.mxu0
        %v2619 = vadd.f32 %v2600, %v2618
        %v2620 = vpop.f32.mrf.mxu0
        %v2621 = vadd.f32 %v2602, %v2620
        %2622 = vdwg.mxu0
        %2623 = vmatpush.bf16.msra.mxu0 %v2503
        %2624 = vmatpush.bf16.msra.mxu0 %v2501
        %2625 = vmatpush.bf16.msra.mxu0 %v2499
        %2626 = vmatpush.bf16.msra.mxu0 %v2497
        %2627 = vmatpush.bf16.msra.mxu0 %v2495
        %2628 = vmatpush.bf16.msra.mxu0 %v2493
        %2629 = vmatpush.bf16.msra.mxu0 %v2491
        %2630 = vmatpush.bf16.msra.mxu0 %v2489
        %2631 = vmatmul.bf16.gmra.mxu0 %v2189
        %v2632 = vpop.f32.mrf.mxu0
        %v2633 = vadd.f32 %v2614, %v2632
        %v2634 = vpop.f32.mrf.mxu0
        %v2635 = vadd.f32 %v2616, %v2634
        %2636 = vmatmul.bf16.gmra.mxu0 %v2193
        %v2637 = vpop.f32.mrf.mxu0
        %v2638 = vadd.f32 %v2619, %v2637
        %v2639 = vpop.f32.mrf.mxu0
        %v2640 = vadd.f32 %v2621, %v2639
        %2641 = vdwg.mxu0
        %2642 = vmatpush.bf16.msra.mxu0 %v2519
        %2643 = vmatpush.bf16.msra.mxu0 %v2517
        %2644 = vmatpush.bf16.msra.mxu0 %v2515
        %2645 = vmatpush.bf16.msra.mxu0 %v2513
        %2646 = vmatpush.bf16.msra.mxu0 %v2511
        %2647 = vmatpush.bf16.msra.mxu0 %v2509
        %2648 = vmatpush.bf16.msra.mxu0 %v2507
        %2649 = vmatpush.bf16.msra.mxu0 %v2505
        %2650 = vmatmul.bf16.gmra.mxu0 %v2190
        %v2651 = vpop.f32.mrf.mxu0
        %v2652 = vadd.f32 %v2633, %v2651
        %v2653 = vpop.f32.mrf.mxu0
        %v2654 = vadd.f32 %v2635, %v2653
        %2655 = vmatmul.bf16.gmra.mxu0 %v2194
        %v2656 = vpop.f32.mrf.mxu0
        %v2657 = vadd.f32 %v2638, %v2656
        %v2658 = vpop.f32.mrf.mxu0
        %v2659 = vadd.f32 %v2640, %v2658
        %2660 = vdwg.mxu0
        %2661 = vmatpush.bf16.msra.mxu0 %v2472
        %2662 = vmatpush.bf16.msra.mxu0 %v2470
        %2663 = vmatpush.bf16.msra.mxu0 %v2468
        %2664 = vmatpush.bf16.msra.mxu0 %v2466
        %2665 = vmatpush.bf16.msra.mxu0 %v2464
        %2666 = vmatpush.bf16.msra.mxu0 %v2462
        %2667 = vmatpush.bf16.msra.mxu0 %v2460
        %2668 = vmatpush.bf16.msra.mxu0 %v2458
        %2669 = vmatmul.bf16.gmra.mxu0 %v2187
        %v2670 = vpop.f32.mrf.mxu0
        %v2671 = vadd.f32 %v2262, %v2670
        %v2672 = vpop.f32.mrf.mxu0
        %v2673 = vadd.f32 %v2262, %v2672
        %2674 = vmatmul.bf16.gmra.mxu0 %v2191
        %v2675 = vpop.f32.mrf.mxu0
        %v2676 = vadd.f32 %v2262, %v2675
        %v2677 = vpop.f32.mrf.mxu0
        %v2678 = vadd.f32 %v2262, %v2677
        %2679 = vdwg.mxu0
        %2680 = vmatpush.bf16.msra.mxu0 %v2488
        %2681 = vmatpush.bf16.msra.mxu0 %v2486
        %2682 = vmatpush.bf16.msra.mxu0 %v2484
        %2683 = vmatpush.bf16.msra.mxu0 %v2482
        %2684 = vmatpush.bf16.msra.mxu0 %v2480
        %2685 = vmatpush.bf16.msra.mxu0 %v2478
        %2686 = vmatpush.bf16.msra.mxu0 %v2476
        %2687 = vmatpush.bf16.msra.mxu0 %v2474
        %2688 = vmatmul.bf16.gmra.mxu0 %v2188
        %v2689 = vpop.f32.mrf.mxu0
        %v2690 = vadd.f32 %v2671, %v2689
        %v2691 = vpop.f32.mrf.mxu0
        %v2692 = vadd.f32 %v2673, %v2691
        %2693 = vmatmul.bf16.gmra.mxu0 %v2192
        %v2694 = vpop.f32.mrf.mxu0
        %v2695 = vadd.f32 %v2676, %v2694
        %v2696 = vpop.f32.mrf.mxu0
        %v2697 = vadd.f32 %v2678, %v2696
        %2698 = vdwg.mxu0
        %2699 = vmatpush.bf16.msra.mxu0 %v2504
        %2700 = vmatpush.bf16.msra.mxu0 %v2502
        %2701 = vmatpush.bf16.msra.mxu0 %v2500
        %2702 = vmatpush.bf16.msra.mxu0 %v2498
        %2703 = vmatpush.bf16.msra.mxu0 %v2496
        %2704 = vmatpush.bf16.msra.mxu0 %v2494
        %2705 = vmatpush.bf16.msra.mxu0 %v2492
        %2706 = vmatpush.bf16.msra.mxu0 %v2490
        %2707 = vmatmul.bf16.gmra.mxu0 %v2189
        %v2708 = vpop.f32.mrf.mxu0
        %v2709 = vadd.f32 %v2690, %v2708
        %v2710 = vpop.f32.mrf.mxu0
        %v2711 = vadd.f32 %v2692, %v2710
        %2712 = vmatmul.bf16.gmra.mxu0 %v2193
        %v2713 = vpop.f32.mrf.mxu0
        %v2714 = vadd.f32 %v2695, %v2713
        %v2715 = vpop.f32.mrf.mxu0
        %v2716 = vadd.f32 %v2697, %v2715
        %2717 = vdwg.mxu0
        %2718 = vmatpush.bf16.msra.mxu0 %v2520
        %2719 = vmatpush.bf16.msra.mxu0 %v2518
        %2720 = vmatpush.bf16.msra.mxu0 %v2516
        %2721 = vmatpush.bf16.msra.mxu0 %v2514
        %2722 = vmatpush.bf16.msra.mxu0 %v2512
        %2723 = vmatpush.bf16.msra.mxu0 %v2510
        %2724 = vmatpush.bf16.msra.mxu0 %v2508
        %2725 = vmatpush.bf16.msra.mxu0 %v2506
        %2726 = vmatmul.bf16.gmra.mxu0 %v2190
        %v2727 = vpop.f32.mrf.mxu0
        %v2728 = vadd.f32 %v2709, %v2727
        %v2729 = vpop.f32.mrf.mxu0
        %v2730 = vadd.f32 %v2711, %v2729
        %2731 = vmatmul.bf16.gmra.mxu0 %v2194
        %v2732 = vpop.f32.mrf.mxu0
        %v2733 = vadd.f32 %v2714, %v2732
        %v2734 = vpop.f32.mrf.mxu0
        %v2735 = vadd.f32 %v2716, %v2734
        %2736 = vdwg.mxu0
        %v2737 = vmax.f32 %v2652, 0.0
        %v2738 = vmax.f32 %v2728, 0.0
        %v2739 = vmax.f32 %v2654, 0.0
        %v2740 = vmax.f32 %v2730, 0.0
        %v2741 = vmax.f32 %v2657, 0.0
        %v2742 = vmax.f32 %v2733, 0.0
        %v2743 = vmax.f32 %v2659, 0.0
        %v2744 = vmax.f32 %v2735, 0.0
        %v2745 = vadd.f32 %v2737, %v2738
        %2746 = vadd.xlane.f32.xlu0 %v2745
        %v2747 = vpop.xlane.xlu0 %2746
        %v2748 = vadd.f32 %v2739, %v2740
        %2749 = vadd.xlane.f32.xlu0 %v2748
        %v2750 = vpop.xlane.xlu0 %2749
        %v2751 = vadd.f32 %v2741, %v2742
        %2752 = vadd.xlane.f32.xlu0 %v2751
        %v2753 = vpop.xlane.xlu0 %2752
        %v2754 = vadd.f32 %v2743, %v2744
        %2755 = vadd.xlane.f32.xlu0 %v2754
        %v2756 = vpop.xlane.xlu0 %2755
        %v2757 = vrcp.pop 256.0
        %v2758 = vmul.f32 256.0, %v2757
        %v2759 = vsub.f32 1.0, %v2758
        %v2760 = vmul.f32 %v2757, %v2759
        %v2761 = vadd.f32 %v2757, %v2760
        %vm2762 = vweird.f32 %v2757
        %v2763 = vsel %vm2762, %v2757, %v2761
        %v2764 = vmul.f32 %v2747, %v2763
        %v2765 = vmul.f32 %v2750, %v2763
        %v2766 = vmul.f32 %v2753, %v2763
        %v2767 = vmul.f32 %v2756, %v2763
        %v2768 = vsub.f32 %v2737, %v2764
        %v2769 = vsub.f32 %v2738, %v2764
        %v2770 = vsub.f32 %v2739, %v2765
        %v2771 = vsub.f32 %v2740, %v2765
        %v2772 = vsub.f32 %v2741, %v2766
        %v2773 = vsub.f32 %v2742, %v2766
        %v2774 = vsub.f32 %v2743, %v2767
        %v2775 = vsub.f32 %v2744, %v2767
        %v2776 = vmul.f32 %v2768, %v2768
        %v2777 = vmul.f32 %v2769, %v2769
        %v2778 = vmul.f32 %v2770, %v2770
        %v2779 = vmul.f32 %v2771, %v2771
        %v2780 = vmul.f32 %v2772, %v2772
        %v2781 = vmul.f32 %v2773, %v2773
        %v2782 = vmul.f32 %v2774, %v2774
        %v2783 = vmul.f32 %v2775, %v2775
        %v2784 = vadd.f32 %v2776, %v2777
        %2785 = vadd.xlane.f32.xlu0 %v2784
        %v2786 = vpop.xlane.xlu0 %2785
        %v2787 = vadd.f32 %v2778, %v2779
        %2788 = vadd.xlane.f32.xlu0 %v2787
        %v2789 = vpop.xlane.xlu0 %2788
        %v2790 = vadd.f32 %v2780, %v2781
        %2791 = vadd.xlane.f32.xlu0 %v2790
        %v2792 = vpop.xlane.xlu0 %2791
        %v2793 = vadd.f32 %v2782, %v2783
        %2794 = vadd.xlane.f32.xlu0 %v2793
        %v2795 = vpop.xlane.xlu0 %2794
        %v2796 = vmul.f32 %v2786, %v2763
        %v2797 = vmul.f32 %v2789, %v2763
        %v2798 = vmul.f32 %v2792, %v2763
        %v2799 = vmul.f32 %v2795, %v2763
        %v2800 = vadd.f32 %v2796, 1e-05
        %v2801 = vadd.f32 %v2797, 1e-05
        %v2802 = vadd.f32 %v2798, 1e-05
        %v2803 = vadd.f32 %v2799, 1e-05
        %v2804 = vrsqrt.pop %v2800
        %v2805 = vmul.f32 %v2804, %v2800
        %v2806 = vmul.f32 %v2805, %v2804
        %v2807 = vmul.f32 0.5, %v2806
        %v2808 = vsub.f32 1.5, %v2807
        %v2809 = vmul.f32 %v2804, %v2808
        %vm2810 = vweird.f32 %v2800
        %vm2811 = vweird.f32 %v2804
        %vm2812 = vmor %vm2810, %vm2811
        %v2813 = vsel %vm2812, %v2804, %v2809
        %v2814 = vrsqrt.pop %v2801
        %v2815 = vmul.f32 %v2814, %v2801
        %v2816 = vmul.f32 %v2815, %v2814
        %v2817 = vmul.f32 0.5, %v2816
        %v2818 = vsub.f32 1.5, %v2817
        %v2819 = vmul.f32 %v2814, %v2818
        %vm2820 = vweird.f32 %v2801
        %vm2821 = vweird.f32 %v2814
        %vm2822 = vmor %vm2820, %vm2821
        %v2823 = vsel %vm2822, %v2814, %v2819
        %v2824 = vrsqrt.pop %v2802
        %v2825 = vmul.f32 %v2824, %v2802
        %v2826 = vmul.f32 %v2825, %v2824
        %v2827 = vmul.f32 0.5, %v2826
        %v2828 = vsub.f32 1.5, %v2827
        %v2829 = vmul.f32 %v2824, %v2828
        %vm2830 = vweird.f32 %v2802
        %vm2831 = vweird.f32 %v2824
        %vm2832 = vmor %vm2830, %vm2831
        %v2833 = vsel %vm2832, %v2824, %v2829
        %v2834 = vrsqrt.pop %v2803
        %v2835 = vmul.f32 %v2834, %v2803
        %v2836 = vmul.f32 %v2835, %v2834
        %v2837 = vmul.f32 0.5, %v2836
        %v2838 = vsub.f32 1.5, %v2837
        %v2839 = vmul.f32 %v2834, %v2838
        %vm2840 = vweird.f32 %v2803
        %vm2841 = vweird.f32 %v2834
        %vm2842 = vmor %vm2840, %vm2841
        %v2843 = vsel %vm2842, %v2834, %v2839
        %v2844 = vmul.f32 %v2768, %v2813
        %v2845 = vmul.f32 %v2769, %v2813
        %v2846 = vmul.f32 %v2770, %v2823
        %v2847 = vmul.f32 %v2771, %v2823
        %v2848 = vmul.f32 %v2772, %v2833
        %v2849 = vmul.f32 %v2773, %v2833
        %v2850 = vmul.f32 %v2774, %v2843
        %v2851 = vmul.f32 %v2775, %v2843
        %v2852 = vld [vmem:[%s5] sm:$0x3]
        %v2854 = vperm.slane %v2852, 0
        %v2855 = vperm.slane %v2852, 1
        %v2858 = vmul.f32 %v2844, %v2854
        %v2859 = vmul.f32 %v2845, %v2855
        %v2860 = vmul.f32 %v2846, %v2854
        %v2861 = vmul.f32 %v2847, %v2855
        %v2862 = vmul.f32 %v2848, %v2854
        %v2863 = vmul.f32 %v2849, %v2855
        %v2864 = vmul.f32 %v2850, %v2854
        %v2865 = vmul.f32 %v2851, %v2855
        %v2866 = vld [vmem:[%s6] sm:$0x3]
        %v2868 = vperm.slane %v2866, 0
        %v2869 = vperm.slane %v2866, 1
        %v2872 = vadd.f32 %v2858, %v2868
        %v2873 = vadd.f32 %v2859, %v2869
        %v2874 = vadd.f32 %v2860, %v2868
        %v2875 = vadd.f32 %v2861, %v2869
        %v2876 = vadd.f32 %v2862, %v2868
        %v2877 = vadd.f32 %v2863, %v2869
        %v2878 = vadd.f32 %v2864, %v2868
        %v2879 = vadd.f32 %v2865, %v2869
        %v2880 = vpack.c.bf16 %v2874, %v2872
        %v2881 = vpack.c.bf16 %v2875, %v2873
        %v2882 = vpack.c.bf16 %v2878, %v2876
        %v2883 = vpack.c.bf16 %v2879, %v2877
        %v2884 = vld [vmem:[#allocation7] sm:$0xf]
        %v2885 = vld [vmem:[#allocation7 + $0x4] sm:$0xf]
        %v2886 = vld [vmem:[#allocation7 + $0x8] sm:$0xf]
        %v2887 = vld [vmem:[#allocation7 + $0xc] sm:$0xf]
        %v2888 = vld [vmem:[#allocation7 + $0x10] sm:$0xf]
        %v2889 = vld [vmem:[#allocation7 + $0x14] sm:$0xf]
        %v2890 = vld [vmem:[#allocation7 + $0x18] sm:$0xf]
        %v2891 = vld [vmem:[#allocation7 + $0x1c] sm:$0xf]
        %v2892 = vld [vmem:[#allocation7 + $0x20] sm:$0xf]
        %v2893 = vld [vmem:[#allocation7 + $0x24] sm:$0xf]
        %v2894 = vld [vmem:[#allocation7 + $0x28] sm:$0xf]
        %v2895 = vld [vmem:[#allocation7 + $0x2c] sm:$0xf]
        %v2896 = vld [vmem:[#allocation7 + $0x30] sm:$0xf]
        %v2897 = vld [vmem:[#allocation7 + $0x34] sm:$0xf]
        %v2898 = vld [vmem:[#allocation7 + $0x38] sm:$0xf]
        %v2899 = vld [vmem:[#allocation7 + $0x3c] sm:$0xf]
        %v2900 = vld [vmem:[#allocation7 + $0x40] sm:$0xf]
        %v2901 = vld [vmem:[#allocation7 + $0x44] sm:$0xf]
        %v2902 = vld [vmem:[#allocation7 + $0x48] sm:$0xf]
        %v2903 = vld [vmem:[#allocation7 + $0x4c] sm:$0xf]
        %v2904 = vld [vmem:[#allocation7 + $0x50] sm:$0xf]
        %v2905 = vld [vmem:[#allocation7 + $0x54] sm:$0xf]
        %v2906 = vld [vmem:[#allocation7 + $0x58] sm:$0xf]
        %v2907 = vld [vmem:[#allocation7 + $0x5c] sm:$0xf]
        %v2908 = vld [vmem:[#allocation7 + $0x60] sm:$0xf]
        %v2909 = vld [vmem:[#allocation7 + $0x64] sm:$0xf]
        %v2910 = vld [vmem:[#allocation7 + $0x68] sm:$0xf]
        %v2911 = vld [vmem:[#allocation7 + $0x6c] sm:$0xf]
        %v2912 = vld [vmem:[#allocation7 + $0x70] sm:$0xf]
        %v2913 = vld [vmem:[#allocation7 + $0x74] sm:$0xf]
        %v2914 = vld [vmem:[#allocation7 + $0x78] sm:$0xf]
        %v2915 = vld [vmem:[#allocation7 + $0x7c] sm:$0xf]
        %v2916 = vld [vmem:[%s8] sm:$0x1]
        %v2918 = vperm.slane %v2916, 0
        %v2952 = vunpack.c.l.b16 %v2884
        %v2953 = vunpack.c.l.b16 %v2885
        %v2954 = vunpack.c.l.b16 %v2886
        %v2955 = vunpack.c.l.b16 %v2887
        %v2956 = vunpack.c.l.b16 %v2888
        %v2957 = vunpack.c.l.b16 %v2889
        %v2958 = vunpack.c.l.b16 %v2890
        %v2959 = vunpack.c.l.b16 %v2891
        %v2960 = vunpack.c.l.b16 %v2892
        %v2961 = vunpack.c.l.b16 %v2893
        %v2962 = vunpack.c.l.b16 %v2894
        %v2963 = vunpack.c.l.b16 %v2895
        %v2964 = vunpack.c.l.b16 %v2896
        %v2965 = vunpack.c.l.b16 %v2897
        %v2966 = vunpack.c.l.b16 %v2898
        %v2967 = vunpack.c.l.b16 %v2899
        %v2968 = vunpack.c.l.b16 %v2900
        %v2969 = vunpack.c.l.b16 %v2901
        %v2970 = vunpack.c.l.b16 %v2902
        %v2971 = vunpack.c.l.b16 %v2903
        %v2972 = vunpack.c.l.b16 %v2904
        %v2973 = vunpack.c.l.b16 %v2905
        %v2974 = vunpack.c.l.b16 %v2906
        %v2975 = vunpack.c.l.b16 %v2907
        %v2976 = vunpack.c.l.b16 %v2908
        %v2977 = vunpack.c.l.b16 %v2909
        %v2978 = vunpack.c.l.b16 %v2910
        %v2979 = vunpack.c.l.b16 %v2911
        %v2980 = vunpack.c.l.b16 %v2912
        %v2981 = vunpack.c.l.b16 %v2913
        %v2982 = vunpack.c.l.b16 %v2914
        %v2983 = vunpack.c.l.b16 %v2915
        %v2984 = vpack.c.b16 %v2953, %v2952
        %v2985 = vpack.c.b16 %v2955, %v2954
        %v2986 = vpack.c.b16 %v2957, %v2956
        %v2987 = vpack.c.b16 %v2959, %v2958
        %v2988 = vpack.c.b16 %v2961, %v2960
        %v2989 = vpack.c.b16 %v2963, %v2962
        %v2990 = vpack.c.b16 %v2965, %v2964
        %v2991 = vpack.c.b16 %v2967, %v2966
        %v2992 = vpack.c.b16 %v2969, %v2968
        %v2993 = vpack.c.b16 %v2971, %v2970
        %v2994 = vpack.c.b16 %v2973, %v2972
        %v2995 = vpack.c.b16 %v2975, %v2974
        %v2996 = vpack.c.b16 %v2977, %v2976
        %v2997 = vpack.c.b16 %v2979, %v2978
        %v2998 = vpack.c.b16 %v2981, %v2980
        %v2999 = vpack.c.b16 %v2983, %v2982
        %3016 = vmatpush.bf16.msra.mxu0 %v2991
        %3017 = vmatpush.bf16.msra.mxu0 %v2990
        %3018 = vmatpush.bf16.msra.mxu0 %v2989
        %3019 = vmatpush.bf16.msra.mxu0 %v2988
        %3020 = vmatpush.bf16.msra.mxu0 %v2987
        %3021 = vmatpush.bf16.msra.mxu0 %v2986
        %3022 = vmatpush.bf16.msra.mxu0 %v2985
        %3023 = vmatpush.bf16.msra.mxu0 %v2984
        %3024 = vmatmul.bf16.gmra.mxu0 %v2880
        %v3025 = vpop.f32.mrf.mxu0
        %v3026 = vadd.f32 %v2918, %v3025
        %v3027 = vpop.f32.mrf.mxu0
        %v3028 = vadd.f32 %v2918, %v3027
        %3029 = vmatmul.bf16.gmra.mxu0 %v2882
        %v3030 = vpop.f32.mrf.mxu0
        %v3031 = vadd.f32 %v2918, %v3030
        %v3032 = vpop.f32.mrf.mxu0
        %v3033 = vadd.f32 %v2918, %v3032
        %3034 = vdwg.mxu0
        %3035 = vmatpush.bf16.msra.mxu0 %v2999
        %3036 = vmatpush.bf16.msra.mxu0 %v2998
        %3037 = vmatpush.bf16.msra.mxu0 %v2997
        %3038 = vmatpush.bf16.msra.mxu0 %v2996
        %3039 = vmatpush.bf16.msra.mxu0 %v2995
        %3040 = vmatpush.bf16.msra.mxu0 %v2994
        %3041 = vmatpush.bf16.msra.mxu0 %v2993
        %3042 = vmatpush.bf16.msra.mxu0 %v2992
        %3043 = vmatmul.bf16.gmra.mxu0 %v2881
        %v3044 = vpop.f32.mrf.mxu0
        %v3045 = vadd.f32 %v3026, %v3044
        %v3046 = vpop.f32.mrf.mxu0
        %v3047 = vadd.f32 %v3028, %v3046
        %3048 = vmatmul.bf16.gmra.mxu0 %v2883
        %v3049 = vpop.f32.mrf.mxu0
        %v3050 = vadd.f32 %v3031, %v3049
        %v3051 = vpop.f32.mrf.mxu0
        %v3052 = vadd.f32 %v3033, %v3051
        %3053 = vdwg.mxu0
        %v3054 = vmax.f32 %v3045, 0.0
        %v3055 = vmax.f32 %v3047, 0.0
        %v3056 = vmax.f32 %v3050, 0.0
        %v3057 = vmax.f32 %v3052, 0.0
        %v3058 = vpack.c.bf16 %v3055, %v3054
        %v3059 = vpack.c.bf16 %v3057, %v3056
        %v3060 = vld [vmem:[%s9] sm:$0xf]
        %v3061 = vld [vmem:[%s9 + $0x4] sm:$0xf]
        %v3062 = vld [vmem:[%s9 + $0x8] sm:$0xf]
        %v3063 = vld [vmem:[%s9 + $0xc] sm:$0xf]
        %v3064 = vld [vmem:[%s9 + $0x10] sm:$0xf]
        %v3065 = vld [vmem:[%s9 + $0x14] sm:$0xf]
        %v3066 = vld [vmem:[%s9 + $0x18] sm:$0xf]
        %v3067 = vld [vmem:[%s9 + $0x1c] sm:$0xf]
        %v3068 = vld [vmem:[%s9 + $0x20] sm:$0xf]
        %v3069 = vld [vmem:[%s9 + $0x24] sm:$0xf]
        %v3070 = vld [vmem:[%s9 + $0x28] sm:$0xf]
        %v3071 = vld [vmem:[%s9 + $0x2c] sm:$0xf]
        %v3072 = vld [vmem:[%s9 + $0x30] sm:$0xf]
        %v3073 = vld [vmem:[%s9 + $0x34] sm:$0xf]
        %v3074 = vld [vmem:[%s9 + $0x38] sm:$0xf]
        %v3075 = vld [vmem:[%s9 + $0x3c] sm:$0xf]
        %v3076 = vld [vmem:[%s10] sm:$0x1]
        %v3078 = vperm.slane %v3076, 0
        %v3096 = vunpack.c.l.b16 %v3060
        %v3097 = vunpack.c.l.b16 %v3061
        %v3098 = vunpack.c.l.b16 %v3062
        %v3099 = vunpack.c.l.b16 %v3063
        %v3100 = vunpack.c.l.b16 %v3064
        %v3101 = vunpack.c.l.b16 %v3065
        %v3102 = vunpack.c.l.b16 %v3066
        %v3103 = vunpack.c.l.b16 %v3067
        %v3104 = vunpack.c.l.b16 %v3068
        %v3105 = vunpack.c.l.b16 %v3069
        %v3106 = vunpack.c.l.b16 %v3070
        %v3107 = vunpack.c.l.b16 %v3071
        %v3108 = vunpack.c.l.b16 %v3072
        %v3109 = vunpack.c.l.b16 %v3073
        %v3110 = vunpack.c.l.b16 %v3074
        %v3111 = vunpack.c.l.b16 %v3075
        %v3112 = vpack.c.b16 %v3097, %v3096
        %v3113 = vpack.c.b16 %v3099, %v3098
        %v3114 = vpack.c.b16 %v3101, %v3100
        %v3115 = vpack.c.b16 %v3103, %v3102
        %v3116 = vpack.c.b16 %v3105, %v3104
        %v3117 = vpack.c.b16 %v3107, %v3106
        %v3118 = vpack.c.b16 %v3109, %v3108
        %v3119 = vpack.c.b16 %v3111, %v3110
        %3128 = vmatpush.bf16.msra.mxu0 %v3119
        %3129 = vmatpush.bf16.msra.mxu0 %v3118
        %3130 = vmatpush.bf16.msra.mxu0 %v3117
        %3131 = vmatpush.bf16.msra.mxu0 %v3116
        %3132 = vmatpush.bf16.msra.mxu0 %v3115
        %3133 = vmatpush.bf16.msra.mxu0 %v3114
        %3134 = vmatpush.bf16.msra.mxu0 %v3113
        %3135 = vmatpush.bf16.msra.mxu0 %v3112
        %3136 = vmatmul.bf16.gmra.mxu0 %v3058
        %v3137 = vpop.f32.mrf.mxu0
        %v3138 = vadd.f32 %v3078, %v3137
        %v3139 = vpop.f32.mrf.mxu0
        %v3140 = vadd.f32 %v3078, %v3139
        %3141 = vmatmul.bf16.gmra.mxu0 %v3059
        %v3142 = vpop.f32.mrf.mxu0
        %v3143 = vadd.f32 %v3078, %v3142
        %v3144 = vpop.f32.mrf.mxu0
        %v3145 = vadd.f32 %v3078, %v3144
        %3146 = vdwg.mxu0
        %v3147 = vmax.f32 %v3138, 0.0
        %v3148 = vmax.f32 %v3140, 0.0
        %v3149 = vmax.f32 %v3143, 0.0
        %v3150 = vmax.f32 %v3145, 0.0
        %v3151 = vpack.c.bf16 %v3148, %v3147
        %v3152 = vpack.c.bf16 %v3150, %v3149
        %v3153 = vld [vmem:[%s11] sm:$0xf]
        %v3154 = vld [vmem:[%s11 + $0x4] sm:$0xf]
        %v3155 = vld [vmem:[%s11 + $0x8] sm:$0xf]
        %v3156 = vld [vmem:[%s11 + $0xc] sm:$0xf]
        %v3157 = vld [vmem:[%s11 + $0x10] sm:$0xf]
        %v3158 = vld [vmem:[%s11 + $0x14] sm:$0xf]
        %v3159 = vld [vmem:[%s11 + $0x18] sm:$0xf]
        %v3160 = vld [vmem:[%s11 + $0x1c] sm:$0xf]
        %v3161 = vld [vmem:[%s12] sm:$0x1]
        %v3163 = vperm.slane %v3161, 0
        %v3173 = vunpack.c.l.b16 %v3153
        %v3174 = vunpack.c.l.b16 %v3154
        %v3175 = vunpack.c.l.b16 %v3155
        %v3176 = vunpack.c.l.b16 %v3156
        %v3177 = vunpack.c.l.b16 %v3157
        %v3178 = vunpack.c.l.b16 %v3158
        %v3179 = vunpack.c.l.b16 %v3159
        %v3180 = vunpack.c.l.b16 %v3160
        %v3181 = vpack.c.b16 %v3174, %v3173
        %v3182 = vpack.c.b16 %v3176, %v3175
        %v3183 = vpack.c.b16 %v3178, %v3177
        %v3184 = vpack.c.b16 %v3180, %v3179
        %vm3189 = vcmask 523264
        %v3191 = vsel %vm3189, %v3151, 0
        %v3194 = vsel %vm3189, %v3152, 0
        %3196 = vmatpush.bf16.msra.mxu0 0
        %3197 = vmatpush.bf16.msra.mxu0 0
        %3198 = vmatpush.bf16.msra.mxu0 0
        %3199 = vmatpush.bf16.msra.mxu0 0
        %3200 = vmatpush.bf16.msra.mxu0 %v3184
        %3201 = vmatpush.bf16.msra.mxu0 %v3183
        %3202 = vmatpush.bf16.msra.mxu0 %v3182
        %3203 = vmatpush.bf16.msra.mxu0 %v3181
        %3204 = vmatmul.bf16.gmra.mxu0 %v3191
        %v3205 = vpop.f32.mrf.mxu0
        %v3206 = vadd.f32 %v3163, %v3205
        %v3207 = vpop.f32.mrf.mxu0
        %v3208 = vadd.f32 %v3163, %v3207
        %3209 = vmatmul.bf16.gmra.mxu0 %v3194
        %v3210 = vpop.f32.mrf.mxu0
        %v3211 = vadd.f32 %v3163, %v3210
        %v3212 = vpop.f32.mrf.mxu0
        %v3213 = vadd.f32 %v3163, %v3212
        %3214 = vdwg.mxu0
        %3219 = vrot.lane.b32.xlu0 %v3206, 1
        %v3220 = vpop.permute.xlu0 %3219
        %3221 = vrot.lane.b32.xlu0 %v3208, 1
        %v3222 = vpop.permute.xlu0 %3221
        %3223 = vrot.lane.b32.xlu0 %v3211, 1
        %v3224 = vpop.permute.xlu0 %3223
        %3225 = vrot.lane.b32.xlu0 %v3213, 1
        %v3226 = vpop.permute.xlu0 %3225
        %v3231 = vsub.f32 %v3206, %v3220
        %v3232 = vsub.f32 %v3208, %v3222
        %v3233 = vsub.f32 %v3211, %v3224
        %v3234 = vsub.f32 %v3213, %v3226
        %v3235 = vsub.f32 0.0, %v3231
        %v3236 = vsub.f32 0.0, %v3232
        %v3237 = vsub.f32 0.0, %v3233
        %v3238 = vsub.f32 0.0, %v3234
        %v3239 = vmul.f32 %v3235, 1.442695
        %v3240 = vpow.pop %v3239
        %v3241 = vmul.f32 %v3236, 1.442695
        %v3242 = vpow.pop %v3241
        %v3243 = vmul.f32 %v3237, 1.442695
        %v3244 = vpow.pop %v3243
        %v3245 = vmul.f32 %v3238, 1.442695
        %v3246 = vpow.pop %v3245
        %v3247 = vadd.f32 %v3240, 1.0
        %v3248 = vadd.f32 %v3242, 1.0
        %v3249 = vadd.f32 %v3244, 1.0
        %v3250 = vadd.f32 %v3246, 1.0
        %v3251 = vrcp.pop %v3247
        %v3252 = vmul.f32 %v3247, %v3251
        %v3253 = vsub.f32 1.0, %v3252
        %v3254 = vmul.f32 %v3251, %v3253
        %v3255 = vadd.f32 %v3251, %v3254
        %vm3256 = vweird.f32 %v3247
        %vm3257 = vweird.f32 %v3251
        %vm3258 = vmor %vm3256, %vm3257
        %v3259 = vsel %vm3258, %v3251, %v3255
        %v3260 = vand.u32 2147483647, %v3247
        %vm3261 = vcmp.eq.f32.partialorder %v3260, 8.507059e+37
        %v3262 = vand.u32 %v3247, 2147483648
        %v3263 = vor.u32 1.1754944e-38, %v3262
        %v3264 = vsel %vm3261, %v3263, %v3259
        %v3265 = vmul.f32 1.0, %v3264
        %v3266 = vrcp.pop %v3248
        %v3267 = vmul.f32 %v3248, %v3266
        %v3268 = vsub.f32 1.0, %v3267
        %v3269 = vmul.f32 %v3266, %v3268
        %v3270 = vadd.f32 %v3266, %v3269
        %vm3271 = vweird.f32 %v3248
        %vm3272 = vweird.f32 %v3266
        %vm3273 = vmor %vm3271, %vm3272
        %v3274 = vsel %vm3273, %v3266, %v3270
        %v3275 = vand.u32 2147483647, %v3248
        %vm3276 = vcmp.eq.f32.partialorder %v3275, 8.507059e+37
        %v3277 = vand.u32 %v3248, 2147483648
        %v3278 = vor.u32 1.1754944e-38, %v3277
        %v3279 = vsel %vm3276, %v3278, %v3274
        %v3280 = vmul.f32 1.0, %v3279
        %v3281 = vrcp.pop %v3249
        %v3282 = vmul.f32 %v3249, %v3281
        %v3283 = vsub.f32 1.0, %v3282
        %v3284 = vmul.f32 %v3281, %v3283
        %v3285 = vadd.f32 %v3281, %v3284
        %vm3286 = vweird.f32 %v3249
        %vm3287 = vweird.f32 %v3281
        %vm3288 = vmor %vm3286, %vm3287
        %v3289 = vsel %vm3288, %v3281, %v3285
        %v3290 = vand.u32 2147483647, %v3249
        %vm3291 = vcmp.eq.f32.partialorder %v3290, 8.507059e+37
        %v3292 = vand.u32 %v3249, 2147483648
        %v3293 = vor.u32 1.1754944e-38, %v3292
        %v3294 = vsel %vm3291, %v3293, %v3289
        %v3295 = vmul.f32 1.0, %v3294
        %v3296 = vrcp.pop %v3250
        %v3297 = vmul.f32 %v3250, %v3296
        %v3298 = vsub.f32 1.0, %v3297
        %v3299 = vmul.f32 %v3296, %v3298
        %v3300 = vadd.f32 %v3296, %v3299
        %vm3301 = vweird.f32 %v3250
        %vm3302 = vweird.f32 %v3296
        %vm3303 = vmor %vm3301, %vm3302
        %v3304 = vsel %vm3303, %v3296, %v3300
        %v3305 = vand.u32 2147483647, %v3250
        %vm3306 = vcmp.eq.f32.partialorder %v3305, 8.507059e+37
        %v3307 = vand.u32 %v3250, 2147483648
        %v3308 = vor.u32 1.1754944e-38, %v3307
        %v3309 = vsel %vm3306, %v3308, %v3304
        %v3310 = vmul.f32 1.0, %v3309
        %v3311 = vsub.f32 1.0, %v3265
        %v3312 = vsub.f32 1.0, %v3280
        %v3313 = vsub.f32 1.0, %v3295
        %v3314 = vsub.f32 1.0, %v3310
        %v3315 = vlaneseq
        %v3316 = vand.u32 %v3315, 127
        %vm3317 = vcmp.eq.s32.totalorder %v3316, 0
        %vm3318 = vcmp.eq.s32.totalorder %v3316, 1
        %3320 = vset.pattern.permute.xlu0 1
        %3321 = vperm.xlu0 %3320, %v3265
        %v3322 = vpop.permute.xlu0 %3321
        %3325 = vset.pattern.permute.xlu0 1
        %3326 = vperm.xlu0 %3325, %v3280
        %v3327 = vpop.permute.xlu0 %3326
        %3330 = vset.pattern.permute.xlu0 1
        %3331 = vperm.xlu0 %3330, %v3295
        %v3332 = vpop.permute.xlu0 %3331
        %3335 = vset.pattern.permute.xlu0 1
        %3336 = vperm.xlu0 %3335, %v3310
        %v3337 = vpop.permute.xlu0 %3336
        %v3339 = vsel %vm3318, %v3322, 0.0
        %v3340 = vsel %vm3318, %v3327, 0.0
        %v3341 = vsel %vm3318, %v3332, 0.0
        %v3342 = vsel %vm3318, %v3337, 0.0
        %3344 = vset.pattern.permute.xlu0 1
        %3345 = vperm.xlu0 %3344, %v3311
        %v3346 = vpop.permute.xlu0 %3345
        %3349 = vset.pattern.permute.xlu0 1
        %3350 = vperm.xlu0 %3349, %v3312
        %v3351 = vpop.permute.xlu0 %3350
        %3354 = vset.pattern.permute.xlu0 1
        %3355 = vperm.xlu0 %3354, %v3313
        %v3356 = vpop.permute.xlu0 %3355
        %3359 = vset.pattern.permute.xlu0 1
        %3360 = vperm.xlu0 %3359, %v3314
        %v3361 = vpop.permute.xlu0 %3360
        %v3363 = vsel %vm3317, %v3346, %v3339
        %v3364 = vsel %vm3317, %v3351, %v3340
        %v3365 = vsel %vm3317, %v3356, %v3341
        %v3366 = vsel %vm3317, %v3361, %v3342
        %3367 = vst [vmem:[%s514] sm:$0xff] %v3363
        %3368 = vst [vmem:[%s514 + $0x8] sm:$0xff] %v3364
        %3369 = vst [vmem:[%s514 + $0x10] sm:$0xff] %v3365
        %3370 = vst [vmem:[%s514 + $0x18] sm:$0xff] %v3366
        %s3371 = smul.u32 4, %s29
        %p3372 = scmp.lt.s32.totalorder %s3371, 7
        %s3373 = scalar_select %p3372, %s3371, 7
        %s3374 = smul.addr %s3373, 8
        %s3375 = scalar_lea.vmem %s13, %s3374
        // Predicated region
        $region89: #{_forward_jit.1} parent=71 // pred_check
          %p3376 = pneg %p325
        $region90: #{_forward_jit.1} parent=71 // pred_check_branch
          %3378 = sbr.rel (%p3376) target = $region92
        $region91: #{_forward_jit.1} parent=71 // pred_region
          %s3379 = smul.u32 4, %s29
        $region92: #{_forward_jit.1} parent=71 // pred_fallthru
          _
      $region72: #{_forward_jit.1} parent=5 // pred_fallthru
        _
      %p3380 = scmp.le.s32.totalorder 2, %s24
      // Predicated region
      $region93: #{_forward_jit.1} parent=5 // pred_check
        %p3381 = pneg %p3380
      $region94: #{_forward_jit.1} parent=5 // pred_check_branch
        %3383 = sbr.rel (%p3381) target = $region96
      $region95: #{_forward_jit.1} parent=5 // pred_region
        %s3384 = ssub.s32 %s24, 2
        // Predicated region
        $region97: #{_forward_jit.1} parent=95 // pred_check
          %p3385 = pneg %p331
        $region98: #{_forward_jit.1} parent=95 // pred_check_branch
          %3387 = sbr.rel (%p3385) target = $region100
        $region99: #{_forward_jit.1} parent=95 // pred_region
          %s3388 = smul.u32 4, %s30
          %p3389 = scmp.lt.s32.totalorder %s3388, 7
          %s3390 = scalar_select %p3389, %s3388, 7
          %s3391 = smul.addr %s3390, 8
          %s3392 = scalar_lea.vmem %s13, %s3391
        $region100: #{_forward_jit.1} parent=95 // pred_fallthru
          _
      $region96: #{_forward_jit.1} parent=5 // pred_fallthru
        _
    $region6: #{_forward_jit.1} parent=1 // loop_footer
      %s28 = sadd.s32 1, %s24
    $region7: #{_forward_jit.1} parent=1 // loop_footer_branch
      %23 = sbr.rel target = $region3
    $region8: #{_forward_jit.1} parent=1 // loop_exit
      _
    %3393 = vsyncpa [#allocation3], 1
    %s3394 = scalar_lea.sflag [#allocation3], 1
    %3395 = vsyncpa %s3394, 1
    %3396 = vsyncpa [#allocation5], 1
    %3397 = vsyncpa [#allocation8], 1

</llo_original>
